<compile_context>
chip_gen: v7x
topology: tpu7x:2x2x1
jax: 0.10.0
libtpu: 0.0.40
codegen_flags: <defaults>
</compile_context>

<pallas_src>
import functools

import numpy as np
import jax
import jax.numpy as jnp
from jax.experimental import pallas as pl
from jax.experimental.pallas import tpu as pltpu

# ---------------------------------------------------------------------------
# Model hyper-parameters (small, deterministic synthetic setup)
# ---------------------------------------------------------------------------
N_EMBED = 768          # ERNIE hidden size (pooler_output dim)
N_OPTIONS = 5
N_LAYERS = 3           # -> 1 hidden->hidden layer in the MLP
N_HIDDEN = 128
VOCAB = 101
VOCAB_PAD = 128        # pad embedding rows to one full lane tile (128)
BATCH = 2
SEQ_LEN = 8

_VMEM = pl.BlockSpec(memory_space=pltpu.MemorySpace.VMEM)


# ---------------------------------------------------------------------------
# In-kernel sentence-encoder stand-in (riddle + options encoded together)
#   embedding lookup via weighted one-hot matmul (counts @ embed == masked
#   mean of token embeddings), then pooler dense + tanh (ERNIE pooler style).
# ---------------------------------------------------------------------------
def _encode(ids, mask, embed_ref, wp_ref, bp_ref):
    n, seq_len = ids.shape
    vocab = embed_ref.shape[0]
    # masked-mean weight per token (1/len), len clamped to >= 1
    denom = jnp.maximum(jnp.sum(mask, axis=1, keepdims=True), 1.0)         # (n, 1)
    weight = mask * pl.reciprocal(denom, approx=True)                      # (n, L)
    # weighted one-hot "scatter": counts[r, v] = sum_l weight[r,l]*[ids[r,l]==v]
    vid = jax.lax.broadcasted_iota(jnp.int32, (n, seq_len, vocab), 2)      # (n, L, V)
    sel = (ids[:, :, None] == vid).astype(jnp.float32) * weight[:, :, None]
    counts = jnp.sum(sel, axis=1)                                          # (n, V)
    # pooled == masked mean of token embeddings, via one MXU matmul
    pooled = jnp.dot(counts.astype(embed_ref.dtype), embed_ref[...],
                     preferred_element_type=jnp.float32)                   # (n, E) f32
    # pooler: dense + tanh (f32 elementwise, v5e-friendly; tanh on EUP)
    return jnp.tanh(jnp.dot(pooled.astype(wp_ref.dtype), wp_ref[...],
                            preferred_element_type=jnp.float32) + bp_ref[...])


# ---------------------------------------------------------------------------
# Fully fused forward kernel: encode -> MLP head -> log_softmax
# ---------------------------------------------------------------------------
def _fused_kernel(batch, n_hidden_layers,
                  ids_ref, mask_ref,
                  rep_ref, rept_ref, colmask_ref,
                  embed_ref, wp_ref, bp_ref,
                  w1r_ref, w1o_ref, b1_ref,
                  wh_ref, bh_ref, wl_ref, bl_ref,
                  out_ref):
    # TODO(synk): pretrained frozen ERNIE transformer is a checkpoint load;
    # replaced by the deterministic _encode() pooler stand-in.
    enc = _encode(ids_ref[...], mask_ref[...],
                  embed_ref, wp_ref, bp_ref)                               # (B+BK, E)
    riddle = enc[:batch]                                                   # (B, E)
    options = enc[batch:]                                                  # (BK, E)

    # First MLP layer on cat([riddle, option], -1) as a split matmul.
    # Riddle half computed ONCE per batch row, then replicated over options
    # with a tiny (BK, B) @ (B, H) selection matmul.
    r_h = jnp.dot(riddle.astype(w1r_ref.dtype), w1r_ref[...],
                  preferred_element_type=jnp.float32)                      # (B, H)
    o_h = jnp.dot(options.astype(w1o_ref.dtype), w1o_ref[...],
                  preferred_element_type=jnp.float32)                      # (BK, H)
    h = jnp.dot(rep_ref[...], r_h, preferred_element_type=jnp.float32) \
        + o_h + b1_ref[...]
    h = jnp.maximum(h, 0.0)

    # Hidden Linear(H,H) + ReLU layers (static unroll; n_layers-2 of them)
    for layer in range(n_hidden_layers):
        h = jnp.dot(h.astype(wh_ref.dtype), wh_ref[layer],
                    preferred_element_type=jnp.float32) + bh_ref[layer]
        h = jnp.maximum(h, 0.0)

    # Final Linear(H, 1) as a lane reduce (no 128x1 MXU matmul)
    s = jnp.sum(h * wl_ref[...], axis=-1, keepdims=True) + bl_ref[...]     # (BK, 1)

    # (BK,1) scores -> (B,K) logits via selection matmuls
    # (avoids an in-kernel sublane->lane reshape):
    #   logits[b,k] = sum_i repT[b,i] * s[i] * colmask[i,k] = s[b*K + k]
    logits = jnp.dot(rept_ref[...], s * colmask_ref[...],
                     preferred_element_type=jnp.float32)                   # (B, K)

    # log_softmax over the options axis (dim=1), numerically stable
    m = jnp.max(logits, axis=1, keepdims=True)
    z = logits - m
    lse = jnp.log(jnp.sum(jnp.exp(z), axis=1, keepdims=True))
    out_ref[...] = z - lse


# ---------------------------------------------------------------------------
# Parameter construction (deterministic)
# ---------------------------------------------------------------------------
def init_params(key):
    keys = jax.random.split(key, 6)
    n_hidden_layers = N_LAYERS - 2

    def w(k, shape, scale, dtype=jnp.bfloat16):
        return (jax.random.normal(k, shape, jnp.float32) * scale).astype(dtype)

    return {
        # stand-in encoder (bf16 weights, f32 MXU accumulation)
        "embed":  w(keys[0], (VOCAB_PAD, N_EMBED), 0.02),
        "w_pool": w(keys[1], (N_EMBED, N_EMBED), 0.02),
        "b_pool": jnp.zeros((1, N_EMBED), jnp.float32),
        # MLP: Linear(2E, H) split into riddle-half and options-half
        "w1r": w(keys[2], (N_EMBED, N_HIDDEN), 0.02),
        "w1o": w(keys[3], (N_EMBED, N_HIDDEN), 0.02),
        "b1":  jnp.zeros((1, N_HIDDEN), jnp.float32),
        # (n_layers - 2) hidden->hidden layers, stacked
        "wh": w(keys[4], (n_hidden_layers, N_HIDDEN, N_HIDDEN), 0.05),
        "bh": jnp.zeros((n_hidden_layers, 1, N_HIDDEN), jnp.float32),
        # final Linear(H, 1), kept f32 (used as a VPU reduce vector)
        "wl": w(keys[5], (1, N_HIDDEN), 0.05, jnp.float32),
        "bl": jnp.zeros((1, 1), jnp.float32),
    }


def _selection_matrices(batch, n_options):
    """Compile-time constant matrices for riddle replication and (BK,1)->(B,K)."""
    rep = np.repeat(np.eye(batch, dtype=np.float32), n_options, axis=0)      # (BK, B)
    rept = np.ascontiguousarray(rep.T)                                       # (B, BK)
    colmask = np.tile(np.eye(n_options, dtype=np.float32), (batch, 1))       # (BK, K)
    return jnp.asarray(rep), jnp.asarray(rept), jnp.asarray(colmask)


# ---------------------------------------------------------------------------
# Forward pass (mirrors ERNIEGuesser.forward) — single pallas_call
# ---------------------------------------------------------------------------
@jax.jit
def ernie_guesser_forward(params,
                          riddle_input_ids, riddle_attention_mask,
                          options_input_ids, options_attention_mask):
    b, seq_len = riddle_input_ids.shape
    k = options_input_ids.shape[1]

    # Layout plumbing only (no compute): stack riddle + flattened option
    # sentences so the encoder runs once over all B + B*K rows.
    ids = jnp.concatenate(
        [riddle_input_ids, options_input_ids.reshape(b * k, seq_len)], axis=0)
    mask = jnp.concatenate(
        [riddle_attention_mask,
         options_attention_mask.reshape(b * k, seq_len)], axis=0).astype(jnp.float32)
    rep, rept, colmask = _selection_matrices(b, k)

    n_hidden_layers = params["wh"].shape[0]
    kernel = functools.partial(_fused_kernel, b, n_hidden_layers)

    # Whole problem (~2 MB of weights, 12 sentences) fits comfortably in VMEM,
    # so no grid is used.  TODO(synk): if BATCH/SEQ_LEN grow large (esp. on
    # v7x's 64 MiB VMEM), switch to a row-tiled grid with
    # dimension_semantics=("parallel",) instead of full-array VMEM blocks.
    return pl.pallas_call(
        kernel,
        out_shape=jax.ShapeDtypeStruct((b, k), jnp.float32),
        in_specs=[_VMEM] * 15,
        out_specs=_VMEM,
    )(ids, mask, rep, rept, colmask,
      params["embed"], params["w_pool"], params["b_pool"],
      params["w1r"], params["w1o"], params["b1"],
      params["wh"], params["bh"], params["wl"], params["bl"])


# ---------------------------------------------------------------------------
if __name__ == "__main__":
    key = jax.random.PRNGKey(0)
    k_param, k_rid, k_opt = jax.random.split(key, 3)
    params = init_params(k_param)

    riddle_input_ids = jax.random.randint(
        k_rid, (BATCH, SEQ_LEN), 0, VOCAB, dtype=jnp.int32)
    riddle_attention_mask = jnp.ones((BATCH, SEQ_LEN), jnp.int32) \
        .at[1, SEQ_LEN - 2:].set(0)                     # exercise the mask path
    options_input_ids = jax.random.randint(
        k_opt, (BATCH, N_OPTIONS, SEQ_LEN), 0, VOCAB, dtype=jnp.int32)
    options_attention_mask = jnp.ones((BATCH, N_OPTIONS, SEQ_LEN), jnp.int32) \
        .at[:, :, SEQ_LEN - 1].set(0)

    out = ernie_guesser_forward(params,
                                riddle_input_ids, riddle_attention_mask,
                                options_input_ids, options_attention_mask)
    out = jax.block_until_ready(out)

    assert out.shape == (BATCH, N_OPTIONS)
    assert bool(jnp.all(jnp.isfinite(out)))
    # rows of log-probs must sum to ~1 after exp
    assert jnp.allclose(jnp.exp(out).sum(axis=1), 1.0, atol=1e-5)
    print("KERNEL_OK")
</pallas_src>

<mosaic_0001>
module attributes {stable_mosaic.version = 11 : i64} {
  func.func @_fused_kernel(%arg0: memref<12x8xi32, #tpu.memory_space<vmem>>, %arg1: memref<12x8xf32, #tpu.memory_space<vmem>>, %arg2: memref<10x2xf32, #tpu.memory_space<vmem>>, %arg3: memref<2x10xf32, #tpu.memory_space<vmem>>, %arg4: memref<10x5xf32, #tpu.memory_space<vmem>>, %arg5: memref<128x768xbf16, #tpu.memory_space<vmem>>, %arg6: memref<768x768xbf16, #tpu.memory_space<vmem>>, %arg7: memref<1x768xf32, #tpu.memory_space<vmem>>, %arg8: memref<768x128xbf16, #tpu.memory_space<vmem>>, %arg9: memref<768x128xbf16, #tpu.memory_space<vmem>>, %arg10: memref<1x128xf32, #tpu.memory_space<vmem>>, %arg11: memref<1x128x128xbf16, #tpu.memory_space<vmem>>, %arg12: memref<1x1x128xf32, #tpu.memory_space<vmem>>, %arg13: memref<1x128xf32, #tpu.memory_space<vmem>>, %arg14: memref<1x1xf32, #tpu.memory_space<vmem>>, %arg15: memref<2x5xf32, #tpu.memory_space<vmem>>) attributes {dimension_semantics = [], scalar_prefetch = 0 : i64, scratch_operands = 0 : i64, tpu.core_type = #tpu.core_type<tc>} {
    %c0 = arith.constant 0 : index
    %c0_0 = arith.constant 0 : index
    %0 = vector.load %arg0[%c0, %c0_0] : memref<12x8xi32, #tpu.memory_space<vmem>>, vector<12x8xi32>
    %c0_1 = arith.constant 0 : index
    %c0_2 = arith.constant 0 : index
    %1 = vector.load %arg1[%c0_1, %c0_2] : memref<12x8xf32, #tpu.memory_space<vmem>>, vector<12x8xf32>
    %cst = arith.constant dense<0.000000e+00> : vector<12xf32>
    %2 = vector.multi_reduction <add>, %1, %cst [1] : vector<12x8xf32> to vector<12xf32>
    %3 = vector.shape_cast %2 : vector<12xf32> to vector<12x1xf32>
    %cst_3 = arith.constant 1.000000e+00 : f32
    %4 = vector.broadcast %cst_3 : f32 to vector<12x1xf32>
    %5 = arith.maximumf %3, %4 : vector<12x1xf32>
    %6 = tpu.reciprocal %5 {approx = true} : vector<12x1xf32> -> vector<12x1xf32>
    %7 = vector.broadcast %6 : vector<12x1xf32> to vector<12x8xf32>
    %8 = arith.mulf %1, %7 : vector<12x8xf32>
    %9 = tpu.iota {dimensions = array<i32: 2>} : vector<12x8x128xi32>
    %10 = vector.shape_cast %0 : vector<12x8xi32> to vector<12x8x1xi32>
    %11 = vector.broadcast %10 : vector<12x8x1xi32> to vector<12x8x128xi32>
    %12 = arith.cmpi eq, %11, %9 : vector<12x8x128xi32>
    %13 = arith.extui %12 : vector<12x8x128xi1> to vector<12x8x128xi32>
    %14 = arith.sitofp %13 : vector<12x8x128xi32> to vector<12x8x128xf32>
    %15 = vector.shape_cast %8 : vector<12x8xf32> to vector<12x8x1xf32>
    %16 = vector.broadcast %15 : vector<12x8x1xf32> to vector<12x8x128xf32>
    %17 = arith.mulf %14, %16 : vector<12x8x128xf32>
    %cst_4 = arith.constant dense<0.000000e+00> : vector<12x128xf32>
    %18 = vector.multi_reduction <add>, %17, %cst_4 [1] : vector<12x8x128xf32> to vector<12x128xf32>
    %19 = arith.truncf %18 : vector<12x128xf32> to vector<12x128xbf16>
    %c0_5 = arith.constant 0 : index
    %c0_6 = arith.constant 0 : index
    %20 = vector.load %arg5[%c0_5, %c0_6] : memref<128x768xbf16, #tpu.memory_space<vmem>>, vector<128x768xbf16>
    %cst_7 = arith.constant dense<0.000000e+00> : vector<12x768xf32>
    %21 = tpu.matmul %19, %20, %cst_7 {dimension_numbers = #tpu.dot_dimension_numbers<[1], [0], [0], [1], [0, 0, 1, 1], [], []>} : vector<12x128xbf16>, vector<128x768xbf16>, vector<12x768xf32> -> vector<12x768xf32>
    %22 = arith.truncf %21 : vector<12x768xf32> to vector<12x768xbf16>
    %c0_8 = arith.constant 0 : index
    %c0_9 = arith.constant 0 : index
    %23 = vector.load %arg6[%c0_8, %c0_9] : memref<768x768xbf16, #tpu.memory_space<vmem>>, vector<768x768xbf16>
    %cst_10 = arith.constant dense<0.000000e+00> : vector<12x768xf32>
    %24 = tpu.matmul %22, %23, %cst_10 {dimension_numbers = #tpu.dot_dimension_numbers<[1], [0], [0], [1], [0, 0, 1, 1], [], []>} : vector<12x768xbf16>, vector<768x768xbf16>, vector<12x768xf32> -> vector<12x768xf32>
    %c0_11 = arith.constant 0 : index
    %c0_12 = arith.constant 0 : index
    %25 = vector.load %arg7[%c0_11, %c0_12] : memref<1x768xf32, #tpu.memory_space<vmem>>, vector<1x768xf32>
    %26 = vector.broadcast %25 : vector<1x768xf32> to vector<12x768xf32>
    %27 = arith.addf %24, %26 : vector<12x768xf32>
    %28 = math.tanh %27 : vector<12x768xf32>
    %29 = vector.extract_strided_slice %28 {offsets = [0, 0], sizes = [2, 768], strides = [1, 1]} : vector<12x768xf32> to vector<2x768xf32>
    %30 = vector.extract_strided_slice %28 {offsets = [2, 0], sizes = [10, 768], strides = [1, 1]} : vector<12x768xf32> to vector<10x768xf32>
    %31 = arith.truncf %29 : vector<2x768xf32> to vector<2x768xbf16>
    %c0_13 = arith.constant 0 : index
    %c0_14 = arith.constant 0 : index
    %32 = vector.load %arg8[%c0_13, %c0_14] : memref<768x128xbf16, #tpu.memory_space<vmem>>, vector<768x128xbf16>
    %cst_15 = arith.constant dense<0.000000e+00> : vector<2x128xf32>
    %33 = tpu.matmul %31, %32, %cst_15 {dimension_numbers = #tpu.dot_dimension_numbers<[1], [0], [0], [1], [0, 0, 1, 1], [], []>} : vector<2x768xbf16>, vector<768x128xbf16>, vector<2x128xf32> -> vector<2x128xf32>
    %34 = arith.truncf %30 : vector<10x768xf32> to vector<10x768xbf16>
    %c0_16 = arith.constant 0 : index
    %c0_17 = arith.constant 0 : index
    %35 = vector.load %arg9[%c0_16, %c0_17] : memref<768x128xbf16, #tpu.memory_space<vmem>>, vector<768x128xbf16>
    %cst_18 = arith.constant dense<0.000000e+00> : vector<10x128xf32>
    %36 = tpu.matmul %34, %35, %cst_18 {dimension_numbers = #tpu.dot_dimension_numbers<[1], [0], [0], [1], [0, 0, 1, 1], [], []>} : vector<10x768xbf16>, vector<768x128xbf16>, vector<10x128xf32> -> vector<10x128xf32>
    %c0_19 = arith.constant 0 : index
    %c0_20 = arith.constant 0 : index
    %37 = vector.load %arg2[%c0_19, %c0_20] : memref<10x2xf32, #tpu.memory_space<vmem>>, vector<10x2xf32>
    %cst_21 = arith.constant dense<0.000000e+00> : vector<10x128xf32>
    %38 = tpu.matmul %37, %33, %cst_21 {dimension_numbers = #tpu.dot_dimension_numbers<[1], [0], [0], [1], [0, 0, 1, 1], [], []>} : vector<10x2xf32>, vector<2x128xf32>, vector<10x128xf32> -> vector<10x128xf32>
    %39 = arith.addf %38, %36 : vector<10x128xf32>
    %c0_22 = arith.constant 0 : index
    %c0_23 = arith.constant 0 : index
    %40 = vector.load %arg10[%c0_22, %c0_23] : memref<1x128xf32, #tpu.memory_space<vmem>>, vector<1x128xf32>
    %41 = vector.broadcast %40 : vector<1x128xf32> to vector<10x128xf32>
    %42 = arith.addf %39, %41 : vector<10x128xf32>
    %cst_24 = arith.constant 0.000000e+00 : f32
    %43 = vector.broadcast %cst_24 : f32 to vector<10x128xf32>
    %44 = arith.maximumf %42, %43 : vector<10x128xf32>
    %45 = arith.truncf %44 : vector<10x128xf32> to vector<10x128xbf16>
    %c0_25 = arith.constant 0 : index
    %c0_26 = arith.constant 0 : index
    %c0_27 = arith.constant 0 : index
    %46 = vector.load %arg11[%c0_25, %c0_26, %c0_27] : memref<1x128x128xbf16, #tpu.memory_space<vmem>>, vector<1x128x128xbf16>
    %47 = vector.shape_cast %46 : vector<1x128x128xbf16> to vector<128x128xbf16>
    %cst_28 = arith.constant dense<0.000000e+00> : vector<10x128xf32>
    %48 = tpu.matmul %45, %47, %cst_28 {dimension_numbers = #tpu.dot_dimension_numbers<[1], [0], [0], [1], [0, 0, 1, 1], [], []>} : vector<10x128xbf16>, vector<128x128xbf16>, vector<10x128xf32> -> vector<10x128xf32>
    %c0_29 = arith.constant 0 : index
    %c0_30 = arith.constant 0 : index
    %c0_31 = arith.constant 0 : index
    %49 = vector.load %arg12[%c0_29, %c0_30, %c0_31] : memref<1x1x128xf32, #tpu.memory_space<vmem>>, vector<1x1x128xf32>
    %50 = vector.shape_cast %49 : vector<1x1x128xf32> to vector<1x128xf32>
    %51 = vector.broadcast %50 : vector<1x128xf32> to vector<10x128xf32>
    %52 = arith.addf %48, %51 : vector<10x128xf32>
    %cst_32 = arith.constant 0.000000e+00 : f32
    %53 = vector.broadcast %cst_32 : f32 to vector<10x128xf32>
    %54 = arith.maximumf %52, %53 : vector<10x128xf32>
    %c0_33 = arith.constant 0 : index
    %c0_34 = arith.constant 0 : index
    %55 = vector.load %arg13[%c0_33, %c0_34] : memref<1x128xf32, #tpu.memory_space<vmem>>, vector<1x128xf32>
    %56 = vector.broadcast %55 : vector<1x128xf32> to vector<10x128xf32>
    %57 = arith.mulf %54, %56 : vector<10x128xf32>
    %cst_35 = arith.constant dense<0.000000e+00> : vector<10xf32>
    %58 = vector.multi_reduction <add>, %57, %cst_35 [1] : vector<10x128xf32> to vector<10xf32>
    %59 = vector.shape_cast %58 : vector<10xf32> to vector<10x1xf32>
    %c0_36 = arith.constant 0 : index
    %c0_37 = arith.constant 0 : index
    %60 = vector.load %arg14[%c0_36, %c0_37] : memref<1x1xf32, #tpu.memory_space<vmem>>, vector<1x1xf32>
    %61 = vector.broadcast %60 : vector<1x1xf32> to vector<10x1xf32>
    %62 = arith.addf %59, %61 : vector<10x1xf32>
    %c0_38 = arith.constant 0 : index
    %c0_39 = arith.constant 0 : index
    %63 = vector.load %arg3[%c0_38, %c0_39] : memref<2x10xf32, #tpu.memory_space<vmem>>, vector<2x10xf32>
    %c0_40 = arith.constant 0 : index
    %c0_41 = arith.constant 0 : index
    %64 = vector.load %arg4[%c0_40, %c0_41] : memref<10x5xf32, #tpu.memory_space<vmem>>, vector<10x5xf32>
    %65 = vector.broadcast %62 : vector<10x1xf32> to vector<10x5xf32>
    %66 = arith.mulf %65, %64 : vector<10x5xf32>
    %cst_42 = arith.constant dense<0.000000e+00> : vector<2x5xf32>
    %67 = tpu.matmul %63, %66, %cst_42 {dimension_numbers = #tpu.dot_dimension_numbers<[1], [0], [0], [1], [0, 0, 1, 1], [], []>} : vector<2x10xf32>, vector<10x5xf32>, vector<2x5xf32> -> vector<2x5xf32>
    %cst_43 = arith.constant dense<0xFF800000> : vector<2xf32>
    %68 = vector.multi_reduction <maximumf>, %67, %cst_43 [1] : vector<2x5xf32> to vector<2xf32>
    %69 = vector.shape_cast %68 : vector<2xf32> to vector<2x1xf32>
    %70 = vector.broadcast %69 : vector<2x1xf32> to vector<2x5xf32>
    %71 = arith.subf %67, %70 : vector<2x5xf32>
    %72 = math.exp %71 : vector<2x5xf32>
    %cst_44 = arith.constant dense<0.000000e+00> : vector<2xf32>
    %73 = vector.multi_reduction <add>, %72, %cst_44 [1] : vector<2x5xf32> to vector<2xf32>
    %74 = vector.shape_cast %73 : vector<2xf32> to vector<2x1xf32>
    %75 = math.log %74 : vector<2x1xf32>
    %76 = vector.broadcast %75 : vector<2x1xf32> to vector<2x5xf32>
    %77 = arith.subf %71, %76 : vector<2x5xf32>
    %c0_45 = arith.constant 0 : index
    %c0_46 = arith.constant 0 : index
    %78 = vector.load %arg15[%c0_45, %c0_46] : memref<2x5xf32, #tpu.memory_space<vmem>>, vector<2x5xf32>
    tpu.vector_store %arg15[%c0_45, %c0_46], %77 {strides = array<i32>} : memref<2x5xf32, #tpu.memory_space<vmem>>, vector<2x5xf32>,
    return
  }
}

</mosaic_0001>

<llo_original>
// kernel: ernie_guesser_forward.1
$region0: #{ernie_guesser_forward.1}
  #allocation0 [shape = 'u32[]', space=smem, size = 0x4, offset = 0x4, fixed_abs, tag = 'smem constant byte address 0x4 - core index']
  #allocation1 [shape = 'u32[144,128]{1,0:T(1,128)}', space=vmem, size = 0x12000, scoped, tag = 'internal scratch']
  #allocation2 [shape = 'f32[1,1]{1,0:T(1,128)S(1)}', space=vmem, size = 0x200, scoped, tag = 'scoped memory for ernie_guesser_forward.1']
  %s0 = inlined_call_operand.vmem [shape: s32[12,8], index: 0, kind: input, shape index: {}]
  %s1 = inlined_call_operand.vmem [shape: f32[12,8], index: 1, kind: input, shape index: {}]
  %s2 = inlined_call_operand.hbm [shape: f32[10,2], index: 2, kind: input, shape index: {}]
  %s3 = inlined_call_operand.hbm [shape: f32[2,10], index: 3, kind: input, shape index: {}]
  %s4 = inlined_call_operand.hbm [shape: f32[10,5], index: 4, kind: input, shape index: {}]
  %s5 = inlined_call_operand.hbm [shape: bf16[128,768], index: 5, kind: input, shape index: {}]
  %s6 = inlined_call_operand.hbm [shape: bf16[768,768], index: 6, kind: input, shape index: {}]
  %s7 = inlined_call_operand.hbm [shape: f32[1,768], index: 7, kind: input, shape index: {}]
  %s8 = inlined_call_operand.hbm [shape: bf16[768,128], index: 8, kind: input, shape index: {}]
  %s9 = inlined_call_operand.hbm [shape: bf16[768,128], index: 9, kind: input, shape index: {}]
  %s10 = inlined_call_operand.hbm [shape: f32[1,128], index: 10, kind: input, shape index: {}]
  %s11 = inlined_call_operand.hbm [shape: bf16[1,128,128], index: 11, kind: input, shape index: {}]
  %s12 = inlined_call_operand.hbm [shape: f32[1,1,128], index: 12, kind: input, shape index: {}]
  %s13 = inlined_call_operand.hbm [shape: f32[1,128], index: 13, kind: input, shape index: {}]
  %s14 = inlined_call_operand.<no memory space> [shape: f32[1,1], index: 14, kind: input, shape index: {}]
  %s15 = inlined_call_operand.hbm [shape: f32[2,5], index: 15, kind: output, shape index: {}]
  %s16 = sld [smem:[#allocation0]]
  $region118: #{ernie_guesser_forward.1} parent=0
    _
  %s18 = ssub.s32 1, %s16
  %s19 = scalar_select 0, %s18, %s16
  %v20 = vstv %s14
  %21 = vst [vmem:[#allocation2] sm:$0x1] %v20
  $region1: #{ernie_guesser_forward.1} parent=0
    #allocation3 [shape = 'u8[8192]{0}', space=vmem, size = 0x2000, scoped, tag = 'input window, operand 2, single buffered']
    #allocation4 [shape = 's32[1]{0}', space=sflag, size = 0x4, scoped, tag = 'scoped memory for ernie_guesser_forward.1']
    #allocation5 [shape = 's32[1]{0}', space=sflag, size = 0x4, scoped, tag = 'scoped memory for ernie_guesser_forward.1']
    #allocation6 [shape = 'u8[1024]{0}', space=vmem, size = 0x400, scoped, tag = 'input window, operand 3, single buffered']
    #allocation7 [shape = 's32[1]{0}', space=sflag, size = 0x4, scoped, tag = 'scoped memory for ernie_guesser_forward.1']
    #allocation8 [shape = 'u8[8192]{0}', space=vmem, size = 0x2000, scoped, tag = 'input window, operand 4, single buffered']
    #allocation9 [shape = 'u8[196608]{0}', space=vmem, size = 0x30000, scoped, tag = 'input window, operand 5, single buffered']
    #allocation10 [shape = 's32[1]{0}', space=sflag, size = 0x4, scoped, tag = 'scoped memory for ernie_guesser_forward.1']
    #allocation11 [shape = 'u8[1179648]{0}', space=vmem, size = 0x120000, scoped, tag = 'input window, operand 6, single buffered']
    #allocation12 [shape = 'u8[3072]{0}', space=vmem, size = 0xc00, scoped, tag = 'input window, operand 7, single buffered']
    #allocation13 [shape = 's32[1]{0}', space=sflag, size = 0x4, scoped, tag = 'scoped memory for ernie_guesser_forward.1']
    #allocation14 [shape = 'u8[196608]{0}', space=vmem, size = 0x30000, scoped, tag = 'input window, operand 8, single buffered']
    #allocation15 [shape = 'u8[196608]{0}', space=vmem, size = 0x30000, scoped, tag = 'input window, operand 9, single buffered']
    #allocation16 [shape = 's32[1]{0}', space=sflag, size = 0x4, scoped, tag = 'scoped memory for ernie_guesser_forward.1']
    #allocation17 [shape = 'u8[512]{0}', space=vmem, size = 0x400, scoped, tag = 'input window, operand 10, single buffered']
    #allocation18 [shape = 'u8[32768]{0}', space=vmem, size = 0x8000, scoped, tag = 'input window, operand 11, single buffered']
    #allocation19 [shape = 's32[1]{0}', space=sflag, size = 0x4, scoped, tag = 'scoped memory for ernie_guesser_forward.1']
    #allocation20 [shape = 'u8[512]{0}', space=vmem, size = 0x400, scoped, tag = 'input window, operand 12, single buffered']
    #allocation21 [shape = 'u8[512]{0}', space=vmem, size = 0x400, scoped, tag = 'input window, operand 13, single buffered']
    #allocation22 [shape = 's32[1]{0}', space=sflag, size = 0x4, scoped, tag = 'scoped memory for ernie_guesser_forward.1']
    #allocation23 [shape = 'u8[1024]{0}', space=vmem, size = 0x400, scoped, tag = 'output window, operand 0, single buffered']
    %22 = vsyncpa [#allocation4], 0
    %23 = vsyncpa [#allocation7], 0
    %24 = vsyncpa [#allocation10], 0
    %25 = vsyncpa [#allocation13], 0
    %26 = vsyncpa [#allocation16], 0
    %27 = vsyncpa [#allocation19], 0
    %28 = vsyncpa [#allocation22], 0
    %29 = vsyncpa [#allocation5], 0
    // Predicated region
    $region2: #{ernie_guesser_forward.1} parent=1 // pred_check
      _
    $region3: #{ernie_guesser_forward.1} parent=1 // pred_check_branch
      %31 = sbr.rel (0) target = $region5
    $region4: #{ernie_guesser_forward.1} parent=1 // pred_region
      _
    $region5: #{ernie_guesser_forward.1} parent=1 // pred_fallthru
      _
    // Predicated region
    $region6: #{ernie_guesser_forward.1} parent=1 // pred_check
      _
    $region7: #{ernie_guesser_forward.1} parent=1 // pred_check_branch
      %33 = sbr.rel (0) target = $region9
    $region8: #{ernie_guesser_forward.1} parent=1 // pred_region
      _
    $region9: #{ernie_guesser_forward.1} parent=1 // pred_fallthru
      _
    // Predicated region
    $region10: #{ernie_guesser_forward.1} parent=1 // pred_check
      _
    $region11: #{ernie_guesser_forward.1} parent=1 // pred_check_branch
      %35 = sbr.rel (0) target = $region13
    $region12: #{ernie_guesser_forward.1} parent=1 // pred_region
      %s37 = ssub.s32 256, 256
      %38 = vsyncadd [#allocation4], %s37
      %s39 = sshll.u32 [#allocation3], 4
      %s40 = int_to_ptr.vmem [resolvable:$true] %s39
      %45 = dma.hbm_to_vmem [thread:$0]  %s2, 256, %s40, [#allocation4], 128, 128, 8
    $region13: #{ernie_guesser_forward.1} parent=1 // pred_fallthru
      _
    // Predicated region
    $region14: #{ernie_guesser_forward.1} parent=1 // pred_check
      _
    $region15: #{ernie_guesser_forward.1} parent=1 // pred_check_branch
      %47 = sbr.rel (0) target = $region17
    $region16: #{ernie_guesser_forward.1} parent=1 // pred_region
      %s49 = ssub.s32 32, 32
      %50 = vsyncadd [#allocation7], %s49
      %s52 = sshll.u32 [#allocation6], 4
      %s53 = int_to_ptr.vmem [resolvable:$true] %s52
      %55 = dma.hbm_to_vmem [thread:$0]  %s3, 32, %s53, [#allocation7]
    $region17: #{ernie_guesser_forward.1} parent=1 // pred_fallthru
      _
    // Predicated region
    $region18: #{ernie_guesser_forward.1} parent=1 // pred_check
      _
    $region19: #{ernie_guesser_forward.1} parent=1 // pred_check_branch
      %57 = sbr.rel (0) target = $region21
    $region20: #{ernie_guesser_forward.1} parent=1 // pred_region
      %s59 = ssub.s32 256, 256
      %60 = vsyncadd [#allocation7], %s59
      %s61 = sshll.u32 [#allocation8], 4
      %s62 = int_to_ptr.vmem [resolvable:$true] %s61
      %67 = dma.hbm_to_vmem [thread:$0]  %s4, 256, %s62, [#allocation7], 128, 128, 8
    $region21: #{ernie_guesser_forward.1} parent=1 // pred_fallthru
      _
    // Predicated region
    $region22: #{ernie_guesser_forward.1} parent=1 // pred_check
      _
    $region23: #{ernie_guesser_forward.1} parent=1 // pred_check_branch
      %69 = sbr.rel (0) target = $region25
    $region24: #{ernie_guesser_forward.1} parent=1 // pred_region
      %s71 = ssub.s32 6144, 6144
      %72 = vsyncadd [#allocation10], %s71
      %s73 = sshll.u32 [#allocation9], 4
      %s74 = int_to_ptr.vmem [resolvable:$true] %s73
      %79 = dma.hbm_to_vmem [thread:$0]  %s5, 6144, %s74, [#allocation10], 384, 384, 24
    $region25: #{ernie_guesser_forward.1} parent=1 // pred_fallthru
      _
    // Predicated region
    $region26: #{ernie_guesser_forward.1} parent=1 // pred_check
      _
    $region27: #{ernie_guesser_forward.1} parent=1 // pred_check_branch
      %81 = sbr.rel (0) target = $region29
    $region28: #{ernie_guesser_forward.1} parent=1 // pred_region
      %s83 = ssub.s32 36864, 36864
      %84 = vsyncadd [#allocation10], %s83
      %s85 = sshll.u32 [#allocation11], 4
      %s86 = int_to_ptr.vmem [resolvable:$true] %s85
      %91 = dma.hbm_to_vmem [thread:$0]  %s6, 36864, %s86, [#allocation10], 384, 384, 24
    $region29: #{ernie_guesser_forward.1} parent=1 // pred_fallthru
      _
    // Predicated region
    $region30: #{ernie_guesser_forward.1} parent=1 // pred_check
      _
    $region31: #{ernie_guesser_forward.1} parent=1 // pred_check_branch
      %93 = sbr.rel (0) target = $region33
    $region32: #{ernie_guesser_forward.1} parent=1 // pred_region
      %s95 = ssub.s32 96, 96
      %96 = vsyncadd [#allocation13], %s95
      %s98 = sshll.u32 [#allocation12], 4
      %s99 = int_to_ptr.vmem [resolvable:$true] %s98
      %101 = dma.hbm_to_vmem [thread:$0]  %s7, 96, %s99, [#allocation13]
    $region33: #{ernie_guesser_forward.1} parent=1 // pred_fallthru
      _
    // Predicated region
    $region34: #{ernie_guesser_forward.1} parent=1 // pred_check
      _
    $region35: #{ernie_guesser_forward.1} parent=1 // pred_check_branch
      %103 = sbr.rel (0) target = $region37
    $region36: #{ernie_guesser_forward.1} parent=1 // pred_region
      %s105 = ssub.s32 6144, 6144
      %106 = vsyncadd [#allocation13], %s105
      %s107 = sshll.u32 [#allocation14], 4
      %s108 = int_to_ptr.vmem [resolvable:$true] %s107
      %113 = dma.hbm_to_vmem [thread:$0]  %s8, 6144, %s108, [#allocation13], 64, 64, 4
    $region37: #{ernie_guesser_forward.1} parent=1 // pred_fallthru
      _
    // Predicated region
    $region38: #{ernie_guesser_forward.1} parent=1 // pred_check
      _
    $region39: #{ernie_guesser_forward.1} parent=1 // pred_check_branch
      %115 = sbr.rel (0) target = $region41
    $region40: #{ernie_guesser_forward.1} parent=1 // pred_region
      %s117 = ssub.s32 6144, 6144
      %118 = vsyncadd [#allocation16], %s117
      %s119 = sshll.u32 [#allocation15], 4
      %s120 = int_to_ptr.vmem [resolvable:$true] %s119
      %125 = dma.hbm_to_vmem [thread:$0]  %s9, 6144, %s120, [#allocation16], 64, 64, 4
    $region41: #{ernie_guesser_forward.1} parent=1 // pred_fallthru
      _
    // Predicated region
    $region42: #{ernie_guesser_forward.1} parent=1 // pred_check
      _
    $region43: #{ernie_guesser_forward.1} parent=1 // pred_check_branch
      %127 = sbr.rel (0) target = $region45
    $region44: #{ernie_guesser_forward.1} parent=1 // pred_region
      %s129 = ssub.s32 16, 16
      %130 = vsyncadd [#allocation16], %s129
      %s132 = sshll.u32 [#allocation17], 4
      %s133 = int_to_ptr.vmem [resolvable:$true] %s132
      %135 = dma.hbm_to_vmem [thread:$0]  %s10, 16, %s133, [#allocation16]
    $region45: #{ernie_guesser_forward.1} parent=1 // pred_fallthru
      _
    // Predicated region
    $region46: #{ernie_guesser_forward.1} parent=1 // pred_check
      _
    $region47: #{ernie_guesser_forward.1} parent=1 // pred_check_branch
      %137 = sbr.rel (0) target = $region49
    $region48: #{ernie_guesser_forward.1} parent=1 // pred_region
      %s139 = ssub.s32 1024, 1024
      %140 = vsyncadd [#allocation19], %s139
      %s141 = sshll.u32 [#allocation18], 4
      %s142 = int_to_ptr.vmem [resolvable:$true] %s141
      %147 = dma.hbm_to_vmem [thread:$0]  %s11, 1024, %s142, [#allocation19], 64, 64, 4
    $region49: #{ernie_guesser_forward.1} parent=1 // pred_fallthru
      _
    // Predicated region
    $region50: #{ernie_guesser_forward.1} parent=1 // pred_check
      _
    $region51: #{ernie_guesser_forward.1} parent=1 // pred_check_branch
      %149 = sbr.rel (0) target = $region53
    $region52: #{ernie_guesser_forward.1} parent=1 // pred_region
      %s151 = ssub.s32 16, 16
      %152 = vsyncadd [#allocation19], %s151
      %s154 = sshll.u32 [#allocation20], 4
      %s155 = int_to_ptr.vmem [resolvable:$true] %s154
      %157 = dma.hbm_to_vmem [thread:$0]  %s12, 16, %s155, [#allocation19]
    $region53: #{ernie_guesser_forward.1} parent=1 // pred_fallthru
      _
    // Predicated region
    $region54: #{ernie_guesser_forward.1} parent=1 // pred_check
      _
    $region55: #{ernie_guesser_forward.1} parent=1 // pred_check_branch
      %159 = sbr.rel (0) target = $region57
    $region56: #{ernie_guesser_forward.1} parent=1 // pred_region
      %s161 = ssub.s32 16, 16
      %162 = vsyncadd [#allocation22], %s161
      %s164 = sshll.u32 [#allocation21], 4
      %s165 = int_to_ptr.vmem [resolvable:$true] %s164
      %167 = dma.hbm_to_vmem [thread:$0]  %s13, 16, %s165, [#allocation22]
    $region57: #{ernie_guesser_forward.1} parent=1 // pred_fallthru
      _
    // Predicated region
    $region58: #{ernie_guesser_forward.1} parent=1 // pred_check
      _
    $region59: #{ernie_guesser_forward.1} parent=1 // pred_check_branch
      %169 = sbr.rel (0) target = $region61
    $region60: #{ernie_guesser_forward.1} parent=1 // pred_region
      _
    $region61: #{ernie_guesser_forward.1} parent=1 // pred_fallthru
      _
    // Predicated region
    $region62: #{ernie_guesser_forward.1} parent=1 // pred_check
      _
    $region63: #{ernie_guesser_forward.1} parent=1 // pred_check_branch
      %171 = sbr.rel (0) target = $region65
    $region64: #{ernie_guesser_forward.1} parent=1 // pred_region
      %172 = dma.done [#allocation4], 256
    $region65: #{ernie_guesser_forward.1} parent=1 // pred_fallthru
      _
    // Predicated region
    $region66: #{ernie_guesser_forward.1} parent=1 // pred_check
      _
    $region67: #{ernie_guesser_forward.1} parent=1 // pred_check_branch
      %174 = sbr.rel (0) target = $region69
    $region68: #{ernie_guesser_forward.1} parent=1 // pred_region
      %175 = dma.done [#allocation7], 32
    $region69: #{ernie_guesser_forward.1} parent=1 // pred_fallthru
      _
    // Predicated region
    $region70: #{ernie_guesser_forward.1} parent=1 // pred_check
      _
    $region71: #{ernie_guesser_forward.1} parent=1 // pred_check_branch
      %177 = sbr.rel (0) target = $region73
    $region72: #{ernie_guesser_forward.1} parent=1 // pred_region
      %178 = dma.done [#allocation7], 256
    $region73: #{ernie_guesser_forward.1} parent=1 // pred_fallthru
      _
    // Predicated region
    $region74: #{ernie_guesser_forward.1} parent=1 // pred_check
      _
    $region75: #{ernie_guesser_forward.1} parent=1 // pred_check_branch
      %180 = sbr.rel (0) target = $region77
    $region76: #{ernie_guesser_forward.1} parent=1 // pred_region
      %181 = dma.done [#allocation10], 6144
    $region77: #{ernie_guesser_forward.1} parent=1 // pred_fallthru
      _
    // Predicated region
    $region78: #{ernie_guesser_forward.1} parent=1 // pred_check
      _
    $region79: #{ernie_guesser_forward.1} parent=1 // pred_check_branch
      %183 = sbr.rel (0) target = $region81
    $region80: #{ernie_guesser_forward.1} parent=1 // pred_region
      %184 = dma.done [#allocation10], 36864
    $region81: #{ernie_guesser_forward.1} parent=1 // pred_fallthru
      _
    // Predicated region
    $region82: #{ernie_guesser_forward.1} parent=1 // pred_check
      _
    $region83: #{ernie_guesser_forward.1} parent=1 // pred_check_branch
      %186 = sbr.rel (0) target = $region85
    $region84: #{ernie_guesser_forward.1} parent=1 // pred_region
      %187 = dma.done [#allocation13], 96
    $region85: #{ernie_guesser_forward.1} parent=1 // pred_fallthru
      _
    // Predicated region
    $region86: #{ernie_guesser_forward.1} parent=1 // pred_check
      _
    $region87: #{ernie_guesser_forward.1} parent=1 // pred_check_branch
      %189 = sbr.rel (0) target = $region89
    $region88: #{ernie_guesser_forward.1} parent=1 // pred_region
      %190 = dma.done [#allocation13], 6144
    $region89: #{ernie_guesser_forward.1} parent=1 // pred_fallthru
      _
    // Predicated region
    $region90: #{ernie_guesser_forward.1} parent=1 // pred_check
      _
    $region91: #{ernie_guesser_forward.1} parent=1 // pred_check_branch
      %192 = sbr.rel (0) target = $region93
    $region92: #{ernie_guesser_forward.1} parent=1 // pred_region
      %193 = dma.done [#allocation16], 6144
    $region93: #{ernie_guesser_forward.1} parent=1 // pred_fallthru
      _
    // Predicated region
    $region94: #{ernie_guesser_forward.1} parent=1 // pred_check
      _
    $region95: #{ernie_guesser_forward.1} parent=1 // pred_check_branch
      %195 = sbr.rel (0) target = $region97
    $region96: #{ernie_guesser_forward.1} parent=1 // pred_region
      %196 = dma.done [#allocation16], 16
    $region97: #{ernie_guesser_forward.1} parent=1 // pred_fallthru
      _
    // Predicated region
    $region98: #{ernie_guesser_forward.1} parent=1 // pred_check
      _
    $region99: #{ernie_guesser_forward.1} parent=1 // pred_check_branch
      %198 = sbr.rel (0) target = $region101
    $region100: #{ernie_guesser_forward.1} parent=1 // pred_region
      %199 = dma.done [#allocation19], 1024
    $region101: #{ernie_guesser_forward.1} parent=1 // pred_fallthru
      _
    // Predicated region
    $region102: #{ernie_guesser_forward.1} parent=1 // pred_check
      _
    $region103: #{ernie_guesser_forward.1} parent=1 // pred_check_branch
      %201 = sbr.rel (0) target = $region105
    $region104: #{ernie_guesser_forward.1} parent=1 // pred_region
      %202 = dma.done [#allocation19], 16
    $region105: #{ernie_guesser_forward.1} parent=1 // pred_fallthru
      _
    // Predicated region
    $region106: #{ernie_guesser_forward.1} parent=1 // pred_check
      _
    $region107: #{ernie_guesser_forward.1} parent=1 // pred_check_branch
      %204 = sbr.rel (0) target = $region109
    $region108: #{ernie_guesser_forward.1} parent=1 // pred_region
      %205 = dma.done [#allocation22], 16
    $region109: #{ernie_guesser_forward.1} parent=1 // pred_fallthru
      _
    %v207 = vld [vmem:[%s0] sm:$0xff]
    %v208 = vld [vmem:[%s0 + $0x8] sm:$0xf]
    %v209 = vld [vmem:[%s1] sm:$0xff]
    %v210 = vld [vmem:[%s1 + $0x8] sm:$0xf]
    %vm211 = vcmask 64512
    %v212 = vsel %vm211, %v209, 0.0
    %213 = vadd.xlane.f32.xlu0 %v212
    %v214 = vpop.xlane.xlu0 %213
    %vm215 = vcmask 60416
    %v216 = vsel %vm215, %v210, 0.0
    %217 = vadd.xlane.f32.xlu0 %v216
    %v218 = vpop.xlane.xlu0 %217
    %v219 = vmax.f32 %v214, 1.0
    %v220 = vmax.f32 %v218, 1.0
    %v221 = vrcp.pop %v219
    %v222 = vrcp.pop %v220
    %v223 = vmul.f32 %v209, %v221
    %v224 = vmul.f32 %v210, %v222
    %v225 = vlaneseq
    %v226 = vand.u32 %v225, 127
    %v227 = vlaneseq
    %v228 = vshrl.u32 %v227, 7
    %v229 = vsub.s32 0, %v228
    %v230 = vrot.slane %v207, %v229
    %232 = vbcast.lane.b32.xlu0 %v230, 256
    %v233 = vpop.permute.xlu0 %232
    %v234 = vlaneseq
    %v235 = vshrl.u32 %v234, 7
    %v236 = vsub.s32 1, %v235
    %v237 = vrot.slane %v207, %v236
    %239 = vbcast.lane.b32.xlu0 %v237, 256
    %v240 = vpop.permute.xlu0 %239
    %v241 = vlaneseq
    %v242 = vshrl.u32 %v241, 7
    %v243 = vsub.s32 2, %v242
    %v244 = vrot.slane %v207, %v243
    %246 = vbcast.lane.b32.xlu0 %v244, 256
    %v247 = vpop.permute.xlu0 %246
    %v248 = vlaneseq
    %v249 = vshrl.u32 %v248, 7
    %v250 = vsub.s32 3, %v249
    %v251 = vrot.slane %v207, %v250
    %253 = vbcast.lane.b32.xlu0 %v251, 256
    %v254 = vpop.permute.xlu0 %253
    %v255 = vlaneseq
    %v256 = vshrl.u32 %v255, 7
    %v257 = vsub.s32 4, %v256
    %v258 = vrot.slane %v207, %v257
    %260 = vbcast.lane.b32.xlu0 %v258, 256
    %v261 = vpop.permute.xlu0 %260
    %v262 = vlaneseq
    %v263 = vshrl.u32 %v262, 7
    %v264 = vsub.s32 5, %v263
    %v265 = vrot.slane %v207, %v264
    %267 = vbcast.lane.b32.xlu0 %v265, 256
    %v268 = vpop.permute.xlu0 %267
    %v269 = vlaneseq
    %v270 = vshrl.u32 %v269, 7
    %v271 = vsub.s32 6, %v270
    %v272 = vrot.slane %v207, %v271
    %274 = vbcast.lane.b32.xlu0 %v272, 256
    %v275 = vpop.permute.xlu0 %274
    %v276 = vlaneseq
    %v277 = vshrl.u32 %v276, 7
    %v278 = vsub.s32 7, %v277
    %v279 = vrot.slane %v207, %v278
    %281 = vbcast.lane.b32.xlu0 %v279, 256
    %v282 = vpop.permute.xlu0 %281
    %v283 = vlaneseq
    %v284 = vshrl.u32 %v283, 7
    %v285 = vsub.s32 0, %v284
    %v286 = vrot.slane %v208, %v285
    %288 = vbcast.lane.b32.xlu0 %v286, 256
    %v289 = vpop.permute.xlu0 %288
    %v290 = vlaneseq
    %v291 = vshrl.u32 %v290, 7
    %v292 = vsub.s32 1, %v291
    %v293 = vrot.slane %v208, %v292
    %295 = vbcast.lane.b32.xlu0 %v293, 256
    %v296 = vpop.permute.xlu0 %295
    %v297 = vlaneseq
    %v298 = vshrl.u32 %v297, 7
    %v299 = vsub.s32 2, %v298
    %v300 = vrot.slane %v208, %v299
    %302 = vbcast.lane.b32.xlu0 %v300, 256
    %v303 = vpop.permute.xlu0 %302
    %v304 = vlaneseq
    %v305 = vshrl.u32 %v304, 7
    %v306 = vsub.s32 3, %v305
    %v307 = vrot.slane %v208, %v306
    %309 = vbcast.lane.b32.xlu0 %v307, 256
    %v310 = vpop.permute.xlu0 %309
    %vm311 = vcmp.eq.s32.totalorder %v233, %v226
    %vm312 = vcmp.eq.s32.totalorder %v240, %v226
    %vm313 = vcmp.eq.s32.totalorder %v247, %v226
    %vm314 = vcmp.eq.s32.totalorder %v254, %v226
    %vm315 = vcmp.eq.s32.totalorder %v261, %v226
    %vm316 = vcmp.eq.s32.totalorder %v268, %v226
    %vm317 = vcmp.eq.s32.totalorder %v275, %v226
    %vm318 = vcmp.eq.s32.totalorder %v282, %v226
    %vm319 = vcmp.eq.s32.totalorder %v289, %v226
    %vm320 = vcmp.eq.s32.totalorder %v296, %v226
    %vm321 = vcmp.eq.s32.totalorder %v303, %v226
    %vm322 = vcmp.eq.s32.totalorder %v310, %v226
    %v323 = vsel %vm311, 1, 0
    %v324 = vsel %vm312, 1, 0
    %v325 = vsel %vm313, 1, 0
    %v326 = vsel %vm314, 1, 0
    %v327 = vsel %vm315, 1, 0
    %v328 = vsel %vm316, 1, 0
    %v329 = vsel %vm317, 1, 0
    %v330 = vsel %vm318, 1, 0
    %v331 = vsel %vm319, 1, 0
    %v332 = vsel %vm320, 1, 0
    %v333 = vsel %vm321, 1, 0
    %v334 = vsel %vm322, 1, 0
    %v335 = vcvt.s32.f32 %v323
    %v336 = vcvt.s32.f32 %v324
    %v337 = vcvt.s32.f32 %v325
    %v338 = vcvt.s32.f32 %v326
    %v339 = vcvt.s32.f32 %v327
    %v340 = vcvt.s32.f32 %v328
    %v341 = vcvt.s32.f32 %v329
    %v342 = vcvt.s32.f32 %v330
    %v343 = vcvt.s32.f32 %v331
    %v344 = vcvt.s32.f32 %v332
    %v345 = vcvt.s32.f32 %v333
    %v346 = vcvt.s32.f32 %v334
    %v347 = vlaneseq
    %v348 = vshrl.u32 %v347, 7
    %v349 = vsub.s32 0, %v348
    %v350 = vrot.slane %v223, %v349
    %352 = vbcast.lane.b32.xlu0 %v350, 256
    %v353 = vpop.permute.xlu0 %352
    %v354 = vlaneseq
    %v355 = vshrl.u32 %v354, 7
    %v356 = vsub.s32 1, %v355
    %v357 = vrot.slane %v223, %v356
    %359 = vbcast.lane.b32.xlu0 %v357, 256
    %v360 = vpop.permute.xlu0 %359
    %v361 = vlaneseq
    %v362 = vshrl.u32 %v361, 7
    %v363 = vsub.s32 2, %v362
    %v364 = vrot.slane %v223, %v363
    %366 = vbcast.lane.b32.xlu0 %v364, 256
    %v367 = vpop.permute.xlu0 %366
    %v368 = vlaneseq
    %v369 = vshrl.u32 %v368, 7
    %v370 = vsub.s32 3, %v369
    %v371 = vrot.slane %v223, %v370
    %373 = vbcast.lane.b32.xlu0 %v371, 256
    %v374 = vpop.permute.xlu0 %373
    %v375 = vlaneseq
    %v376 = vshrl.u32 %v375, 7
    %v377 = vsub.s32 4, %v376
    %v378 = vrot.slane %v223, %v377
    %380 = vbcast.lane.b32.xlu0 %v378, 256
    %v381 = vpop.permute.xlu0 %380
    %v382 = vlaneseq
    %v383 = vshrl.u32 %v382, 7
    %v384 = vsub.s32 5, %v383
    %v385 = vrot.slane %v223, %v384
    %387 = vbcast.lane.b32.xlu0 %v385, 256
    %v388 = vpop.permute.xlu0 %387
    %v389 = vlaneseq
    %v390 = vshrl.u32 %v389, 7
    %v391 = vsub.s32 6, %v390
    %v392 = vrot.slane %v223, %v391
    %394 = vbcast.lane.b32.xlu0 %v392, 256
    %v395 = vpop.permute.xlu0 %394
    %v396 = vlaneseq
    %v397 = vshrl.u32 %v396, 7
    %v398 = vsub.s32 7, %v397
    %v399 = vrot.slane %v223, %v398
    %401 = vbcast.lane.b32.xlu0 %v399, 256
    %v402 = vpop.permute.xlu0 %401
    %v403 = vlaneseq
    %v404 = vshrl.u32 %v403, 7
    %v405 = vsub.s32 0, %v404
    %v406 = vrot.slane %v224, %v405
    %408 = vbcast.lane.b32.xlu0 %v406, 256
    %v409 = vpop.permute.xlu0 %408
    %v410 = vlaneseq
    %v411 = vshrl.u32 %v410, 7
    %v412 = vsub.s32 1, %v411
    %v413 = vrot.slane %v224, %v412
    %415 = vbcast.lane.b32.xlu0 %v413, 256
    %v416 = vpop.permute.xlu0 %415
    %v417 = vlaneseq
    %v418 = vshrl.u32 %v417, 7
    %v419 = vsub.s32 2, %v418
    %v420 = vrot.slane %v224, %v419
    %422 = vbcast.lane.b32.xlu0 %v420, 256
    %v423 = vpop.permute.xlu0 %422
    %v424 = vlaneseq
    %v425 = vshrl.u32 %v424, 7
    %v426 = vsub.s32 3, %v425
    %v427 = vrot.slane %v224, %v426
    %429 = vbcast.lane.b32.xlu0 %v427, 256
    %v430 = vpop.permute.xlu0 %429
    %v431 = vmul.f32 %v335, %v353
    %v432 = vmul.f32 %v336, %v360
    %v433 = vmul.f32 %v337, %v367
    %v434 = vmul.f32 %v338, %v374
    %v435 = vmul.f32 %v339, %v381
    %v436 = vmul.f32 %v340, %v388
    %v437 = vmul.f32 %v341, %v395
    %v438 = vmul.f32 %v342, %v402
    %v439 = vmul.f32 %v343, %v409
    %v440 = vmul.f32 %v344, %v416
    %v441 = vmul.f32 %v345, %v423
    %v442 = vmul.f32 %v346, %v430
    %v443 = vrot.slane %v431, 4
    %v444 = vadd.f32 %v431, %v443
    %v445 = vrot.slane %v444, 2
    %v446 = vadd.f32 %v444, %v445
    %v447 = vrot.slane %v446, 1
    %v448 = vadd.f32 %v446, %v447
    %v449 = vrot.slane %v432, 4
    %v450 = vadd.f32 %v432, %v449
    %v451 = vrot.slane %v450, 2
    %v452 = vadd.f32 %v450, %v451
    %v453 = vrot.slane %v452, 1
    %v454 = vadd.f32 %v452, %v453
    %v455 = vrot.slane %v433, 4
    %v456 = vadd.f32 %v433, %v455
    %v457 = vrot.slane %v456, 2
    %v458 = vadd.f32 %v456, %v457
    %v459 = vrot.slane %v458, 1
    %v460 = vadd.f32 %v458, %v459
    %v461 = vrot.slane %v434, 4
    %v462 = vadd.f32 %v434, %v461
    %v463 = vrot.slane %v462, 2
    %v464 = vadd.f32 %v462, %v463
    %v465 = vrot.slane %v464, 1
    %v466 = vadd.f32 %v464, %v465
    %v467 = vrot.slane %v435, 4
    %v468 = vadd.f32 %v435, %v467
    %v469 = vrot.slane %v468, 2
    %v470 = vadd.f32 %v468, %v469
    %v471 = vrot.slane %v470, 1
    %v472 = vadd.f32 %v470, %v471
    %v473 = vrot.slane %v436, 4
    %v474 = vadd.f32 %v436, %v473
    %v475 = vrot.slane %v474, 2
    %v476 = vadd.f32 %v474, %v475
    %v477 = vrot.slane %v476, 1
    %v478 = vadd.f32 %v476, %v477
    %v479 = vrot.slane %v437, 4
    %v480 = vadd.f32 %v437, %v479
    %v481 = vrot.slane %v480, 2
    %v482 = vadd.f32 %v480, %v481
    %v483 = vrot.slane %v482, 1
    %v484 = vadd.f32 %v482, %v483
    %v485 = vrot.slane %v438, 4
    %v486 = vadd.f32 %v438, %v485
    %v487 = vrot.slane %v486, 2
    %v488 = vadd.f32 %v486, %v487
    %v489 = vrot.slane %v488, 1
    %v490 = vadd.f32 %v488, %v489
    %v491 = vrot.slane %v439, 4
    %v492 = vadd.f32 %v439, %v491
    %v493 = vrot.slane %v492, 2
    %v494 = vadd.f32 %v492, %v493
    %v495 = vrot.slane %v494, 1
    %v496 = vadd.f32 %v494, %v495
    %v497 = vrot.slane %v440, 4
    %v498 = vadd.f32 %v440, %v497
    %v499 = vrot.slane %v498, 2
    %v500 = vadd.f32 %v498, %v499
    %v501 = vrot.slane %v500, 1
    %v502 = vadd.f32 %v500, %v501
    %v503 = vrot.slane %v441, 4
    %v504 = vadd.f32 %v441, %v503
    %v505 = vrot.slane %v504, 2
    %v506 = vadd.f32 %v504, %v505
    %v507 = vrot.slane %v506, 1
    %v508 = vadd.f32 %v506, %v507
    %v509 = vrot.slane %v442, 4
    %v510 = vadd.f32 %v442, %v509
    %v511 = vrot.slane %v510, 2
    %v512 = vadd.f32 %v510, %v511
    %v513 = vrot.slane %v512, 1
    %v514 = vadd.f32 %v512, %v513
    %v515 = vpack.c.bf16 %v448, %v448
    %v516 = vpack.c.bf16 %v454, %v454
    %v517 = vpack.c.bf16 %v460, %v460
    %v518 = vpack.c.bf16 %v466, %v466
    %v519 = vpack.c.bf16 %v472, %v472
    %v520 = vpack.c.bf16 %v478, %v478
    %v521 = vpack.c.bf16 %v484, %v484
    %v522 = vpack.c.bf16 %v490, %v490
    %v523 = vpack.c.bf16 %v496, %v496
    %v524 = vpack.c.bf16 %v502, %v502
    %v525 = vpack.c.bf16 %v508, %v508
    %v526 = vpack.c.bf16 %v514, %v514
    %v527 = vld [vmem:[#allocation9] sm:$0xff]
    %v528 = vld [vmem:[#allocation9 + $0x8] sm:$0xff]
    %v529 = vld [vmem:[#allocation9 + $0x10] sm:$0xff]
    %v530 = vld [vmem:[#allocation9 + $0x18] sm:$0xff]
    %v531 = vld [vmem:[#allocation9 + $0x20] sm:$0xff]
    %v532 = vld [vmem:[#allocation9 + $0x28] sm:$0xff]
    %v533 = vld [vmem:[#allocation9 + $0x30] sm:$0xff]
    %v534 = vld [vmem:[#allocation9 + $0x38] sm:$0xff]
    %v535 = vld [vmem:[#allocation9 + $0x40] sm:$0xff]
    %v536 = vld [vmem:[#allocation9 + $0x48] sm:$0xff]
    %v537 = vld [vmem:[#allocation9 + $0x50] sm:$0xff]
    %v538 = vld [vmem:[#allocation9 + $0x58] sm:$0xff]
    %v539 = vld [vmem:[#allocation9 + $0x60] sm:$0xff]
    %v540 = vld [vmem:[#allocation9 + $0x68] sm:$0xff]
    %v541 = vld [vmem:[#allocation9 + $0x70] sm:$0xff]
    %v542 = vld [vmem:[#allocation9 + $0x78] sm:$0xff]
    %v543 = vld [vmem:[#allocation9 + $0x80] sm:$0xff]
    %v544 = vld [vmem:[#allocation9 + $0x88] sm:$0xff]
    %v545 = vld [vmem:[#allocation9 + $0x90] sm:$0xff]
    %v546 = vld [vmem:[#allocation9 + $0x98] sm:$0xff]
    %v547 = vld [vmem:[#allocation9 + $0xa0] sm:$0xff]
    %v548 = vld [vmem:[#allocation9 + $0xa8] sm:$0xff]
    %v549 = vld [vmem:[#allocation9 + $0xb0] sm:$0xff]
    %v550 = vld [vmem:[#allocation9 + $0xb8] sm:$0xff]
    %v551 = vld [vmem:[#allocation9 + $0xc0] sm:$0xff]
    %v552 = vld [vmem:[#allocation9 + $0xc8] sm:$0xff]
    %v553 = vld [vmem:[#allocation9 + $0xd0] sm:$0xff]
    %v554 = vld [vmem:[#allocation9 + $0xd8] sm:$0xff]
    %v555 = vld [vmem:[#allocation9 + $0xe0] sm:$0xff]
    %v556 = vld [vmem:[#allocation9 + $0xe8] sm:$0xff]
    %v557 = vld [vmem:[#allocation9 + $0xf0] sm:$0xff]
    %v558 = vld [vmem:[#allocation9 + $0xf8] sm:$0xff]
    %v559 = vld [vmem:[#allocation9 + $0x100] sm:$0xff]
    %v560 = vld [vmem:[#allocation9 + $0x108] sm:$0xff]
    %v561 = vld [vmem:[#allocation9 + $0x110] sm:$0xff]
    %v562 = vld [vmem:[#allocation9 + $0x118] sm:$0xff]
    %v563 = vld [vmem:[#allocation9 + $0x120] sm:$0xff]
    %v564 = vld [vmem:[#allocation9 + $0x128] sm:$0xff]
    %v565 = vld [vmem:[#allocation9 + $0x130] sm:$0xff]
    %v566 = vld [vmem:[#allocation9 + $0x138] sm:$0xff]
    %v567 = vld [vmem:[#allocation9 + $0x140] sm:$0xff]
    %v568 = vld [vmem:[#allocation9 + $0x148] sm:$0xff]
    %v569 = vld [vmem:[#allocation9 + $0x150] sm:$0xff]
    %v570 = vld [vmem:[#allocation9 + $0x158] sm:$0xff]
    %v571 = vld [vmem:[#allocation9 + $0x160] sm:$0xff]
    %v572 = vld [vmem:[#allocation9 + $0x168] sm:$0xff]
    %v573 = vld [vmem:[#allocation9 + $0x170] sm:$0xff]
    %v574 = vld [vmem:[#allocation9 + $0x178] sm:$0xff]
    %v587 = vunpack.c.l.b16 %v515
    %v588 = vunpack.c.l.b16 %v516
    %v589 = vunpack.c.l.b16 %v517
    %v590 = vunpack.c.l.b16 %v518
    %v591 = vunpack.c.l.b16 %v519
    %v592 = vunpack.c.l.b16 %v520
    %v593 = vunpack.c.l.b16 %v521
    %v594 = vunpack.c.l.b16 %v522
    %v595 = vunpack.c.l.b16 %v523
    %v596 = vunpack.c.l.b16 %v524
    %v597 = vunpack.c.l.b16 %v525
    %v598 = vunpack.c.l.b16 %v526
    %vm599 = vcmask 1041409
    %v600 = vsel %vm599, %v588, %v587
    %vm601 = vcmask 1042434
    %v602 = vsel %vm601, %v589, %v600
    %vm603 = vcmask 1043459
    %v604 = vsel %vm603, %v590, %v602
    %vm605 = vcmask 1044484
    %v606 = vsel %vm605, %v591, %v604
    %vm607 = vcmask 1045509
    %v608 = vsel %vm607, %v592, %v606
    %vm609 = vcmask 1046534
    %v610 = vsel %vm609, %v593, %v608
    %vm611 = vcmask 1047559
    %v612 = vsel %vm611, %v594, %v610
    %v613 = vsel %vm599, %v596, %v595
    %v614 = vsel %vm601, %v597, %v613
    %v615 = vsel %vm603, %v598, %v614
    %v616 = vpack.c.b16 %v615, %v612
    %v666 = vunpack.c.l.b16 %v527
    %v667 = vunpack.c.h.b16 %v527
    %v668 = vunpack.c.l.b16 %v528
    %v669 = vunpack.c.h.b16 %v528
    %v670 = vunpack.c.l.b16 %v529
    %v671 = vunpack.c.h.b16 %v529
    %v672 = vunpack.c.l.b16 %v530
    %v673 = vunpack.c.h.b16 %v530
    %v674 = vunpack.c.l.b16 %v531
    %v675 = vunpack.c.h.b16 %v531
    %v676 = vunpack.c.l.b16 %v532
    %v677 = vunpack.c.h.b16 %v532
    %v678 = vunpack.c.l.b16 %v533
    %v679 = vunpack.c.h.b16 %v533
    %v680 = vunpack.c.l.b16 %v534
    %v681 = vunpack.c.h.b16 %v534
    %v682 = vunpack.c.l.b16 %v535
    %v683 = vunpack.c.h.b16 %v535
    %v684 = vunpack.c.l.b16 %v536
    %v685 = vunpack.c.h.b16 %v536
    %v686 = vunpack.c.l.b16 %v537
    %v687 = vunpack.c.h.b16 %v537
    %v688 = vunpack.c.l.b16 %v538
    %v689 = vunpack.c.h.b16 %v538
    %v690 = vunpack.c.l.b16 %v539
    %v691 = vunpack.c.h.b16 %v539
    %v692 = vunpack.c.l.b16 %v540
    %v693 = vunpack.c.h.b16 %v540
    %v694 = vunpack.c.l.b16 %v541
    %v695 = vunpack.c.h.b16 %v541
    %v696 = vunpack.c.l.b16 %v542
    %v697 = vunpack.c.h.b16 %v542
    %v698 = vunpack.c.l.b16 %v543
    %v699 = vunpack.c.h.b16 %v543
    %v700 = vunpack.c.l.b16 %v544
    %v701 = vunpack.c.h.b16 %v544
    %v702 = vunpack.c.l.b16 %v545
    %v703 = vunpack.c.h.b16 %v545
    %v704 = vunpack.c.l.b16 %v546
    %v705 = vunpack.c.h.b16 %v546
    %v706 = vunpack.c.l.b16 %v547
    %v707 = vunpack.c.h.b16 %v547
    %v708 = vunpack.c.l.b16 %v548
    %v709 = vunpack.c.h.b16 %v548
    %v710 = vunpack.c.l.b16 %v549
    %v711 = vunpack.c.h.b16 %v549
    %v712 = vunpack.c.l.b16 %v550
    %v713 = vunpack.c.h.b16 %v550
    %v714 = vunpack.c.l.b16 %v551
    %v715 = vunpack.c.h.b16 %v551
    %v716 = vunpack.c.l.b16 %v552
    %v717 = vunpack.c.h.b16 %v552
    %v718 = vunpack.c.l.b16 %v553
    %v719 = vunpack.c.h.b16 %v553
    %v720 = vunpack.c.l.b16 %v554
    %v721 = vunpack.c.h.b16 %v554
    %v722 = vunpack.c.l.b16 %v555
    %v723 = vunpack.c.h.b16 %v555
    %v724 = vunpack.c.l.b16 %v556
    %v725 = vunpack.c.h.b16 %v556
    %v726 = vunpack.c.l.b16 %v557
    %v727 = vunpack.c.h.b16 %v557
    %v728 = vunpack.c.l.b16 %v558
    %v729 = vunpack.c.h.b16 %v558
    %v730 = vunpack.c.l.b16 %v559
    %v731 = vunpack.c.h.b16 %v559
    %v732 = vunpack.c.l.b16 %v560
    %v733 = vunpack.c.h.b16 %v560
    %v734 = vunpack.c.l.b16 %v561
    %v735 = vunpack.c.h.b16 %v561
    %v736 = vunpack.c.l.b16 %v562
    %v737 = vunpack.c.h.b16 %v562
    %v738 = vunpack.c.l.b16 %v563
    %v739 = vunpack.c.h.b16 %v563
    %v740 = vunpack.c.l.b16 %v564
    %v741 = vunpack.c.h.b16 %v564
    %v742 = vunpack.c.l.b16 %v565
    %v743 = vunpack.c.h.b16 %v565
    %v744 = vunpack.c.l.b16 %v566
    %v745 = vunpack.c.h.b16 %v566
    %v746 = vunpack.c.l.b16 %v567
    %v747 = vunpack.c.h.b16 %v567
    %v748 = vunpack.c.l.b16 %v568
    %v749 = vunpack.c.h.b16 %v568
    %v750 = vunpack.c.l.b16 %v569
    %v751 = vunpack.c.h.b16 %v569
    %v752 = vunpack.c.l.b16 %v570
    %v753 = vunpack.c.h.b16 %v570
    %v754 = vunpack.c.l.b16 %v571
    %v755 = vunpack.c.h.b16 %v571
    %v756 = vunpack.c.l.b16 %v572
    %v757 = vunpack.c.h.b16 %v572
    %v758 = vunpack.c.l.b16 %v573
    %v759 = vunpack.c.h.b16 %v573
    %v760 = vunpack.c.l.b16 %v574
    %v761 = vunpack.c.h.b16 %v574
    %v762 = vpack.c.b16 %v672, %v666
    %v763 = vpack.c.b16 %v673, %v667
    %v764 = vpack.c.b16 %v674, %v668
    %v765 = vpack.c.b16 %v675, %v669
    %v766 = vpack.c.b16 %v676, %v670
    %v767 = vpack.c.b16 %v677, %v671
    %v768 = vpack.c.b16 %v684, %v678
    %v769 = vpack.c.b16 %v685, %v679
    %v770 = vpack.c.b16 %v686, %v680
    %v771 = vpack.c.b16 %v687, %v681
    %v772 = vpack.c.b16 %v688, %v682
    %v773 = vpack.c.b16 %v689, %v683
    %v774 = vpack.c.b16 %v696, %v690
    %v775 = vpack.c.b16 %v697, %v691
    %v776 = vpack.c.b16 %v698, %v692
    %v777 = vpack.c.b16 %v699, %v693
    %v778 = vpack.c.b16 %v700, %v694
    %v779 = vpack.c.b16 %v701, %v695
    %v780 = vpack.c.b16 %v708, %v702
    %v781 = vpack.c.b16 %v709, %v703
    %v782 = vpack.c.b16 %v710, %v704
    %v783 = vpack.c.b16 %v711, %v705
    %v784 = vpack.c.b16 %v712, %v706
    %v785 = vpack.c.b16 %v713, %v707
    %v786 = vpack.c.b16 %v720, %v714
    %v787 = vpack.c.b16 %v721, %v715
    %v788 = vpack.c.b16 %v722, %v716
    %v789 = vpack.c.b16 %v723, %v717
    %v790 = vpack.c.b16 %v724, %v718
    %v791 = vpack.c.b16 %v725, %v719
    %v792 = vpack.c.b16 %v732, %v726
    %v793 = vpack.c.b16 %v733, %v727
    %v794 = vpack.c.b16 %v734, %v728
    %v795 = vpack.c.b16 %v735, %v729
    %v796 = vpack.c.b16 %v736, %v730
    %v797 = vpack.c.b16 %v737, %v731
    %v798 = vpack.c.b16 %v744, %v738
    %v799 = vpack.c.b16 %v745, %v739
    %v800 = vpack.c.b16 %v746, %v740
    %v801 = vpack.c.b16 %v747, %v741
    %v802 = vpack.c.b16 %v748, %v742
    %v803 = vpack.c.b16 %v749, %v743
    %v804 = vpack.c.b16 %v756, %v750
    %v805 = vpack.c.b16 %v757, %v751
    %v806 = vpack.c.b16 %v758, %v752
    %v807 = vpack.c.b16 %v759, %v753
    %v808 = vpack.c.b16 %v760, %v754
    %v809 = vpack.c.b16 %v761, %v755
    %858 = vmatprep.subr.bf16.mxu0 %v763
    %859 = vmatpush1.bf16.msra.mxu0 %v762
    %860 = vmatprep.subr.bf16.mxu0 %v769
    %861 = vmatpush1.bf16.msra.mxu0 %v768
    %862 = vmatprep.subr.bf16.mxu0 %v775
    %863 = vmatpush1.bf16.msra.mxu0 %v774
    %864 = vmatprep.subr.bf16.mxu0 %v781
    %865 = vmatpush1.bf16.msra.mxu0 %v780
    %866 = vmatprep.subr.bf16.mxu0 %v787
    %867 = vmatpush1.bf16.msra.mxu0 %v786
    %868 = vmatprep.subr.bf16.mxu0 %v793
    %869 = vmatpush1.bf16.msra.mxu0 %v792
    %870 = vmatprep.subr.bf16.mxu0 %v799
    %871 = vmatpush1.bf16.msra.mxu0 %v798
    %872 = vmatprep.subr.bf16.mxu0 %v805
    %873 = vmatpush1.bf16.msra.mxu0 %v804
    %874 = vmatprep.subr.bf16.mxu0 0
    %875 = vmatpush1.bf16.msra.mxu0 0
    %876 = vmatprep.subr.bf16.mxu0 0
    %877 = vmatpush1.bf16.msra.mxu0 0
    %878 = vmatprep.subr.bf16.mxu0 0
    %879 = vmatpush1.bf16.msra.mxu0 0
    %880 = vmatprep.subr.bf16.mxu0 0
    %881 = vmatpush1.bf16.msra.mxu0 0
    %882 = vmatprep.subr.bf16.mxu0 0
    %883 = vmatpush1.bf16.msra.mxu0 0
    %884 = vmatprep.subr.bf16.mxu0 0
    %885 = vmatpush1.bf16.msra.mxu0 0
    %886 = vmatprep.subr.bf16.mxu0 0
    %887 = vmatpush1.bf16.msra.mxu0 0
    %888 = vmatprep.subr.bf16.mxu0 0
    %889 = vmatpush1.bf16.msra.mxu0 0
    %890 = vmatprep.mubr.bf16.mxu0 0
    %891 = vmatmul.mubr.bf16.gmra.mrb[0].mxu0 %v616
    %v892 = vpop.f32.mrb[0].mxu0
    %v893 = vadd.f32 0.0, %v892
    %v894 = vpop.f32.mrb[0].mxu0
    %v895 = vadd.f32 0.0, %v894
    %v896 = vpop.f32.mrb[0].mxu0
    %v897 = vadd.f32 0.0, %v896
    %v898 = vpop.f32.mrb[0].mxu0
    %v899 = vadd.f32 0.0, %v898
    %900 = vdwg.mxu0
    %901 = vmatprep.subr.bf16.mxu0 %v765
    %902 = vmatpush1.bf16.msra.mxu0 %v764
    %903 = vmatprep.subr.bf16.mxu0 %v771
    %904 = vmatpush1.bf16.msra.mxu0 %v770
    %905 = vmatprep.subr.bf16.mxu0 %v777
    %906 = vmatpush1.bf16.msra.mxu0 %v776
    %907 = vmatprep.subr.bf16.mxu0 %v783
    %908 = vmatpush1.bf16.msra.mxu0 %v782
    %909 = vmatprep.subr.bf16.mxu0 %v789
    %910 = vmatpush1.bf16.msra.mxu0 %v788
    %911 = vmatprep.subr.bf16.mxu0 %v795
    %912 = vmatpush1.bf16.msra.mxu0 %v794
    %913 = vmatprep.subr.bf16.mxu0 %v801
    %914 = vmatpush1.bf16.msra.mxu0 %v800
    %915 = vmatprep.subr.bf16.mxu0 %v807
    %916 = vmatpush1.bf16.msra.mxu0 %v806
    %917 = vmatprep.subr.bf16.mxu0 0
    %918 = vmatpush1.bf16.msra.mxu0 0
    %919 = vmatprep.subr.bf16.mxu0 0
    %920 = vmatpush1.bf16.msra.mxu0 0
    %921 = vmatprep.subr.bf16.mxu0 0
    %922 = vmatpush1.bf16.msra.mxu0 0
    %923 = vmatprep.subr.bf16.mxu0 0
    %924 = vmatpush1.bf16.msra.mxu0 0
    %925 = vmatprep.subr.bf16.mxu0 0
    %926 = vmatpush1.bf16.msra.mxu0 0
    %927 = vmatprep.subr.bf16.mxu0 0
    %928 = vmatpush1.bf16.msra.mxu0 0
    %929 = vmatprep.subr.bf16.mxu0 0
    %930 = vmatpush1.bf16.msra.mxu0 0
    %931 = vmatprep.subr.bf16.mxu0 0
    %932 = vmatpush1.bf16.msra.mxu0 0
    %933 = vmatprep.mubr.bf16.mxu0 0
    %934 = vmatmul.mubr.bf16.gmra.mrb[0].mxu0 %v616
    %v935 = vpop.f32.mrb[0].mxu0
    %v936 = vadd.f32 0.0, %v935
    %v937 = vpop.f32.mrb[0].mxu0
    %v938 = vadd.f32 0.0, %v937
    %v939 = vpop.f32.mrb[0].mxu0
    %v940 = vadd.f32 0.0, %v939
    %v941 = vpop.f32.mrb[0].mxu0
    %v942 = vadd.f32 0.0, %v941
    %943 = vdwg.mxu0
    %944 = vmatprep.subr.bf16.mxu0 %v767
    %945 = vmatpush1.bf16.msra.mxu0 %v766
    %946 = vmatprep.subr.bf16.mxu0 %v773
    %947 = vmatpush1.bf16.msra.mxu0 %v772
    %948 = vmatprep.subr.bf16.mxu0 %v779
    %949 = vmatpush1.bf16.msra.mxu0 %v778
    %950 = vmatprep.subr.bf16.mxu0 %v785
    %951 = vmatpush1.bf16.msra.mxu0 %v784
    %952 = vmatprep.subr.bf16.mxu0 %v791
    %953 = vmatpush1.bf16.msra.mxu0 %v790
    %954 = vmatprep.subr.bf16.mxu0 %v797
    %955 = vmatpush1.bf16.msra.mxu0 %v796
    %956 = vmatprep.subr.bf16.mxu0 %v803
    %957 = vmatpush1.bf16.msra.mxu0 %v802
    %958 = vmatprep.subr.bf16.mxu0 %v809
    %959 = vmatpush1.bf16.msra.mxu0 %v808
    %960 = vmatprep.subr.bf16.mxu0 0
    %961 = vmatpush1.bf16.msra.mxu0 0
    %962 = vmatprep.subr.bf16.mxu0 0
    %963 = vmatpush1.bf16.msra.mxu0 0
    %964 = vmatprep.subr.bf16.mxu0 0
    %965 = vmatpush1.bf16.msra.mxu0 0
    %966 = vmatprep.subr.bf16.mxu0 0
    %967 = vmatpush1.bf16.msra.mxu0 0
    %968 = vmatprep.subr.bf16.mxu0 0
    %969 = vmatpush1.bf16.msra.mxu0 0
    %970 = vmatprep.subr.bf16.mxu0 0
    %971 = vmatpush1.bf16.msra.mxu0 0
    %972 = vmatprep.subr.bf16.mxu0 0
    %973 = vmatpush1.bf16.msra.mxu0 0
    %974 = vmatprep.subr.bf16.mxu0 0
    %975 = vmatpush1.bf16.msra.mxu0 0
    %976 = vmatprep.mubr.bf16.mxu0 0
    %977 = vmatmul.mubr.bf16.gmra.mrb[0].mxu0 %v616
    %v978 = vpop.f32.mrb[0].mxu0
    %v979 = vadd.f32 0.0, %v978
    %v980 = vpop.f32.mrb[0].mxu0
    %v981 = vadd.f32 0.0, %v980
    %v982 = vpop.f32.mrb[0].mxu0
    %v983 = vadd.f32 0.0, %v982
    %v984 = vpop.f32.mrb[0].mxu0
    %v985 = vadd.f32 0.0, %v984
    %986 = vdwg.mxu0
    %v987 = vpack.c.bf16 %v897, %v893
    %v988 = vpack.c.bf16 %v899, %v895
    %v989 = vpack.c.bf16 %v940, %v936
    %v990 = vpack.c.bf16 %v942, %v938
    %v991 = vpack.c.bf16 %v983, %v979
    %v992 = vpack.c.bf16 %v985, %v981
    %v993 = vld [vmem:[#allocation11] sm:$0xff]
    %v994 = vld [vmem:[#allocation11 + $0x8] sm:$0xff]
    %v995 = vld [vmem:[#allocation11 + $0x10] sm:$0xff]
    %v996 = vld [vmem:[#allocation11 + $0x18] sm:$0xff]
    %v997 = vld [vmem:[#allocation11 + $0x20] sm:$0xff]
    %v998 = vld [vmem:[#allocation11 + $0x28] sm:$0xff]
    %v999 = vld [vmem:[#allocation11 + $0x30] sm:$0xff]
    %v1000 = vld [vmem:[#allocation11 + $0x38] sm:$0xff]
    %v1001 = vld [vmem:[#allocation11 + $0x40] sm:$0xff]
    %v1002 = vld [vmem:[#allocation11 + $0x48] sm:$0xff]
    %v1003 = vld [vmem:[#allocation11 + $0x50] sm:$0xff]
    %v1004 = vld [vmem:[#allocation11 + $0x58] sm:$0xff]
    %v1005 = vld [vmem:[#allocation11 + $0x60] sm:$0xff]
    %v1006 = vld [vmem:[#allocation11 + $0x68] sm:$0xff]
    %v1007 = vld [vmem:[#allocation11 + $0x70] sm:$0xff]
    %v1008 = vld [vmem:[#allocation11 + $0x78] sm:$0xff]
    %v1009 = vld [vmem:[#allocation11 + $0x80] sm:$0xff]
    %v1010 = vld [vmem:[#allocation11 + $0x88] sm:$0xff]
    %v1011 = vld [vmem:[#allocation11 + $0x90] sm:$0xff]
    %v1012 = vld [vmem:[#allocation11 + $0x98] sm:$0xff]
    %v1013 = vld [vmem:[#allocation11 + $0xa0] sm:$0xff]
    %v1014 = vld [vmem:[#allocation11 + $0xa8] sm:$0xff]
    %v1015 = vld [vmem:[#allocation11 + $0xb0] sm:$0xff]
    %v1016 = vld [vmem:[#allocation11 + $0xb8] sm:$0xff]
    %v1017 = vld [vmem:[#allocation11 + $0xc0] sm:$0xff]
    %v1018 = vld [vmem:[#allocation11 + $0xc8] sm:$0xff]
    %v1019 = vld [vmem:[#allocation11 + $0xd0] sm:$0xff]
    %v1020 = vld [vmem:[#allocation11 + $0xd8] sm:$0xff]
    %v1021 = vld [vmem:[#allocation11 + $0xe0] sm:$0xff]
    %v1022 = vld [vmem:[#allocation11 + $0xe8] sm:$0xff]
    %v1023 = vld [vmem:[#allocation11 + $0xf0] sm:$0xff]
    %v1024 = vld [vmem:[#allocation11 + $0xf8] sm:$0xff]
    %v1025 = vld [vmem:[#allocation11 + $0x100] sm:$0xff]
    %v1026 = vld [vmem:[#allocation11 + $0x108] sm:$0xff]
    %v1027 = vld [vmem:[#allocation11 + $0x110] sm:$0xff]
    %v1028 = vld [vmem:[#allocation11 + $0x118] sm:$0xff]
    %v1029 = vld [vmem:[#allocation11 + $0x120] sm:$0xff]
    %v1030 = vld [vmem:[#allocation11 + $0x128] sm:$0xff]
    %v1031 = vld [vmem:[#allocation11 + $0x130] sm:$0xff]
    %v1032 = vld [vmem:[#allocation11 + $0x138] sm:$0xff]
    %v1033 = vld [vmem:[#allocation11 + $0x140] sm:$0xff]
    %v1034 = vld [vmem:[#allocation11 + $0x148] sm:$0xff]
    %v1035 = vld [vmem:[#allocation11 + $0x150] sm:$0xff]
    %v1036 = vld [vmem:[#allocation11 + $0x158] sm:$0xff]
    %v1037 = vld [vmem:[#allocation11 + $0x160] sm:$0xff]
    %v1038 = vld [vmem:[#allocation11 + $0x168] sm:$0xff]
    %v1039 = vld [vmem:[#allocation11 + $0x170] sm:$0xff]
    %v1040 = vld [vmem:[#allocation11 + $0x178] sm:$0xff]
    %v1041 = vld [vmem:[#allocation11 + $0x180] sm:$0xff]
    %v1042 = vld [vmem:[#allocation11 + $0x188] sm:$0xff]
    %v1043 = vld [vmem:[#allocation11 + $0x190] sm:$0xff]
    %v1044 = vld [vmem:[#allocation11 + $0x198] sm:$0xff]
    %v1045 = vld [vmem:[#allocation11 + $0x1a0] sm:$0xff]
    %v1046 = vld [vmem:[#allocation11 + $0x1a8] sm:$0xff]
    %v1047 = vld [vmem:[#allocation11 + $0x1b0] sm:$0xff]
    %v1048 = vld [vmem:[#allocation11 + $0x1b8] sm:$0xff]
    %v1049 = vld [vmem:[#allocation11 + $0x1c0] sm:$0xff]
    %v1050 = vld [vmem:[#allocation11 + $0x1c8] sm:$0xff]
    %v1051 = vld [vmem:[#allocation11 + $0x1d0] sm:$0xff]
    %v1052 = vld [vmem:[#allocation11 + $0x1d8] sm:$0xff]
    %v1053 = vld [vmem:[#allocation11 + $0x1e0] sm:$0xff]
    %v1054 = vld [vmem:[#allocation11 + $0x1e8] sm:$0xff]
    %v1055 = vld [vmem:[#allocation11 + $0x1f0] sm:$0xff]
    %v1056 = vld [vmem:[#allocation11 + $0x1f8] sm:$0xff]
    %v1057 = vld [vmem:[#allocation11 + $0x200] sm:$0xff]
    %v1058 = vld [vmem:[#allocation11 + $0x208] sm:$0xff]
    %v1059 = vld [vmem:[#allocation11 + $0x210] sm:$0xff]
    %v1060 = vld [vmem:[#allocation11 + $0x218] sm:$0xff]
    %v1061 = vld [vmem:[#allocation11 + $0x220] sm:$0xff]
    %v1062 = vld [vmem:[#allocation11 + $0x228] sm:$0xff]
    %v1063 = vld [vmem:[#allocation11 + $0x230] sm:$0xff]
    %v1064 = vld [vmem:[#allocation11 + $0x238] sm:$0xff]
    %v1065 = vld [vmem:[#allocation11 + $0x240] sm:$0xff]
    %v1066 = vld [vmem:[#allocation11 + $0x248] sm:$0xff]
    %v1067 = vld [vmem:[#allocation11 + $0x250] sm:$0xff]
    %v1068 = vld [vmem:[#allocation11 + $0x258] sm:$0xff]
    %v1069 = vld [vmem:[#allocation11 + $0x260] sm:$0xff]
    %v1070 = vld [vmem:[#allocation11 + $0x268] sm:$0xff]
    %v1071 = vld [vmem:[#allocation11 + $0x270] sm:$0xff]
    %v1072 = vld [vmem:[#allocation11 + $0x278] sm:$0xff]
    %v1073 = vld [vmem:[#allocation11 + $0x280] sm:$0xff]
    %v1074 = vld [vmem:[#allocation11 + $0x288] sm:$0xff]
    %v1075 = vld [vmem:[#allocation11 + $0x290] sm:$0xff]
    %v1076 = vld [vmem:[#allocation11 + $0x298] sm:$0xff]
    %v1077 = vld [vmem:[#allocation11 + $0x2a0] sm:$0xff]
    %v1078 = vld [vmem:[#allocation11 + $0x2a8] sm:$0xff]
    %v1079 = vld [vmem:[#allocation11 + $0x2b0] sm:$0xff]
    %v1080 = vld [vmem:[#allocation11 + $0x2b8] sm:$0xff]
    %v1081 = vld [vmem:[#allocation11 + $0x2c0] sm:$0xff]
    %v1082 = vld [vmem:[#allocation11 + $0x2c8] sm:$0xff]
    %v1083 = vld [vmem:[#allocation11 + $0x2d0] sm:$0xff]
    %v1084 = vld [vmem:[#allocation11 + $0x2d8] sm:$0xff]
    %v1085 = vld [vmem:[#allocation11 + $0x2e0] sm:$0xff]
    %v1086 = vld [vmem:[#allocation11 + $0x2e8] sm:$0xff]
    %v1087 = vld [vmem:[#allocation11 + $0x2f0] sm:$0xff]
    %v1088 = vld [vmem:[#allocation11 + $0x2f8] sm:$0xff]
    %v1089 = vld [vmem:[#allocation11 + $0x300] sm:$0xff]
    %v1090 = vld [vmem:[#allocation11 + $0x308] sm:$0xff]
    %v1091 = vld [vmem:[#allocation11 + $0x310] sm:$0xff]
    %v1092 = vld [vmem:[#allocation11 + $0x318] sm:$0xff]
    %v1093 = vld [vmem:[#allocation11 + $0x320] sm:$0xff]
    %v1094 = vld [vmem:[#allocation11 + $0x328] sm:$0xff]
    %v1095 = vld [vmem:[#allocation11 + $0x330] sm:$0xff]
    %v1096 = vld [vmem:[#allocation11 + $0x338] sm:$0xff]
    %v1097 = vld [vmem:[#allocation11 + $0x340] sm:$0xff]
    %v1098 = vld [vmem:[#allocation11 + $0x348] sm:$0xff]
    %v1099 = vld [vmem:[#allocation11 + $0x350] sm:$0xff]
    %v1100 = vld [vmem:[#allocation11 + $0x358] sm:$0xff]
    %v1101 = vld [vmem:[#allocation11 + $0x360] sm:$0xff]
    %v1102 = vld [vmem:[#allocation11 + $0x368] sm:$0xff]
    %v1103 = vld [vmem:[#allocation11 + $0x370] sm:$0xff]
    %v1104 = vld [vmem:[#allocation11 + $0x378] sm:$0xff]
    %v1105 = vld [vmem:[#allocation11 + $0x380] sm:$0xff]
    %v1106 = vld [vmem:[#allocation11 + $0x388] sm:$0xff]
    %v1107 = vld [vmem:[#allocation11 + $0x390] sm:$0xff]
    %v1108 = vld [vmem:[#allocation11 + $0x398] sm:$0xff]
    %v1109 = vld [vmem:[#allocation11 + $0x3a0] sm:$0xff]
    %v1110 = vld [vmem:[#allocation11 + $0x3a8] sm:$0xff]
    %v1111 = vld [vmem:[#allocation11 + $0x3b0] sm:$0xff]
    %v1112 = vld [vmem:[#allocation11 + $0x3b8] sm:$0xff]
    %v1113 = vld [vmem:[#allocation11 + $0x3c0] sm:$0xff]
    %v1114 = vld [vmem:[#allocation11 + $0x3c8] sm:$0xff]
    %v1115 = vld [vmem:[#allocation11 + $0x3d0] sm:$0xff]
    %v1116 = vld [vmem:[#allocation11 + $0x3d8] sm:$0xff]
    %v1117 = vld [vmem:[#allocation11 + $0x3e0] sm:$0xff]
    %v1118 = vld [vmem:[#allocation11 + $0x3e8] sm:$0xff]
    %v1119 = vld [vmem:[#allocation11 + $0x3f0] sm:$0xff]
    %v1120 = vld [vmem:[#allocation11 + $0x3f8] sm:$0xff]
    %v1121 = vld [vmem:[#allocation11 + $0x400] sm:$0xff]
    %v1122 = vld [vmem:[#allocation11 + $0x408] sm:$0xff]
    %v1123 = vld [vmem:[#allocation11 + $0x410] sm:$0xff]
    %v1124 = vld [vmem:[#allocation11 + $0x418] sm:$0xff]
    %v1125 = vld [vmem:[#allocation11 + $0x420] sm:$0xff]
    %v1126 = vld [vmem:[#allocation11 + $0x428] sm:$0xff]
    %v1127 = vld [vmem:[#allocation11 + $0x430] sm:$0xff]
    %v1128 = vld [vmem:[#allocation11 + $0x438] sm:$0xff]
    %v1129 = vld [vmem:[#allocation11 + $0x440] sm:$0xff]
    %v1130 = vld [vmem:[#allocation11 + $0x448] sm:$0xff]
    %v1131 = vld [vmem:[#allocation11 + $0x450] sm:$0xff]
    %v1132 = vld [vmem:[#allocation11 + $0x458] sm:$0xff]
    %v1133 = vld [vmem:[#allocation11 + $0x460] sm:$0xff]
    %v1134 = vld [vmem:[#allocation11 + $0x468] sm:$0xff]
    %v1135 = vld [vmem:[#allocation11 + $0x470] sm:$0xff]
    %v1136 = vld [vmem:[#allocation11 + $0x478] sm:$0xff]
    %v1137 = vld [vmem:[#allocation11 + $0x480] sm:$0xff]
    %v1138 = vld [vmem:[#allocation11 + $0x488] sm:$0xff]
    %v1139 = vld [vmem:[#allocation11 + $0x490] sm:$0xff]
    %v1140 = vld [vmem:[#allocation11 + $0x498] sm:$0xff]
    %v1141 = vld [vmem:[#allocation11 + $0x4a0] sm:$0xff]
    %v1142 = vld [vmem:[#allocation11 + $0x4a8] sm:$0xff]
    %v1143 = vld [vmem:[#allocation11 + $0x4b0] sm:$0xff]
    %v1144 = vld [vmem:[#allocation11 + $0x4b8] sm:$0xff]
    %v1145 = vld [vmem:[#allocation11 + $0x4c0] sm:$0xff]
    %v1146 = vld [vmem:[#allocation11 + $0x4c8] sm:$0xff]
    %v1147 = vld [vmem:[#allocation11 + $0x4d0] sm:$0xff]
    %v1148 = vld [vmem:[#allocation11 + $0x4d8] sm:$0xff]
    %v1149 = vld [vmem:[#allocation11 + $0x4e0] sm:$0xff]
    %v1150 = vld [vmem:[#allocation11 + $0x4e8] sm:$0xff]
    %v1151 = vld [vmem:[#allocation11 + $0x4f0] sm:$0xff]
    %v1152 = vld [vmem:[#allocation11 + $0x4f8] sm:$0xff]
    %v1153 = vld [vmem:[#allocation11 + $0x500] sm:$0xff]
    %v1154 = vld [vmem:[#allocation11 + $0x508] sm:$0xff]
    %v1155 = vld [vmem:[#allocation11 + $0x510] sm:$0xff]
    %v1156 = vld [vmem:[#allocation11 + $0x518] sm:$0xff]
    %v1157 = vld [vmem:[#allocation11 + $0x520] sm:$0xff]
    %v1158 = vld [vmem:[#allocation11 + $0x528] sm:$0xff]
    %v1159 = vld [vmem:[#allocation11 + $0x530] sm:$0xff]
    %v1160 = vld [vmem:[#allocation11 + $0x538] sm:$0xff]
    %v1161 = vld [vmem:[#allocation11 + $0x540] sm:$0xff]
    %v1162 = vld [vmem:[#allocation11 + $0x548] sm:$0xff]
    %v1163 = vld [vmem:[#allocation11 + $0x550] sm:$0xff]
    %v1164 = vld [vmem:[#allocation11 + $0x558] sm:$0xff]
    %v1165 = vld [vmem:[#allocation11 + $0x560] sm:$0xff]
    %v1166 = vld [vmem:[#allocation11 + $0x568] sm:$0xff]
    %v1167 = vld [vmem:[#allocation11 + $0x570] sm:$0xff]
    %v1168 = vld [vmem:[#allocation11 + $0x578] sm:$0xff]
    %v1169 = vld [vmem:[#allocation11 + $0x580] sm:$0xff]
    %v1170 = vld [vmem:[#allocation11 + $0x588] sm:$0xff]
    %v1171 = vld [vmem:[#allocation11 + $0x590] sm:$0xff]
    %v1172 = vld [vmem:[#allocation11 + $0x598] sm:$0xff]
    %v1173 = vld [vmem:[#allocation11 + $0x5a0] sm:$0xff]
    %v1174 = vld [vmem:[#allocation11 + $0x5a8] sm:$0xff]
    %v1175 = vld [vmem:[#allocation11 + $0x5b0] sm:$0xff]
    %v1176 = vld [vmem:[#allocation11 + $0x5b8] sm:$0xff]
    %v1177 = vld [vmem:[#allocation11 + $0x5c0] sm:$0xff]
    %v1178 = vld [vmem:[#allocation11 + $0x5c8] sm:$0xff]
    %v1179 = vld [vmem:[#allocation11 + $0x5d0] sm:$0xff]
    %v1180 = vld [vmem:[#allocation11 + $0x5d8] sm:$0xff]
    %v1181 = vld [vmem:[#allocation11 + $0x5e0] sm:$0xff]
    %v1182 = vld [vmem:[#allocation11 + $0x5e8] sm:$0xff]
    %v1183 = vld [vmem:[#allocation11 + $0x5f0] sm:$0xff]
    %v1184 = vld [vmem:[#allocation11 + $0x5f8] sm:$0xff]
    %v1185 = vld [vmem:[#allocation11 + $0x600] sm:$0xff]
    %v1186 = vld [vmem:[#allocation11 + $0x608] sm:$0xff]
    %v1187 = vld [vmem:[#allocation11 + $0x610] sm:$0xff]
    %v1188 = vld [vmem:[#allocation11 + $0x618] sm:$0xff]
    %v1189 = vld [vmem:[#allocation11 + $0x620] sm:$0xff]
    %v1190 = vld [vmem:[#allocation11 + $0x628] sm:$0xff]
    %v1191 = vld [vmem:[#allocation11 + $0x630] sm:$0xff]
    %v1192 = vld [vmem:[#allocation11 + $0x638] sm:$0xff]
    %v1193 = vld [vmem:[#allocation11 + $0x640] sm:$0xff]
    %v1194 = vld [vmem:[#allocation11 + $0x648] sm:$0xff]
    %v1195 = vld [vmem:[#allocation11 + $0x650] sm:$0xff]
    %v1196 = vld [vmem:[#allocation11 + $0x658] sm:$0xff]
    %v1197 = vld [vmem:[#allocation11 + $0x660] sm:$0xff]
    %v1198 = vld [vmem:[#allocation11 + $0x668] sm:$0xff]
    %v1199 = vld [vmem:[#allocation11 + $0x670] sm:$0xff]
    %v1200 = vld [vmem:[#allocation11 + $0x678] sm:$0xff]
    %v1201 = vld [vmem:[#allocation11 + $0x680] sm:$0xff]
    %v1202 = vld [vmem:[#allocation11 + $0x688] sm:$0xff]
    %v1203 = vld [vmem:[#allocation11 + $0x690] sm:$0xff]
    %v1204 = vld [vmem:[#allocation11 + $0x698] sm:$0xff]
    %v1205 = vld [vmem:[#allocation11 + $0x6a0] sm:$0xff]
    %v1206 = vld [vmem:[#allocation11 + $0x6a8] sm:$0xff]
    %v1207 = vld [vmem:[#allocation11 + $0x6b0] sm:$0xff]
    %v1208 = vld [vmem:[#allocation11 + $0x6b8] sm:$0xff]
    %v1209 = vld [vmem:[#allocation11 + $0x6c0] sm:$0xff]
    %v1210 = vld [vmem:[#allocation11 + $0x6c8] sm:$0xff]
    %v1211 = vld [vmem:[#allocation11 + $0x6d0] sm:$0xff]
    %v1212 = vld [vmem:[#allocation11 + $0x6d8] sm:$0xff]
    %v1213 = vld [vmem:[#allocation11 + $0x6e0] sm:$0xff]
    %v1214 = vld [vmem:[#allocation11 + $0x6e8] sm:$0xff]
    %v1215 = vld [vmem:[#allocation11 + $0x6f0] sm:$0xff]
    %v1216 = vld [vmem:[#allocation11 + $0x6f8] sm:$0xff]
    %v1217 = vld [vmem:[#allocation11 + $0x700] sm:$0xff]
    %v1218 = vld [vmem:[#allocation11 + $0x708] sm:$0xff]
    %v1219 = vld [vmem:[#allocation11 + $0x710] sm:$0xff]
    %v1220 = vld [vmem:[#allocation11 + $0x718] sm:$0xff]
    %v1221 = vld [vmem:[#allocation11 + $0x720] sm:$0xff]
    %v1222 = vld [vmem:[#allocation11 + $0x728] sm:$0xff]
    %v1223 = vld [vmem:[#allocation11 + $0x730] sm:$0xff]
    %v1224 = vld [vmem:[#allocation11 + $0x738] sm:$0xff]
    %v1225 = vld [vmem:[#allocation11 + $0x740] sm:$0xff]
    %v1226 = vld [vmem:[#allocation11 + $0x748] sm:$0xff]
    %v1227 = vld [vmem:[#allocation11 + $0x750] sm:$0xff]
    %v1228 = vld [vmem:[#allocation11 + $0x758] sm:$0xff]
    %v1229 = vld [vmem:[#allocation11 + $0x760] sm:$0xff]
    %v1230 = vld [vmem:[#allocation11 + $0x768] sm:$0xff]
    %v1231 = vld [vmem:[#allocation11 + $0x770] sm:$0xff]
    %v1232 = vld [vmem:[#allocation11 + $0x778] sm:$0xff]
    %v1233 = vld [vmem:[#allocation11 + $0x780] sm:$0xff]
    %v1234 = vld [vmem:[#allocation11 + $0x788] sm:$0xff]
    %v1235 = vld [vmem:[#allocation11 + $0x790] sm:$0xff]
    %v1236 = vld [vmem:[#allocation11 + $0x798] sm:$0xff]
    %v1237 = vld [vmem:[#allocation11 + $0x7a0] sm:$0xff]
    %v1238 = vld [vmem:[#allocation11 + $0x7a8] sm:$0xff]
    %v1239 = vld [vmem:[#allocation11 + $0x7b0] sm:$0xff]
    %v1240 = vld [vmem:[#allocation11 + $0x7b8] sm:$0xff]
    %v1241 = vld [vmem:[#allocation11 + $0x7c0] sm:$0xff]
    %v1242 = vld [vmem:[#allocation11 + $0x7c8] sm:$0xff]
    %v1243 = vld [vmem:[#allocation11 + $0x7d0] sm:$0xff]
    %v1244 = vld [vmem:[#allocation11 + $0x7d8] sm:$0xff]
    %v1245 = vld [vmem:[#allocation11 + $0x7e0] sm:$0xff]
    %v1246 = vld [vmem:[#allocation11 + $0x7e8] sm:$0xff]
    %v1247 = vld [vmem:[#allocation11 + $0x7f0] sm:$0xff]
    %v1248 = vld [vmem:[#allocation11 + $0x7f8] sm:$0xff]
    %v1249 = vld [vmem:[#allocation11 + $0x800] sm:$0xff]
    %v1250 = vld [vmem:[#allocation11 + $0x808] sm:$0xff]
    %v1251 = vld [vmem:[#allocation11 + $0x810] sm:$0xff]
    %v1252 = vld [vmem:[#allocation11 + $0x818] sm:$0xff]
    %v1253 = vld [vmem:[#allocation11 + $0x820] sm:$0xff]
    %v1254 = vld [vmem:[#allocation11 + $0x828] sm:$0xff]
    %v1255 = vld [vmem:[#allocation11 + $0x830] sm:$0xff]
    %v1256 = vld [vmem:[#allocation11 + $0x838] sm:$0xff]
    %v1257 = vld [vmem:[#allocation11 + $0x840] sm:$0xff]
    %v1258 = vld [vmem:[#allocation11 + $0x848] sm:$0xff]
    %v1259 = vld [vmem:[#allocation11 + $0x850] sm:$0xff]
    %v1260 = vld [vmem:[#allocation11 + $0x858] sm:$0xff]
    %v1261 = vld [vmem:[#allocation11 + $0x860] sm:$0xff]
    %v1262 = vld [vmem:[#allocation11 + $0x868] sm:$0xff]
    %v1263 = vld [vmem:[#allocation11 + $0x870] sm:$0xff]
    %v1264 = vld [vmem:[#allocation11 + $0x878] sm:$0xff]
    %v1265 = vld [vmem:[#allocation11 + $0x880] sm:$0xff]
    %v1266 = vld [vmem:[#allocation11 + $0x888] sm:$0xff]
    %v1267 = vld [vmem:[#allocation11 + $0x890] sm:$0xff]
    %v1268 = vld [vmem:[#allocation11 + $0x898] sm:$0xff]
    %v1269 = vld [vmem:[#allocation11 + $0x8a0] sm:$0xff]
    %v1270 = vld [vmem:[#allocation11 + $0x8a8] sm:$0xff]
    %v1271 = vld [vmem:[#allocation11 + $0x8b0] sm:$0xff]
    %v1272 = vld [vmem:[#allocation11 + $0x8b8] sm:$0xff]
    %v1273 = vld [vmem:[#allocation11 + $0x8c0] sm:$0xff]
    %v1274 = vld [vmem:[#allocation11 + $0x8c8] sm:$0xff]
    %v1275 = vld [vmem:[#allocation11 + $0x8d0] sm:$0xff]
    %v1276 = vld [vmem:[#allocation11 + $0x8d8] sm:$0xff]
    %v1277 = vld [vmem:[#allocation11 + $0x8e0] sm:$0xff]
    %v1278 = vld [vmem:[#allocation11 + $0x8e8] sm:$0xff]
    %v1279 = vld [vmem:[#allocation11 + $0x8f0] sm:$0xff]
    %v1280 = vld [vmem:[#allocation11 + $0x8f8] sm:$0xff]
    %v1281 = vld [vmem:[#allocation12] sm:$0x3f]
    %v1283 = vlaneseq
    %v1284 = vshrl.u32 %v1283, 7
    %v1285 = vsub.s32 0, %v1284
    %v1286 = vrot.slane %v1281, %v1285
    %v1287 = vlaneseq
    %v1288 = vshrl.u32 %v1287, 7
    %v1289 = vsub.s32 1, %v1288
    %v1290 = vrot.slane %v1281, %v1289
    %v1291 = vlaneseq
    %v1292 = vshrl.u32 %v1291, 7
    %v1293 = vsub.s32 2, %v1292
    %v1294 = vrot.slane %v1281, %v1293
    %v1295 = vlaneseq
    %v1296 = vshrl.u32 %v1295, 7
    %v1297 = vsub.s32 3, %v1296
    %v1298 = vrot.slane %v1281, %v1297
    %v1299 = vlaneseq
    %v1300 = vshrl.u32 %v1299, 7
    %v1301 = vsub.s32 4, %v1300
    %v1302 = vrot.slane %v1281, %v1301
    %v1303 = vlaneseq
    %v1304 = vshrl.u32 %v1303, 7
    %v1305 = vsub.s32 5, %v1304
    %v1306 = vrot.slane %v1281, %v1305
    %v1601 = vunpack.c.l.b16 %v993
    %v1602 = vunpack.c.h.b16 %v993
    %v1603 = vunpack.c.l.b16 %v994
    %v1604 = vunpack.c.h.b16 %v994
    %v1605 = vunpack.c.l.b16 %v995
    %v1606 = vunpack.c.h.b16 %v995
    %v1607 = vunpack.c.l.b16 %v996
    %v1608 = vunpack.c.h.b16 %v996
    %v1609 = vunpack.c.l.b16 %v997
    %v1610 = vunpack.c.h.b16 %v997
    %v1611 = vunpack.c.l.b16 %v998
    %v1612 = vunpack.c.h.b16 %v998
    %v1613 = vunpack.c.l.b16 %v999
    %v1614 = vunpack.c.h.b16 %v999
    %v1615 = vunpack.c.l.b16 %v1000
    %v1616 = vunpack.c.h.b16 %v1000
    %v1617 = vunpack.c.l.b16 %v1001
    %v1618 = vunpack.c.h.b16 %v1001
    %v1619 = vunpack.c.l.b16 %v1002
    %v1620 = vunpack.c.h.b16 %v1002
    %v1621 = vunpack.c.l.b16 %v1003
    %v1622 = vunpack.c.h.b16 %v1003
    %v1623 = vunpack.c.l.b16 %v1004
    %v1624 = vunpack.c.h.b16 %v1004
    %v1625 = vunpack.c.l.b16 %v1005
    %v1626 = vunpack.c.h.b16 %v1005
    %v1627 = vunpack.c.l.b16 %v1006
    %v1628 = vunpack.c.h.b16 %v1006
    %v1629 = vunpack.c.l.b16 %v1007
    %v1630 = vunpack.c.h.b16 %v1007
    %v1631 = vunpack.c.l.b16 %v1008
    %v1632 = vunpack.c.h.b16 %v1008
    %v1633 = vunpack.c.l.b16 %v1009
    %v1634 = vunpack.c.h.b16 %v1009
    %v1635 = vunpack.c.l.b16 %v1010
    %v1636 = vunpack.c.h.b16 %v1010
    %v1637 = vunpack.c.l.b16 %v1011
    %v1638 = vunpack.c.h.b16 %v1011
    %v1639 = vunpack.c.l.b16 %v1012
    %v1640 = vunpack.c.h.b16 %v1012
    %v1641 = vunpack.c.l.b16 %v1013
    %v1642 = vunpack.c.h.b16 %v1013
    %v1643 = vunpack.c.l.b16 %v1014
    %v1644 = vunpack.c.h.b16 %v1014
    %v1645 = vunpack.c.l.b16 %v1015
    %v1646 = vunpack.c.h.b16 %v1015
    %v1647 = vunpack.c.l.b16 %v1016
    %v1648 = vunpack.c.h.b16 %v1016
    %v1649 = vunpack.c.l.b16 %v1017
    %v1650 = vunpack.c.h.b16 %v1017
    %v1651 = vunpack.c.l.b16 %v1018
    %v1652 = vunpack.c.h.b16 %v1018
    %v1653 = vunpack.c.l.b16 %v1019
    %v1654 = vunpack.c.h.b16 %v1019
    %v1655 = vunpack.c.l.b16 %v1020
    %v1656 = vunpack.c.h.b16 %v1020
    %v1657 = vunpack.c.l.b16 %v1021
    %v1658 = vunpack.c.h.b16 %v1021
    %v1659 = vunpack.c.l.b16 %v1022
    %v1660 = vunpack.c.h.b16 %v1022
    %v1661 = vunpack.c.l.b16 %v1023
    %v1662 = vunpack.c.h.b16 %v1023
    %v1663 = vunpack.c.l.b16 %v1024
    %v1664 = vunpack.c.h.b16 %v1024
    %v1665 = vunpack.c.l.b16 %v1025
    %v1666 = vunpack.c.h.b16 %v1025
    %v1667 = vunpack.c.l.b16 %v1026
    %v1668 = vunpack.c.h.b16 %v1026
    %v1669 = vunpack.c.l.b16 %v1027
    %v1670 = vunpack.c.h.b16 %v1027
    %v1671 = vunpack.c.l.b16 %v1028
    %v1672 = vunpack.c.h.b16 %v1028
    %v1673 = vunpack.c.l.b16 %v1029
    %v1674 = vunpack.c.h.b16 %v1029
    %v1675 = vunpack.c.l.b16 %v1030
    %v1676 = vunpack.c.h.b16 %v1030
    %v1677 = vunpack.c.l.b16 %v1031
    %v1678 = vunpack.c.h.b16 %v1031
    %v1679 = vunpack.c.l.b16 %v1032
    %v1680 = vunpack.c.h.b16 %v1032
    %v1681 = vunpack.c.l.b16 %v1033
    %v1682 = vunpack.c.h.b16 %v1033
    %v1683 = vunpack.c.l.b16 %v1034
    %v1684 = vunpack.c.h.b16 %v1034
    %v1685 = vunpack.c.l.b16 %v1035
    %v1686 = vunpack.c.h.b16 %v1035
    %v1687 = vunpack.c.l.b16 %v1036
    %v1688 = vunpack.c.h.b16 %v1036
    %v1689 = vunpack.c.l.b16 %v1037
    %v1690 = vunpack.c.h.b16 %v1037
    %v1691 = vunpack.c.l.b16 %v1038
    %v1692 = vunpack.c.h.b16 %v1038
    %v1693 = vunpack.c.l.b16 %v1039
    %v1694 = vunpack.c.h.b16 %v1039
    %v1695 = vunpack.c.l.b16 %v1040
    %v1696 = vunpack.c.h.b16 %v1040
    %v1697 = vunpack.c.l.b16 %v1041
    %v1698 = vunpack.c.h.b16 %v1041
    %v1699 = vunpack.c.l.b16 %v1042
    %v1700 = vunpack.c.h.b16 %v1042
    %v1701 = vunpack.c.l.b16 %v1043
    %v1702 = vunpack.c.h.b16 %v1043
    %v1703 = vunpack.c.l.b16 %v1044
    %v1704 = vunpack.c.h.b16 %v1044
    %v1705 = vunpack.c.l.b16 %v1045
    %v1706 = vunpack.c.h.b16 %v1045
    %v1707 = vunpack.c.l.b16 %v1046
    %v1708 = vunpack.c.h.b16 %v1046
    %v1709 = vunpack.c.l.b16 %v1047
    %v1710 = vunpack.c.h.b16 %v1047
    %v1711 = vunpack.c.l.b16 %v1048
    %v1712 = vunpack.c.h.b16 %v1048
    %v1713 = vunpack.c.l.b16 %v1049
    %v1714 = vunpack.c.h.b16 %v1049
    %v1715 = vunpack.c.l.b16 %v1050
    %v1716 = vunpack.c.h.b16 %v1050
    %v1717 = vunpack.c.l.b16 %v1051
    %v1718 = vunpack.c.h.b16 %v1051
    %v1719 = vunpack.c.l.b16 %v1052
    %v1720 = vunpack.c.h.b16 %v1052
    %v1721 = vunpack.c.l.b16 %v1053
    %v1722 = vunpack.c.h.b16 %v1053
    %v1723 = vunpack.c.l.b16 %v1054
    %v1724 = vunpack.c.h.b16 %v1054
    %v1725 = vunpack.c.l.b16 %v1055
    %v1726 = vunpack.c.h.b16 %v1055
    %v1727 = vunpack.c.l.b16 %v1056
    %v1728 = vunpack.c.h.b16 %v1056
    %v1729 = vunpack.c.l.b16 %v1057
    %v1730 = vunpack.c.h.b16 %v1057
    %v1731 = vunpack.c.l.b16 %v1058
    %v1732 = vunpack.c.h.b16 %v1058
    %v1733 = vunpack.c.l.b16 %v1059
    %v1734 = vunpack.c.h.b16 %v1059
    %v1735 = vunpack.c.l.b16 %v1060
    %v1736 = vunpack.c.h.b16 %v1060
    %v1737 = vunpack.c.l.b16 %v1061
    %v1738 = vunpack.c.h.b16 %v1061
    %v1739 = vunpack.c.l.b16 %v1062
    %v1740 = vunpack.c.h.b16 %v1062
    %v1741 = vunpack.c.l.b16 %v1063
    %v1742 = vunpack.c.h.b16 %v1063
    %v1743 = vunpack.c.l.b16 %v1064
    %v1744 = vunpack.c.h.b16 %v1064
    %v1745 = vunpack.c.l.b16 %v1065
    %v1746 = vunpack.c.h.b16 %v1065
    %v1747 = vunpack.c.l.b16 %v1066
    %v1748 = vunpack.c.h.b16 %v1066
    %v1749 = vunpack.c.l.b16 %v1067
    %v1750 = vunpack.c.h.b16 %v1067
    %v1751 = vunpack.c.l.b16 %v1068
    %v1752 = vunpack.c.h.b16 %v1068
    %v1753 = vunpack.c.l.b16 %v1069
    %v1754 = vunpack.c.h.b16 %v1069
    %v1755 = vunpack.c.l.b16 %v1070
    %v1756 = vunpack.c.h.b16 %v1070
    %v1757 = vunpack.c.l.b16 %v1071
    %v1758 = vunpack.c.h.b16 %v1071
    %v1759 = vunpack.c.l.b16 %v1072
    %v1760 = vunpack.c.h.b16 %v1072
    %v1761 = vunpack.c.l.b16 %v1073
    %v1762 = vunpack.c.h.b16 %v1073
    %v1763 = vunpack.c.l.b16 %v1074
    %v1764 = vunpack.c.h.b16 %v1074
    %v1765 = vunpack.c.l.b16 %v1075
    %v1766 = vunpack.c.h.b16 %v1075
    %v1767 = vunpack.c.l.b16 %v1076
    %v1768 = vunpack.c.h.b16 %v1076
    %v1769 = vunpack.c.l.b16 %v1077
    %v1770 = vunpack.c.h.b16 %v1077
    %v1771 = vunpack.c.l.b16 %v1078
    %v1772 = vunpack.c.h.b16 %v1078
    %v1773 = vunpack.c.l.b16 %v1079
    %v1774 = vunpack.c.h.b16 %v1079
    %v1775 = vunpack.c.l.b16 %v1080
    %v1776 = vunpack.c.h.b16 %v1080
    %v1777 = vunpack.c.l.b16 %v1081
    %v1778 = vunpack.c.h.b16 %v1081
    %v1779 = vunpack.c.l.b16 %v1082
    %v1780 = vunpack.c.h.b16 %v1082
    %v1781 = vunpack.c.l.b16 %v1083
    %v1782 = vunpack.c.h.b16 %v1083
    %v1783 = vunpack.c.l.b16 %v1084
    %v1784 = vunpack.c.h.b16 %v1084
    %v1785 = vunpack.c.l.b16 %v1085
    %v1786 = vunpack.c.h.b16 %v1085
    %v1787 = vunpack.c.l.b16 %v1086
    %v1788 = vunpack.c.h.b16 %v1086
    %v1789 = vunpack.c.l.b16 %v1087
    %v1790 = vunpack.c.h.b16 %v1087
    %v1791 = vunpack.c.l.b16 %v1088
    %v1792 = vunpack.c.h.b16 %v1088
    %v1793 = vunpack.c.l.b16 %v1089
    %v1794 = vunpack.c.h.b16 %v1089
    %v1795 = vunpack.c.l.b16 %v1090
    %v1796 = vunpack.c.h.b16 %v1090
    %v1797 = vunpack.c.l.b16 %v1091
    %v1798 = vunpack.c.h.b16 %v1091
    %v1799 = vunpack.c.l.b16 %v1092
    %v1800 = vunpack.c.h.b16 %v1092
    %v1801 = vunpack.c.l.b16 %v1093
    %v1802 = vunpack.c.h.b16 %v1093
    %v1803 = vunpack.c.l.b16 %v1094
    %v1804 = vunpack.c.h.b16 %v1094
    %v1805 = vunpack.c.l.b16 %v1095
    %v1806 = vunpack.c.h.b16 %v1095
    %v1807 = vunpack.c.l.b16 %v1096
    %v1808 = vunpack.c.h.b16 %v1096
    %v1809 = vunpack.c.l.b16 %v1097
    %v1810 = vunpack.c.h.b16 %v1097
    %v1811 = vunpack.c.l.b16 %v1098
    %v1812 = vunpack.c.h.b16 %v1098
    %v1813 = vunpack.c.l.b16 %v1099
    %v1814 = vunpack.c.h.b16 %v1099
    %v1815 = vunpack.c.l.b16 %v1100
    %v1816 = vunpack.c.h.b16 %v1100
    %v1817 = vunpack.c.l.b16 %v1101
    %v1818 = vunpack.c.h.b16 %v1101
    %v1819 = vunpack.c.l.b16 %v1102
    %v1820 = vunpack.c.h.b16 %v1102
    %v1821 = vunpack.c.l.b16 %v1103
    %v1822 = vunpack.c.h.b16 %v1103
    %v1823 = vunpack.c.l.b16 %v1104
    %v1824 = vunpack.c.h.b16 %v1104
    %v1825 = vunpack.c.l.b16 %v1105
    %v1826 = vunpack.c.h.b16 %v1105
    %v1827 = vunpack.c.l.b16 %v1106
    %v1828 = vunpack.c.h.b16 %v1106
    %v1829 = vunpack.c.l.b16 %v1107
    %v1830 = vunpack.c.h.b16 %v1107
    %v1831 = vunpack.c.l.b16 %v1108
    %v1832 = vunpack.c.h.b16 %v1108
    %v1833 = vunpack.c.l.b16 %v1109
    %v1834 = vunpack.c.h.b16 %v1109
    %v1835 = vunpack.c.l.b16 %v1110
    %v1836 = vunpack.c.h.b16 %v1110
    %v1837 = vunpack.c.l.b16 %v1111
    %v1838 = vunpack.c.h.b16 %v1111
    %v1839 = vunpack.c.l.b16 %v1112
    %v1840 = vunpack.c.h.b16 %v1112
    %v1841 = vunpack.c.l.b16 %v1113
    %v1842 = vunpack.c.h.b16 %v1113
    %v1843 = vunpack.c.l.b16 %v1114
    %v1844 = vunpack.c.h.b16 %v1114
    %v1845 = vunpack.c.l.b16 %v1115
    %v1846 = vunpack.c.h.b16 %v1115
    %v1847 = vunpack.c.l.b16 %v1116
    %v1848 = vunpack.c.h.b16 %v1116
    %v1849 = vunpack.c.l.b16 %v1117
    %v1850 = vunpack.c.h.b16 %v1117
    %v1851 = vunpack.c.l.b16 %v1118
    %v1852 = vunpack.c.h.b16 %v1118
    %v1853 = vunpack.c.l.b16 %v1119
    %v1854 = vunpack.c.h.b16 %v1119
    %v1855 = vunpack.c.l.b16 %v1120
    %v1856 = vunpack.c.h.b16 %v1120
    %v1857 = vunpack.c.l.b16 %v1121
    %v1858 = vunpack.c.h.b16 %v1121
    %v1859 = vunpack.c.l.b16 %v1122
    %v1860 = vunpack.c.h.b16 %v1122
    %v1861 = vunpack.c.l.b16 %v1123
    %v1862 = vunpack.c.h.b16 %v1123
    %v1863 = vunpack.c.l.b16 %v1124
    %v1864 = vunpack.c.h.b16 %v1124
    %v1865 = vunpack.c.l.b16 %v1125
    %v1866 = vunpack.c.h.b16 %v1125
    %v1867 = vunpack.c.l.b16 %v1126
    %v1868 = vunpack.c.h.b16 %v1126
    %v1869 = vunpack.c.l.b16 %v1127
    %v1870 = vunpack.c.h.b16 %v1127
    %v1871 = vunpack.c.l.b16 %v1128
    %v1872 = vunpack.c.h.b16 %v1128
    %v1873 = vunpack.c.l.b16 %v1129
    %v1874 = vunpack.c.h.b16 %v1129
    %v1875 = vunpack.c.l.b16 %v1130
    %v1876 = vunpack.c.h.b16 %v1130
    %v1877 = vunpack.c.l.b16 %v1131
    %v1878 = vunpack.c.h.b16 %v1131
    %v1879 = vunpack.c.l.b16 %v1132
    %v1880 = vunpack.c.h.b16 %v1132
    %v1881 = vunpack.c.l.b16 %v1133
    %v1882 = vunpack.c.h.b16 %v1133
    %v1883 = vunpack.c.l.b16 %v1134
    %v1884 = vunpack.c.h.b16 %v1134
    %v1885 = vunpack.c.l.b16 %v1135
    %v1886 = vunpack.c.h.b16 %v1135
    %v1887 = vunpack.c.l.b16 %v1136
    %v1888 = vunpack.c.h.b16 %v1136
    %v1889 = vunpack.c.l.b16 %v1137
    %v1890 = vunpack.c.h.b16 %v1137
    %v1891 = vunpack.c.l.b16 %v1138
    %v1892 = vunpack.c.h.b16 %v1138
    %v1893 = vunpack.c.l.b16 %v1139
    %v1894 = vunpack.c.h.b16 %v1139
    %v1895 = vunpack.c.l.b16 %v1140
    %v1896 = vunpack.c.h.b16 %v1140
    %v1897 = vunpack.c.l.b16 %v1141
    %v1898 = vunpack.c.h.b16 %v1141
    %v1899 = vunpack.c.l.b16 %v1142
    %v1900 = vunpack.c.h.b16 %v1142
    %v1901 = vunpack.c.l.b16 %v1143
    %v1902 = vunpack.c.h.b16 %v1143
    %v1903 = vunpack.c.l.b16 %v1144
    %v1904 = vunpack.c.h.b16 %v1144
    %v1905 = vunpack.c.l.b16 %v1145
    %v1906 = vunpack.c.h.b16 %v1145
    %v1907 = vunpack.c.l.b16 %v1146
    %v1908 = vunpack.c.h.b16 %v1146
    %v1909 = vunpack.c.l.b16 %v1147
    %v1910 = vunpack.c.h.b16 %v1147
    %v1911 = vunpack.c.l.b16 %v1148
    %v1912 = vunpack.c.h.b16 %v1148
    %v1913 = vunpack.c.l.b16 %v1149
    %v1914 = vunpack.c.h.b16 %v1149
    %v1915 = vunpack.c.l.b16 %v1150
    %v1916 = vunpack.c.h.b16 %v1150
    %v1917 = vunpack.c.l.b16 %v1151
    %v1918 = vunpack.c.h.b16 %v1151
    %v1919 = vunpack.c.l.b16 %v1152
    %v1920 = vunpack.c.h.b16 %v1152
    %v1921 = vunpack.c.l.b16 %v1153
    %v1922 = vunpack.c.h.b16 %v1153
    %v1923 = vunpack.c.l.b16 %v1154
    %v1924 = vunpack.c.h.b16 %v1154
    %v1925 = vunpack.c.l.b16 %v1155
    %v1926 = vunpack.c.h.b16 %v1155
    %v1927 = vunpack.c.l.b16 %v1156
    %v1928 = vunpack.c.h.b16 %v1156
    %v1929 = vunpack.c.l.b16 %v1157
    %v1930 = vunpack.c.h.b16 %v1157
    %v1931 = vunpack.c.l.b16 %v1158
    %v1932 = vunpack.c.h.b16 %v1158
    %v1933 = vunpack.c.l.b16 %v1159
    %v1934 = vunpack.c.h.b16 %v1159
    %v1935 = vunpack.c.l.b16 %v1160
    %v1936 = vunpack.c.h.b16 %v1160
    %v1937 = vunpack.c.l.b16 %v1161
    %v1938 = vunpack.c.h.b16 %v1161
    %v1939 = vunpack.c.l.b16 %v1162
    %v1940 = vunpack.c.h.b16 %v1162
    %v1941 = vunpack.c.l.b16 %v1163
    %v1942 = vunpack.c.h.b16 %v1163
    %v1943 = vunpack.c.l.b16 %v1164
    %v1944 = vunpack.c.h.b16 %v1164
    %v1945 = vunpack.c.l.b16 %v1165
    %v1946 = vunpack.c.h.b16 %v1165
    %v1947 = vunpack.c.l.b16 %v1166
    %v1948 = vunpack.c.h.b16 %v1166
    %v1949 = vunpack.c.l.b16 %v1167
    %v1950 = vunpack.c.h.b16 %v1167
    %v1951 = vunpack.c.l.b16 %v1168
    %v1952 = vunpack.c.h.b16 %v1168
    %v1953 = vunpack.c.l.b16 %v1169
    %v1954 = vunpack.c.h.b16 %v1169
    %v1955 = vunpack.c.l.b16 %v1170
    %v1956 = vunpack.c.h.b16 %v1170
    %v1957 = vunpack.c.l.b16 %v1171
    %v1958 = vunpack.c.h.b16 %v1171
    %v1959 = vunpack.c.l.b16 %v1172
    %v1960 = vunpack.c.h.b16 %v1172
    %v1961 = vunpack.c.l.b16 %v1173
    %v1962 = vunpack.c.h.b16 %v1173
    %v1963 = vunpack.c.l.b16 %v1174
    %v1964 = vunpack.c.h.b16 %v1174
    %v1965 = vunpack.c.l.b16 %v1175
    %v1966 = vunpack.c.h.b16 %v1175
    %v1967 = vunpack.c.l.b16 %v1176
    %v1968 = vunpack.c.h.b16 %v1176
    %v1969 = vunpack.c.l.b16 %v1177
    %v1970 = vunpack.c.h.b16 %v1177
    %v1971 = vunpack.c.l.b16 %v1178
    %v1972 = vunpack.c.h.b16 %v1178
    %v1973 = vunpack.c.l.b16 %v1179
    %v1974 = vunpack.c.h.b16 %v1179
    %v1975 = vunpack.c.l.b16 %v1180
    %v1976 = vunpack.c.h.b16 %v1180
    %v1977 = vunpack.c.l.b16 %v1181
    %v1978 = vunpack.c.h.b16 %v1181
    %v1979 = vunpack.c.l.b16 %v1182
    %v1980 = vunpack.c.h.b16 %v1182
    %v1981 = vunpack.c.l.b16 %v1183
    %v1982 = vunpack.c.h.b16 %v1183
    %v1983 = vunpack.c.l.b16 %v1184
    %v1984 = vunpack.c.h.b16 %v1184
    %v1985 = vunpack.c.l.b16 %v1185
    %v1986 = vunpack.c.h.b16 %v1185
    %v1987 = vunpack.c.l.b16 %v1186
    %v1988 = vunpack.c.h.b16 %v1186
    %v1989 = vunpack.c.l.b16 %v1187
    %v1990 = vunpack.c.h.b16 %v1187
    %v1991 = vunpack.c.l.b16 %v1188
    %v1992 = vunpack.c.h.b16 %v1188
    %v1993 = vunpack.c.l.b16 %v1189
    %v1994 = vunpack.c.h.b16 %v1189
    %v1995 = vunpack.c.l.b16 %v1190
    %v1996 = vunpack.c.h.b16 %v1190
    %v1997 = vunpack.c.l.b16 %v1191
    %v1998 = vunpack.c.h.b16 %v1191
    %v1999 = vunpack.c.l.b16 %v1192
    %v2000 = vunpack.c.h.b16 %v1192
    %v2001 = vunpack.c.l.b16 %v1193
    %v2002 = vunpack.c.h.b16 %v1193
    %v2003 = vunpack.c.l.b16 %v1194
    %v2004 = vunpack.c.h.b16 %v1194
    %v2005 = vunpack.c.l.b16 %v1195
    %v2006 = vunpack.c.h.b16 %v1195
    %v2007 = vunpack.c.l.b16 %v1196
    %v2008 = vunpack.c.h.b16 %v1196
    %v2009 = vunpack.c.l.b16 %v1197
    %v2010 = vunpack.c.h.b16 %v1197
    %v2011 = vunpack.c.l.b16 %v1198
    %v2012 = vunpack.c.h.b16 %v1198
    %v2013 = vunpack.c.l.b16 %v1199
    %v2014 = vunpack.c.h.b16 %v1199
    %v2015 = vunpack.c.l.b16 %v1200
    %v2016 = vunpack.c.h.b16 %v1200
    %v2017 = vunpack.c.l.b16 %v1201
    %v2018 = vunpack.c.h.b16 %v1201
    %v2019 = vunpack.c.l.b16 %v1202
    %v2020 = vunpack.c.h.b16 %v1202
    %v2021 = vunpack.c.l.b16 %v1203
    %v2022 = vunpack.c.h.b16 %v1203
    %v2023 = vunpack.c.l.b16 %v1204
    %v2024 = vunpack.c.h.b16 %v1204
    %v2025 = vunpack.c.l.b16 %v1205
    %v2026 = vunpack.c.h.b16 %v1205
    %v2027 = vunpack.c.l.b16 %v1206
    %v2028 = vunpack.c.h.b16 %v1206
    %v2029 = vunpack.c.l.b16 %v1207
    %v2030 = vunpack.c.h.b16 %v1207
    %v2031 = vunpack.c.l.b16 %v1208
    %v2032 = vunpack.c.h.b16 %v1208
    %v2033 = vunpack.c.l.b16 %v1209
    %v2034 = vunpack.c.h.b16 %v1209
    %v2035 = vunpack.c.l.b16 %v1210
    %v2036 = vunpack.c.h.b16 %v1210
    %v2037 = vunpack.c.l.b16 %v1211
    %v2038 = vunpack.c.h.b16 %v1211
    %v2039 = vunpack.c.l.b16 %v1212
    %v2040 = vunpack.c.h.b16 %v1212
    %v2041 = vunpack.c.l.b16 %v1213
    %v2042 = vunpack.c.h.b16 %v1213
    %v2043 = vunpack.c.l.b16 %v1214
    %v2044 = vunpack.c.h.b16 %v1214
    %v2045 = vunpack.c.l.b16 %v1215
    %v2046 = vunpack.c.h.b16 %v1215
    %v2047 = vunpack.c.l.b16 %v1216
    %v2048 = vunpack.c.h.b16 %v1216
    %v2049 = vunpack.c.l.b16 %v1217
    %v2050 = vunpack.c.h.b16 %v1217
    %v2051 = vunpack.c.l.b16 %v1218
    %v2052 = vunpack.c.h.b16 %v1218
    %v2053 = vunpack.c.l.b16 %v1219
    %v2054 = vunpack.c.h.b16 %v1219
    %v2055 = vunpack.c.l.b16 %v1220
    %v2056 = vunpack.c.h.b16 %v1220
    %v2057 = vunpack.c.l.b16 %v1221
    %v2058 = vunpack.c.h.b16 %v1221
    %v2059 = vunpack.c.l.b16 %v1222
    %v2060 = vunpack.c.h.b16 %v1222
    %v2061 = vunpack.c.l.b16 %v1223
    %v2062 = vunpack.c.h.b16 %v1223
    %v2063 = vunpack.c.l.b16 %v1224
    %v2064 = vunpack.c.h.b16 %v1224
    %v2065 = vunpack.c.l.b16 %v1225
    %v2066 = vunpack.c.h.b16 %v1225
    %v2067 = vunpack.c.l.b16 %v1226
    %v2068 = vunpack.c.h.b16 %v1226
    %v2069 = vunpack.c.l.b16 %v1227
    %v2070 = vunpack.c.h.b16 %v1227
    %v2071 = vunpack.c.l.b16 %v1228
    %v2072 = vunpack.c.h.b16 %v1228
    %v2073 = vunpack.c.l.b16 %v1229
    %v2074 = vunpack.c.h.b16 %v1229
    %v2075 = vunpack.c.l.b16 %v1230
    %v2076 = vunpack.c.h.b16 %v1230
    %v2077 = vunpack.c.l.b16 %v1231
    %v2078 = vunpack.c.h.b16 %v1231
    %v2079 = vunpack.c.l.b16 %v1232
    %v2080 = vunpack.c.h.b16 %v1232
    %v2081 = vunpack.c.l.b16 %v1233
    %v2082 = vunpack.c.h.b16 %v1233
    %v2083 = vunpack.c.l.b16 %v1234
    %v2084 = vunpack.c.h.b16 %v1234
    %v2085 = vunpack.c.l.b16 %v1235
    %v2086 = vunpack.c.h.b16 %v1235
    %v2087 = vunpack.c.l.b16 %v1236
    %v2088 = vunpack.c.h.b16 %v1236
    %v2089 = vunpack.c.l.b16 %v1237
    %v2090 = vunpack.c.h.b16 %v1237
    %v2091 = vunpack.c.l.b16 %v1238
    %v2092 = vunpack.c.h.b16 %v1238
    %v2093 = vunpack.c.l.b16 %v1239
    %v2094 = vunpack.c.h.b16 %v1239
    %v2095 = vunpack.c.l.b16 %v1240
    %v2096 = vunpack.c.h.b16 %v1240
    %v2097 = vunpack.c.l.b16 %v1241
    %v2098 = vunpack.c.h.b16 %v1241
    %v2099 = vunpack.c.l.b16 %v1242
    %v2100 = vunpack.c.h.b16 %v1242
    %v2101 = vunpack.c.l.b16 %v1243
    %v2102 = vunpack.c.h.b16 %v1243
    %v2103 = vunpack.c.l.b16 %v1244
    %v2104 = vunpack.c.h.b16 %v1244
    %v2105 = vunpack.c.l.b16 %v1245
    %v2106 = vunpack.c.h.b16 %v1245
    %v2107 = vunpack.c.l.b16 %v1246
    %v2108 = vunpack.c.h.b16 %v1246
    %v2109 = vunpack.c.l.b16 %v1247
    %v2110 = vunpack.c.h.b16 %v1247
    %v2111 = vunpack.c.l.b16 %v1248
    %v2112 = vunpack.c.h.b16 %v1248
    %v2113 = vunpack.c.l.b16 %v1249
    %v2114 = vunpack.c.h.b16 %v1249
    %v2115 = vunpack.c.l.b16 %v1250
    %v2116 = vunpack.c.h.b16 %v1250
    %v2117 = vunpack.c.l.b16 %v1251
    %v2118 = vunpack.c.h.b16 %v1251
    %v2119 = vunpack.c.l.b16 %v1252
    %v2120 = vunpack.c.h.b16 %v1252
    %v2121 = vunpack.c.l.b16 %v1253
    %v2122 = vunpack.c.h.b16 %v1253
    %v2123 = vunpack.c.l.b16 %v1254
    %v2124 = vunpack.c.h.b16 %v1254
    %v2125 = vunpack.c.l.b16 %v1255
    %v2126 = vunpack.c.h.b16 %v1255
    %v2127 = vunpack.c.l.b16 %v1256
    %v2128 = vunpack.c.h.b16 %v1256
    %v2129 = vunpack.c.l.b16 %v1257
    %v2130 = vunpack.c.h.b16 %v1257
    %v2131 = vunpack.c.l.b16 %v1258
    %v2132 = vunpack.c.h.b16 %v1258
    %v2133 = vunpack.c.l.b16 %v1259
    %v2134 = vunpack.c.h.b16 %v1259
    %v2135 = vunpack.c.l.b16 %v1260
    %v2136 = vunpack.c.h.b16 %v1260
    %v2137 = vunpack.c.l.b16 %v1261
    %v2138 = vunpack.c.h.b16 %v1261
    %v2139 = vunpack.c.l.b16 %v1262
    %v2140 = vunpack.c.h.b16 %v1262
    %v2141 = vunpack.c.l.b16 %v1263
    %v2142 = vunpack.c.h.b16 %v1263
    %v2143 = vunpack.c.l.b16 %v1264
    %v2144 = vunpack.c.h.b16 %v1264
    %v2145 = vunpack.c.l.b16 %v1265
    %v2146 = vunpack.c.h.b16 %v1265
    %v2147 = vunpack.c.l.b16 %v1266
    %v2148 = vunpack.c.h.b16 %v1266
    %v2149 = vunpack.c.l.b16 %v1267
    %v2150 = vunpack.c.h.b16 %v1267
    %v2151 = vunpack.c.l.b16 %v1268
    %v2152 = vunpack.c.h.b16 %v1268
    %v2153 = vunpack.c.l.b16 %v1269
    %v2154 = vunpack.c.h.b16 %v1269
    %v2155 = vunpack.c.l.b16 %v1270
    %v2156 = vunpack.c.h.b16 %v1270
    %v2157 = vunpack.c.l.b16 %v1271
    %v2158 = vunpack.c.h.b16 %v1271
    %v2159 = vunpack.c.l.b16 %v1272
    %v2160 = vunpack.c.h.b16 %v1272
    %v2161 = vunpack.c.l.b16 %v1273
    %v2162 = vunpack.c.h.b16 %v1273
    %v2163 = vunpack.c.l.b16 %v1274
    %v2164 = vunpack.c.h.b16 %v1274
    %v2165 = vunpack.c.l.b16 %v1275
    %v2166 = vunpack.c.h.b16 %v1275
    %v2167 = vunpack.c.l.b16 %v1276
    %v2168 = vunpack.c.h.b16 %v1276
    %v2169 = vunpack.c.l.b16 %v1277
    %v2170 = vunpack.c.h.b16 %v1277
    %v2171 = vunpack.c.l.b16 %v1278
    %v2172 = vunpack.c.h.b16 %v1278
    %v2173 = vunpack.c.l.b16 %v1279
    %v2174 = vunpack.c.h.b16 %v1279
    %v2175 = vunpack.c.l.b16 %v1280
    %v2176 = vunpack.c.h.b16 %v1280
    %v2177 = vpack.c.b16 %v1607, %v1601
    %v2178 = vpack.c.b16 %v1608, %v1602
    %v2179 = vpack.c.b16 %v1609, %v1603
    %v2180 = vpack.c.b16 %v1610, %v1604
    %v2181 = vpack.c.b16 %v1611, %v1605
    %v2182 = vpack.c.b16 %v1612, %v1606
    %v2183 = vpack.c.b16 %v1619, %v1613
    %v2184 = vpack.c.b16 %v1620, %v1614
    %v2185 = vpack.c.b16 %v1621, %v1615
    %v2186 = vpack.c.b16 %v1622, %v1616
    %v2187 = vpack.c.b16 %v1623, %v1617
    %v2188 = vpack.c.b16 %v1624, %v1618
    %v2189 = vpack.c.b16 %v1631, %v1625
    %v2190 = vpack.c.b16 %v1632, %v1626
    %v2191 = vpack.c.b16 %v1633, %v1627
    %v2192 = vpack.c.b16 %v1634, %v1628
    %v2193 = vpack.c.b16 %v1635, %v1629
    %v2194 = vpack.c.b16 %v1636, %v1630
    %v2195 = vpack.c.b16 %v1643, %v1637
    %v2196 = vpack.c.b16 %v1644, %v1638
    %v2197 = vpack.c.b16 %v1645, %v1639
    %v2198 = vpack.c.b16 %v1646, %v1640
    %v2199 = vpack.c.b16 %v1647, %v1641
    %v2200 = vpack.c.b16 %v1648, %v1642
    %v2201 = vpack.c.b16 %v1655, %v1649
    %v2202 = vpack.c.b16 %v1656, %v1650
    %v2203 = vpack.c.b16 %v1657, %v1651
    %v2204 = vpack.c.b16 %v1658, %v1652
    %v2205 = vpack.c.b16 %v1659, %v1653
    %v2206 = vpack.c.b16 %v1660, %v1654
    %v2207 = vpack.c.b16 %v1667, %v1661
    %v2208 = vpack.c.b16 %v1668, %v1662
    %v2209 = vpack.c.b16 %v1669, %v1663
    %v2210 = vpack.c.b16 %v1670, %v1664
    %v2211 = vpack.c.b16 %v1671, %v1665
    %v2212 = vpack.c.b16 %v1672, %v1666
    %v2213 = vpack.c.b16 %v1679, %v1673
    %v2214 = vpack.c.b16 %v1680, %v1674
    %v2215 = vpack.c.b16 %v1681, %v1675
    %v2216 = vpack.c.b16 %v1682, %v1676
    %v2217 = vpack.c.b16 %v1683, %v1677
    %v2218 = vpack.c.b16 %v1684, %v1678
    %v2219 = vpack.c.b16 %v1691, %v1685
    %v2220 = vpack.c.b16 %v1692, %v1686
    %v2221 = vpack.c.b16 %v1693, %v1687
    %v2222 = vpack.c.b16 %v1694, %v1688
    %v2223 = vpack.c.b16 %v1695, %v1689
    %v2224 = vpack.c.b16 %v1696, %v1690
    %v2225 = vpack.c.b16 %v1703, %v1697
    %v2226 = vpack.c.b16 %v1704, %v1698
    %v2227 = vpack.c.b16 %v1705, %v1699
    %v2228 = vpack.c.b16 %v1706, %v1700
    %v2229 = vpack.c.b16 %v1707, %v1701
    %v2230 = vpack.c.b16 %v1708, %v1702
    %v2231 = vpack.c.b16 %v1715, %v1709
    %v2232 = vpack.c.b16 %v1716, %v1710
    %v2233 = vpack.c.b16 %v1717, %v1711
    %v2234 = vpack.c.b16 %v1718, %v1712
    %v2235 = vpack.c.b16 %v1719, %v1713
    %v2236 = vpack.c.b16 %v1720, %v1714
    %v2237 = vpack.c.b16 %v1727, %v1721
    %v2238 = vpack.c.b16 %v1728, %v1722
    %v2239 = vpack.c.b16 %v1729, %v1723
    %v2240 = vpack.c.b16 %v1730, %v1724
    %v2241 = vpack.c.b16 %v1731, %v1725
    %v2242 = vpack.c.b16 %v1732, %v1726
    %v2243 = vpack.c.b16 %v1739, %v1733
    %v2244 = vpack.c.b16 %v1740, %v1734
    %v2245 = vpack.c.b16 %v1741, %v1735
    %v2246 = vpack.c.b16 %v1742, %v1736
    %v2247 = vpack.c.b16 %v1743, %v1737
    %v2248 = vpack.c.b16 %v1744, %v1738
    %v2249 = vpack.c.b16 %v1751, %v1745
    %v2250 = vpack.c.b16 %v1752, %v1746
    %v2251 = vpack.c.b16 %v1753, %v1747
    %v2252 = vpack.c.b16 %v1754, %v1748
    %v2253 = vpack.c.b16 %v1755, %v1749
    %v2254 = vpack.c.b16 %v1756, %v1750
    %v2255 = vpack.c.b16 %v1763, %v1757
    %v2256 = vpack.c.b16 %v1764, %v1758
    %v2257 = vpack.c.b16 %v1765, %v1759
    %v2258 = vpack.c.b16 %v1766, %v1760
    %v2259 = vpack.c.b16 %v1767, %v1761
    %v2260 = vpack.c.b16 %v1768, %v1762
    %v2261 = vpack.c.b16 %v1775, %v1769
    %v2262 = vpack.c.b16 %v1776, %v1770
    %v2263 = vpack.c.b16 %v1777, %v1771
    %v2264 = vpack.c.b16 %v1778, %v1772
    %v2265 = vpack.c.b16 %v1779, %v1773
    %v2266 = vpack.c.b16 %v1780, %v1774
    %v2267 = vpack.c.b16 %v1787, %v1781
    %v2268 = vpack.c.b16 %v1788, %v1782
    %v2269 = vpack.c.b16 %v1789, %v1783
    %v2270 = vpack.c.b16 %v1790, %v1784
    %v2271 = vpack.c.b16 %v1791, %v1785
    %v2272 = vpack.c.b16 %v1792, %v1786
    %v2273 = vpack.c.b16 %v1799, %v1793
    %v2274 = vpack.c.b16 %v1800, %v1794
    %v2275 = vpack.c.b16 %v1801, %v1795
    %v2276 = vpack.c.b16 %v1802, %v1796
    %v2277 = vpack.c.b16 %v1803, %v1797
    %v2278 = vpack.c.b16 %v1804, %v1798
    %v2279 = vpack.c.b16 %v1811, %v1805
    %v2280 = vpack.c.b16 %v1812, %v1806
    %v2281 = vpack.c.b16 %v1813, %v1807
    %v2282 = vpack.c.b16 %v1814, %v1808
    %v2283 = vpack.c.b16 %v1815, %v1809
    %v2284 = vpack.c.b16 %v1816, %v1810
    %v2285 = vpack.c.b16 %v1823, %v1817
    %v2286 = vpack.c.b16 %v1824, %v1818
    %v2287 = vpack.c.b16 %v1825, %v1819
    %v2288 = vpack.c.b16 %v1826, %v1820
    %v2289 = vpack.c.b16 %v1827, %v1821
    %v2290 = vpack.c.b16 %v1828, %v1822
    %v2291 = vpack.c.b16 %v1835, %v1829
    %v2292 = vpack.c.b16 %v1836, %v1830
    %v2293 = vpack.c.b16 %v1837, %v1831
    %v2294 = vpack.c.b16 %v1838, %v1832
    %v2295 = vpack.c.b16 %v1839, %v1833
    %v2296 = vpack.c.b16 %v1840, %v1834
    %v2297 = vpack.c.b16 %v1847, %v1841
    %v2298 = vpack.c.b16 %v1848, %v1842
    %v2299 = vpack.c.b16 %v1849, %v1843
    %v2300 = vpack.c.b16 %v1850, %v1844
    %v2301 = vpack.c.b16 %v1851, %v1845
    %v2302 = vpack.c.b16 %v1852, %v1846
    %v2303 = vpack.c.b16 %v1859, %v1853
    %v2304 = vpack.c.b16 %v1860, %v1854
    %v2305 = vpack.c.b16 %v1861, %v1855
    %v2306 = vpack.c.b16 %v1862, %v1856
    %v2307 = vpack.c.b16 %v1863, %v1857
    %v2308 = vpack.c.b16 %v1864, %v1858
    %v2309 = vpack.c.b16 %v1871, %v1865
    %v2310 = vpack.c.b16 %v1872, %v1866
    %v2311 = vpack.c.b16 %v1873, %v1867
    %v2312 = vpack.c.b16 %v1874, %v1868
    %v2313 = vpack.c.b16 %v1875, %v1869
    %v2314 = vpack.c.b16 %v1876, %v1870
    %v2315 = vpack.c.b16 %v1883, %v1877
    %v2316 = vpack.c.b16 %v1884, %v1878
    %v2317 = vpack.c.b16 %v1885, %v1879
    %v2318 = vpack.c.b16 %v1886, %v1880
    %v2319 = vpack.c.b16 %v1887, %v1881
    %v2320 = vpack.c.b16 %v1888, %v1882
    %v2321 = vpack.c.b16 %v1895, %v1889
    %v2322 = vpack.c.b16 %v1896, %v1890
    %v2323 = vpack.c.b16 %v1897, %v1891
    %v2324 = vpack.c.b16 %v1898, %v1892
    %v2325 = vpack.c.b16 %v1899, %v1893
    %v2326 = vpack.c.b16 %v1900, %v1894
    %v2327 = vpack.c.b16 %v1907, %v1901
    %v2328 = vpack.c.b16 %v1908, %v1902
    %v2329 = vpack.c.b16 %v1909, %v1903
    %v2330 = vpack.c.b16 %v1910, %v1904
    %v2331 = vpack.c.b16 %v1911, %v1905
    %v2332 = vpack.c.b16 %v1912, %v1906
    %v2333 = vpack.c.b16 %v1919, %v1913
    %v2334 = vpack.c.b16 %v1920, %v1914
    %v2335 = vpack.c.b16 %v1921, %v1915
    %v2336 = vpack.c.b16 %v1922, %v1916
    %v2337 = vpack.c.b16 %v1923, %v1917
    %v2338 = vpack.c.b16 %v1924, %v1918
    %v2339 = vpack.c.b16 %v1931, %v1925
    %v2340 = vpack.c.b16 %v1932, %v1926
    %v2341 = vpack.c.b16 %v1933, %v1927
    %v2342 = vpack.c.b16 %v1934, %v1928
    %v2343 = vpack.c.b16 %v1935, %v1929
    %v2344 = vpack.c.b16 %v1936, %v1930
    %v2345 = vpack.c.b16 %v1943, %v1937
    %v2346 = vpack.c.b16 %v1944, %v1938
    %v2347 = vpack.c.b16 %v1945, %v1939
    %v2348 = vpack.c.b16 %v1946, %v1940
    %v2349 = vpack.c.b16 %v1947, %v1941
    %v2350 = vpack.c.b16 %v1948, %v1942
    %v2351 = vpack.c.b16 %v1955, %v1949
    %v2352 = vpack.c.b16 %v1956, %v1950
    %v2353 = vpack.c.b16 %v1957, %v1951
    %v2354 = vpack.c.b16 %v1958, %v1952
    %v2355 = vpack.c.b16 %v1959, %v1953
    %v2356 = vpack.c.b16 %v1960, %v1954
    %v2357 = vpack.c.b16 %v1967, %v1961
    %v2358 = vpack.c.b16 %v1968, %v1962
    %v2359 = vpack.c.b16 %v1969, %v1963
    %v2360 = vpack.c.b16 %v1970, %v1964
    %v2361 = vpack.c.b16 %v1971, %v1965
    %v2362 = vpack.c.b16 %v1972, %v1966
    %v2363 = vpack.c.b16 %v1979, %v1973
    %v2364 = vpack.c.b16 %v1980, %v1974
    %v2365 = vpack.c.b16 %v1981, %v1975
    %v2366 = vpack.c.b16 %v1982, %v1976
    %v2367 = vpack.c.b16 %v1983, %v1977
    %v2368 = vpack.c.b16 %v1984, %v1978
    %v2369 = vpack.c.b16 %v1991, %v1985
    %v2370 = vpack.c.b16 %v1992, %v1986
    %v2371 = vpack.c.b16 %v1993, %v1987
    %v2372 = vpack.c.b16 %v1994, %v1988
    %v2373 = vpack.c.b16 %v1995, %v1989
    %v2374 = vpack.c.b16 %v1996, %v1990
    %v2375 = vpack.c.b16 %v2003, %v1997
    %v2376 = vpack.c.b16 %v2004, %v1998
    %v2377 = vpack.c.b16 %v2005, %v1999
    %v2378 = vpack.c.b16 %v2006, %v2000
    %v2379 = vpack.c.b16 %v2007, %v2001
    %v2380 = vpack.c.b16 %v2008, %v2002
    %v2381 = vpack.c.b16 %v2015, %v2009
    %v2382 = vpack.c.b16 %v2016, %v2010
    %v2383 = vpack.c.b16 %v2017, %v2011
    %v2384 = vpack.c.b16 %v2018, %v2012
    %v2385 = vpack.c.b16 %v2019, %v2013
    %v2386 = vpack.c.b16 %v2020, %v2014
    %v2387 = vpack.c.b16 %v2027, %v2021
    %v2388 = vpack.c.b16 %v2028, %v2022
    %v2389 = vpack.c.b16 %v2029, %v2023
    %v2390 = vpack.c.b16 %v2030, %v2024
    %v2391 = vpack.c.b16 %v2031, %v2025
    %v2392 = vpack.c.b16 %v2032, %v2026
    %v2393 = vpack.c.b16 %v2039, %v2033
    %v2394 = vpack.c.b16 %v2040, %v2034
    %v2395 = vpack.c.b16 %v2041, %v2035
    %v2396 = vpack.c.b16 %v2042, %v2036
    %v2397 = vpack.c.b16 %v2043, %v2037
    %v2398 = vpack.c.b16 %v2044, %v2038
    %v2399 = vpack.c.b16 %v2051, %v2045
    %v2400 = vpack.c.b16 %v2052, %v2046
    %v2401 = vpack.c.b16 %v2053, %v2047
    %v2402 = vpack.c.b16 %v2054, %v2048
    %v2403 = vpack.c.b16 %v2055, %v2049
    %v2404 = vpack.c.b16 %v2056, %v2050
    %v2405 = vpack.c.b16 %v2063, %v2057
    %v2406 = vpack.c.b16 %v2064, %v2058
    %v2407 = vpack.c.b16 %v2065, %v2059
    %v2408 = vpack.c.b16 %v2066, %v2060
    %v2409 = vpack.c.b16 %v2067, %v2061
    %v2410 = vpack.c.b16 %v2068, %v2062
    %v2411 = vpack.c.b16 %v2075, %v2069
    %v2412 = vpack.c.b16 %v2076, %v2070
    %v2413 = vpack.c.b16 %v2077, %v2071
    %v2414 = vpack.c.b16 %v2078, %v2072
    %v2415 = vpack.c.b16 %v2079, %v2073
    %v2416 = vpack.c.b16 %v2080, %v2074
    %v2417 = vpack.c.b16 %v2087, %v2081
    %v2418 = vpack.c.b16 %v2088, %v2082
    %v2419 = vpack.c.b16 %v2089, %v2083
    %v2420 = vpack.c.b16 %v2090, %v2084
    %v2421 = vpack.c.b16 %v2091, %v2085
    %v2422 = vpack.c.b16 %v2092, %v2086
    %v2423 = vpack.c.b16 %v2099, %v2093
    %v2424 = vpack.c.b16 %v2100, %v2094
    %v2425 = vpack.c.b16 %v2101, %v2095
    %v2426 = vpack.c.b16 %v2102, %v2096
    %v2427 = vpack.c.b16 %v2103, %v2097
    %v2428 = vpack.c.b16 %v2104, %v2098
    %v2429 = vpack.c.b16 %v2111, %v2105
    %v2430 = vpack.c.b16 %v2112, %v2106
    %v2431 = vpack.c.b16 %v2113, %v2107
    %v2432 = vpack.c.b16 %v2114, %v2108
    %v2433 = vpack.c.b16 %v2115, %v2109
    %v2434 = vpack.c.b16 %v2116, %v2110
    %v2435 = vpack.c.b16 %v2123, %v2117
    %v2436 = vpack.c.b16 %v2124, %v2118
    %v2437 = vpack.c.b16 %v2125, %v2119
    %v2438 = vpack.c.b16 %v2126, %v2120
    %v2439 = vpack.c.b16 %v2127, %v2121
    %v2440 = vpack.c.b16 %v2128, %v2122
    %v2441 = vpack.c.b16 %v2135, %v2129
    %v2442 = vpack.c.b16 %v2136, %v2130
    %v2443 = vpack.c.b16 %v2137, %v2131
    %v2444 = vpack.c.b16 %v2138, %v2132
    %v2445 = vpack.c.b16 %v2139, %v2133
    %v2446 = vpack.c.b16 %v2140, %v2134
    %v2447 = vpack.c.b16 %v2147, %v2141
    %v2448 = vpack.c.b16 %v2148, %v2142
    %v2449 = vpack.c.b16 %v2149, %v2143
    %v2450 = vpack.c.b16 %v2150, %v2144
    %v2451 = vpack.c.b16 %v2151, %v2145
    %v2452 = vpack.c.b16 %v2152, %v2146
    %v2453 = vpack.c.b16 %v2159, %v2153
    %v2454 = vpack.c.b16 %v2160, %v2154
    %v2455 = vpack.c.b16 %v2161, %v2155
    %v2456 = vpack.c.b16 %v2162, %v2156
    %v2457 = vpack.c.b16 %v2163, %v2157
    %v2458 = vpack.c.b16 %v2164, %v2158
    %v2459 = vpack.c.b16 %v2171, %v2165
    %v2460 = vpack.c.b16 %v2172, %v2166
    %v2461 = vpack.c.b16 %v2173, %v2167
    %v2462 = vpack.c.b16 %v2174, %v2168
    %v2463 = vpack.c.b16 %v2175, %v2169
    %v2464 = vpack.c.b16 %v2176, %v2170
    %2753 = vmatprep.subr.bf16.mxu0 %v2178
    %2754 = vmatpush1.bf16.msra.mxu0 %v2177
    %2755 = vmatprep.subr.bf16.mxu0 %v2184
    %2756 = vmatpush1.bf16.msra.mxu0 %v2183
    %2757 = vmatprep.subr.bf16.mxu0 %v2190
    %2758 = vmatpush1.bf16.msra.mxu0 %v2189
    %2759 = vmatprep.subr.bf16.mxu0 %v2196
    %2760 = vmatpush1.bf16.msra.mxu0 %v2195
    %2761 = vmatprep.subr.bf16.mxu0 %v2202
    %2762 = vmatpush1.bf16.msra.mxu0 %v2201
    %2763 = vmatprep.subr.bf16.mxu0 %v2208
    %2764 = vmatpush1.bf16.msra.mxu0 %v2207
    %2765 = vmatprep.subr.bf16.mxu0 %v2214
    %2766 = vmatpush1.bf16.msra.mxu0 %v2213
    %2767 = vmatprep.subr.bf16.mxu0 %v2220
    %2768 = vmatpush1.bf16.msra.mxu0 %v2219
    %2769 = vmatprep.subr.bf16.mxu0 %v2226
    %2770 = vmatpush1.bf16.msra.mxu0 %v2225
    %2771 = vmatprep.subr.bf16.mxu0 %v2232
    %2772 = vmatpush1.bf16.msra.mxu0 %v2231
    %2773 = vmatprep.subr.bf16.mxu0 %v2238
    %2774 = vmatpush1.bf16.msra.mxu0 %v2237
    %2775 = vmatprep.subr.bf16.mxu0 %v2244
    %2776 = vmatpush1.bf16.msra.mxu0 %v2243
    %2777 = vmatprep.subr.bf16.mxu0 %v2250
    %2778 = vmatpush1.bf16.msra.mxu0 %v2249
    %2779 = vmatprep.subr.bf16.mxu0 %v2256
    %2780 = vmatpush1.bf16.msra.mxu0 %v2255
    %2781 = vmatprep.subr.bf16.mxu0 %v2262
    %2782 = vmatpush1.bf16.msra.mxu0 %v2261
    %2783 = vmatprep.subr.bf16.mxu0 %v2268
    %2784 = vmatpush1.bf16.msra.mxu0 %v2267
    %2785 = vmatprep.mubr.bf16.mxu0 %v988
    %2786 = vmatmul.mubr.bf16.gmra.mrb[0].mxu0 %v987
    %v2787 = vpop.f32.mrb[0].mxu0
    %v2788 = vadd.f32 %v1286, %v2787
    %v2789 = vpop.f32.mrb[0].mxu0
    %v2790 = vadd.f32 %v1290, %v2789
    %v2791 = vpop.f32.mrb[0].mxu0
    %v2792 = vadd.f32 %v1286, %v2791
    %v2793 = vpop.f32.mrb[0].mxu0
    %v2794 = vadd.f32 %v1290, %v2793
    %2795 = vdwg.mxu0
    %2796 = vmatprep.subr.bf16.mxu0 %v2274
    %2797 = vmatpush1.bf16.msra.mxu0 %v2273
    %2798 = vmatprep.subr.bf16.mxu0 %v2280
    %2799 = vmatpush1.bf16.msra.mxu0 %v2279
    %2800 = vmatprep.subr.bf16.mxu0 %v2286
    %2801 = vmatpush1.bf16.msra.mxu0 %v2285
    %2802 = vmatprep.subr.bf16.mxu0 %v2292
    %2803 = vmatpush1.bf16.msra.mxu0 %v2291
    %2804 = vmatprep.subr.bf16.mxu0 %v2298
    %2805 = vmatpush1.bf16.msra.mxu0 %v2297
    %2806 = vmatprep.subr.bf16.mxu0 %v2304
    %2807 = vmatpush1.bf16.msra.mxu0 %v2303
    %2808 = vmatprep.subr.bf16.mxu0 %v2310
    %2809 = vmatpush1.bf16.msra.mxu0 %v2309
    %2810 = vmatprep.subr.bf16.mxu0 %v2316
    %2811 = vmatpush1.bf16.msra.mxu0 %v2315
    %2812 = vmatprep.subr.bf16.mxu0 %v2322
    %2813 = vmatpush1.bf16.msra.mxu0 %v2321
    %2814 = vmatprep.subr.bf16.mxu0 %v2328
    %2815 = vmatpush1.bf16.msra.mxu0 %v2327
    %2816 = vmatprep.subr.bf16.mxu0 %v2334
    %2817 = vmatpush1.bf16.msra.mxu0 %v2333
    %2818 = vmatprep.subr.bf16.mxu0 %v2340
    %2819 = vmatpush1.bf16.msra.mxu0 %v2339
    %2820 = vmatprep.subr.bf16.mxu0 %v2346
    %2821 = vmatpush1.bf16.msra.mxu0 %v2345
    %2822 = vmatprep.subr.bf16.mxu0 %v2352
    %2823 = vmatpush1.bf16.msra.mxu0 %v2351
    %2824 = vmatprep.subr.bf16.mxu0 %v2358
    %2825 = vmatpush1.bf16.msra.mxu0 %v2357
    %2826 = vmatprep.subr.bf16.mxu0 %v2364
    %2827 = vmatpush1.bf16.msra.mxu0 %v2363
    %2828 = vmatprep.mubr.bf16.mxu0 %v990
    %2829 = vmatmul.mubr.bf16.gmra.mrb[0].mxu0 %v989
    %v2830 = vpop.f32.mrb[0].mxu0
    %v2831 = vadd.f32 %v2788, %v2830
    %v2832 = vpop.f32.mrb[0].mxu0
    %v2833 = vadd.f32 %v2790, %v2832
    %v2834 = vpop.f32.mrb[0].mxu0
    %v2835 = vadd.f32 %v2792, %v2834
    %v2836 = vpop.f32.mrb[0].mxu0
    %v2837 = vadd.f32 %v2794, %v2836
    %2838 = vdwg.mxu0
    %2839 = vmatprep.subr.bf16.mxu0 %v2370
    %2840 = vmatpush1.bf16.msra.mxu0 %v2369
    %2841 = vmatprep.subr.bf16.mxu0 %v2376
    %2842 = vmatpush1.bf16.msra.mxu0 %v2375
    %2843 = vmatprep.subr.bf16.mxu0 %v2382
    %2844 = vmatpush1.bf16.msra.mxu0 %v2381
    %2845 = vmatprep.subr.bf16.mxu0 %v2388
    %2846 = vmatpush1.bf16.msra.mxu0 %v2387
    %2847 = vmatprep.subr.bf16.mxu0 %v2394
    %2848 = vmatpush1.bf16.msra.mxu0 %v2393
    %2849 = vmatprep.subr.bf16.mxu0 %v2400
    %2850 = vmatpush1.bf16.msra.mxu0 %v2399
    %2851 = vmatprep.subr.bf16.mxu0 %v2406
    %2852 = vmatpush1.bf16.msra.mxu0 %v2405
    %2853 = vmatprep.subr.bf16.mxu0 %v2412
    %2854 = vmatpush1.bf16.msra.mxu0 %v2411
    %2855 = vmatprep.subr.bf16.mxu0 %v2418
    %2856 = vmatpush1.bf16.msra.mxu0 %v2417
    %2857 = vmatprep.subr.bf16.mxu0 %v2424
    %2858 = vmatpush1.bf16.msra.mxu0 %v2423
    %2859 = vmatprep.subr.bf16.mxu0 %v2430
    %2860 = vmatpush1.bf16.msra.mxu0 %v2429
    %2861 = vmatprep.subr.bf16.mxu0 %v2436
    %2862 = vmatpush1.bf16.msra.mxu0 %v2435
    %2863 = vmatprep.subr.bf16.mxu0 %v2442
    %2864 = vmatpush1.bf16.msra.mxu0 %v2441
    %2865 = vmatprep.subr.bf16.mxu0 %v2448
    %2866 = vmatpush1.bf16.msra.mxu0 %v2447
    %2867 = vmatprep.subr.bf16.mxu0 %v2454
    %2868 = vmatpush1.bf16.msra.mxu0 %v2453
    %2869 = vmatprep.subr.bf16.mxu0 %v2460
    %2870 = vmatpush1.bf16.msra.mxu0 %v2459
    %2871 = vmatprep.mubr.bf16.mxu0 %v992
    %2872 = vmatmul.mubr.bf16.gmra.mrb[0].mxu0 %v991
    %v2873 = vpop.f32.mrb[0].mxu0
    %v2874 = vadd.f32 %v2831, %v2873
    %v2875 = vpop.f32.mrb[0].mxu0
    %v2876 = vadd.f32 %v2833, %v2875
    %v2877 = vpop.f32.mrb[0].mxu0
    %v2878 = vadd.f32 %v2835, %v2877
    %v2879 = vpop.f32.mrb[0].mxu0
    %v2880 = vadd.f32 %v2837, %v2879
    %2881 = vdwg.mxu0
    %2882 = vmatprep.subr.bf16.mxu0 %v2180
    %2883 = vmatpush1.bf16.msra.mxu0 %v2179
    %2884 = vmatprep.subr.bf16.mxu0 %v2186
    %2885 = vmatpush1.bf16.msra.mxu0 %v2185
    %2886 = vmatprep.subr.bf16.mxu0 %v2192
    %2887 = vmatpush1.bf16.msra.mxu0 %v2191
    %2888 = vmatprep.subr.bf16.mxu0 %v2198
    %2889 = vmatpush1.bf16.msra.mxu0 %v2197
    %2890 = vmatprep.subr.bf16.mxu0 %v2204
    %2891 = vmatpush1.bf16.msra.mxu0 %v2203
    %2892 = vmatprep.subr.bf16.mxu0 %v2210
    %2893 = vmatpush1.bf16.msra.mxu0 %v2209
    %2894 = vmatprep.subr.bf16.mxu0 %v2216
    %2895 = vmatpush1.bf16.msra.mxu0 %v2215
    %2896 = vmatprep.subr.bf16.mxu0 %v2222
    %2897 = vmatpush1.bf16.msra.mxu0 %v2221
    %2898 = vmatprep.subr.bf16.mxu0 %v2228
    %2899 = vmatpush1.bf16.msra.mxu0 %v2227
    %2900 = vmatprep.subr.bf16.mxu0 %v2234
    %2901 = vmatpush1.bf16.msra.mxu0 %v2233
    %2902 = vmatprep.subr.bf16.mxu0 %v2240
    %2903 = vmatpush1.bf16.msra.mxu0 %v2239
    %2904 = vmatprep.subr.bf16.mxu0 %v2246
    %2905 = vmatpush1.bf16.msra.mxu0 %v2245
    %2906 = vmatprep.subr.bf16.mxu0 %v2252
    %2907 = vmatpush1.bf16.msra.mxu0 %v2251
    %2908 = vmatprep.subr.bf16.mxu0 %v2258
    %2909 = vmatpush1.bf16.msra.mxu0 %v2257
    %2910 = vmatprep.subr.bf16.mxu0 %v2264
    %2911 = vmatpush1.bf16.msra.mxu0 %v2263
    %2912 = vmatprep.subr.bf16.mxu0 %v2270
    %2913 = vmatpush1.bf16.msra.mxu0 %v2269
    %2914 = vmatprep.mubr.bf16.mxu0 %v988
    %2915 = vmatmul.mubr.bf16.gmra.mrb[0].mxu0 %v987
    %v2916 = vpop.f32.mrb[0].mxu0
    %v2917 = vadd.f32 %v1294, %v2916
    %v2918 = vpop.f32.mrb[0].mxu0
    %v2919 = vadd.f32 %v1298, %v2918
    %v2920 = vpop.f32.mrb[0].mxu0
    %v2921 = vadd.f32 %v1294, %v2920
    %v2922 = vpop.f32.mrb[0].mxu0
    %v2923 = vadd.f32 %v1298, %v2922
    %2924 = vdwg.mxu0
    %2925 = vmatprep.subr.bf16.mxu0 %v2276
    %2926 = vmatpush1.bf16.msra.mxu0 %v2275
    %2927 = vmatprep.subr.bf16.mxu0 %v2282
    %2928 = vmatpush1.bf16.msra.mxu0 %v2281
    %2929 = vmatprep.subr.bf16.mxu0 %v2288
    %2930 = vmatpush1.bf16.msra.mxu0 %v2287
    %2931 = vmatprep.subr.bf16.mxu0 %v2294
    %2932 = vmatpush1.bf16.msra.mxu0 %v2293
    %2933 = vmatprep.subr.bf16.mxu0 %v2300
    %2934 = vmatpush1.bf16.msra.mxu0 %v2299
    %2935 = vmatprep.subr.bf16.mxu0 %v2306
    %2936 = vmatpush1.bf16.msra.mxu0 %v2305
    %2937 = vmatprep.subr.bf16.mxu0 %v2312
    %2938 = vmatpush1.bf16.msra.mxu0 %v2311
    %2939 = vmatprep.subr.bf16.mxu0 %v2318
    %2940 = vmatpush1.bf16.msra.mxu0 %v2317
    %2941 = vmatprep.subr.bf16.mxu0 %v2324
    %2942 = vmatpush1.bf16.msra.mxu0 %v2323
    %2943 = vmatprep.subr.bf16.mxu0 %v2330
    %2944 = vmatpush1.bf16.msra.mxu0 %v2329
    %2945 = vmatprep.subr.bf16.mxu0 %v2336
    %2946 = vmatpush1.bf16.msra.mxu0 %v2335
    %2947 = vmatprep.subr.bf16.mxu0 %v2342
    %2948 = vmatpush1.bf16.msra.mxu0 %v2341
    %2949 = vmatprep.subr.bf16.mxu0 %v2348
    %2950 = vmatpush1.bf16.msra.mxu0 %v2347
    %2951 = vmatprep.subr.bf16.mxu0 %v2354
    %2952 = vmatpush1.bf16.msra.mxu0 %v2353
    %2953 = vmatprep.subr.bf16.mxu0 %v2360
    %2954 = vmatpush1.bf16.msra.mxu0 %v2359
    %2955 = vmatprep.subr.bf16.mxu0 %v2366
    %2956 = vmatpush1.bf16.msra.mxu0 %v2365
    %2957 = vmatprep.mubr.bf16.mxu0 %v990
    %2958 = vmatmul.mubr.bf16.gmra.mrb[0].mxu0 %v989
    %v2959 = vpop.f32.mrb[0].mxu0
    %v2960 = vadd.f32 %v2917, %v2959
    %v2961 = vpop.f32.mrb[0].mxu0
    %v2962 = vadd.f32 %v2919, %v2961
    %v2963 = vpop.f32.mrb[0].mxu0
    %v2964 = vadd.f32 %v2921, %v2963
    %v2965 = vpop.f32.mrb[0].mxu0
    %v2966 = vadd.f32 %v2923, %v2965
    %2967 = vdwg.mxu0
    %2968 = vmatprep.subr.bf16.mxu0 %v2372
    %2969 = vmatpush1.bf16.msra.mxu0 %v2371
    %2970 = vmatprep.subr.bf16.mxu0 %v2378
    %2971 = vmatpush1.bf16.msra.mxu0 %v2377
    %2972 = vmatprep.subr.bf16.mxu0 %v2384
    %2973 = vmatpush1.bf16.msra.mxu0 %v2383
    %2974 = vmatprep.subr.bf16.mxu0 %v2390
    %2975 = vmatpush1.bf16.msra.mxu0 %v2389
    %2976 = vmatprep.subr.bf16.mxu0 %v2396
    %2977 = vmatpush1.bf16.msra.mxu0 %v2395
    %2978 = vmatprep.subr.bf16.mxu0 %v2402
    %2979 = vmatpush1.bf16.msra.mxu0 %v2401
    %2980 = vmatprep.subr.bf16.mxu0 %v2408
    %2981 = vmatpush1.bf16.msra.mxu0 %v2407
    %2982 = vmatprep.subr.bf16.mxu0 %v2414
    %2983 = vmatpush1.bf16.msra.mxu0 %v2413
    %2984 = vmatprep.subr.bf16.mxu0 %v2420
    %2985 = vmatpush1.bf16.msra.mxu0 %v2419
    %2986 = vmatprep.subr.bf16.mxu0 %v2426
    %2987 = vmatpush1.bf16.msra.mxu0 %v2425
    %2988 = vmatprep.subr.bf16.mxu0 %v2432
    %2989 = vmatpush1.bf16.msra.mxu0 %v2431
    %2990 = vmatprep.subr.bf16.mxu0 %v2438
    %2991 = vmatpush1.bf16.msra.mxu0 %v2437
    %2992 = vmatprep.subr.bf16.mxu0 %v2444
    %2993 = vmatpush1.bf16.msra.mxu0 %v2443
    %2994 = vmatprep.subr.bf16.mxu0 %v2450
    %2995 = vmatpush1.bf16.msra.mxu0 %v2449
    %2996 = vmatprep.subr.bf16.mxu0 %v2456
    %2997 = vmatpush1.bf16.msra.mxu0 %v2455
    %2998 = vmatprep.subr.bf16.mxu0 %v2462
    %2999 = vmatpush1.bf16.msra.mxu0 %v2461
    %3000 = vmatprep.mubr.bf16.mxu0 %v992
    %3001 = vmatmul.mubr.bf16.gmra.mrb[0].mxu0 %v991
    %v3002 = vpop.f32.mrb[0].mxu0
    %v3003 = vadd.f32 %v2960, %v3002
    %v3004 = vpop.f32.mrb[0].mxu0
    %v3005 = vadd.f32 %v2962, %v3004
    %v3006 = vpop.f32.mrb[0].mxu0
    %v3007 = vadd.f32 %v2964, %v3006
    %v3008 = vpop.f32.mrb[0].mxu0
    %v3009 = vadd.f32 %v2966, %v3008
    %3010 = vdwg.mxu0
    %3011 = vmatprep.subr.bf16.mxu0 %v2182
    %3012 = vmatpush1.bf16.msra.mxu0 %v2181
    %3013 = vmatprep.subr.bf16.mxu0 %v2188
    %3014 = vmatpush1.bf16.msra.mxu0 %v2187
    %3015 = vmatprep.subr.bf16.mxu0 %v2194
    %3016 = vmatpush1.bf16.msra.mxu0 %v2193
    %3017 = vmatprep.subr.bf16.mxu0 %v2200
    %3018 = vmatpush1.bf16.msra.mxu0 %v2199
    %3019 = vmatprep.subr.bf16.mxu0 %v2206
    %3020 = vmatpush1.bf16.msra.mxu0 %v2205
    %3021 = vmatprep.subr.bf16.mxu0 %v2212
    %3022 = vmatpush1.bf16.msra.mxu0 %v2211
    %3023 = vmatprep.subr.bf16.mxu0 %v2218
    %3024 = vmatpush1.bf16.msra.mxu0 %v2217
    %3025 = vmatprep.subr.bf16.mxu0 %v2224
    %3026 = vmatpush1.bf16.msra.mxu0 %v2223
    %3027 = vmatprep.subr.bf16.mxu0 %v2230
    %3028 = vmatpush1.bf16.msra.mxu0 %v2229
    %3029 = vmatprep.subr.bf16.mxu0 %v2236
    %3030 = vmatpush1.bf16.msra.mxu0 %v2235
    %3031 = vmatprep.subr.bf16.mxu0 %v2242
    %3032 = vmatpush1.bf16.msra.mxu0 %v2241
    %3033 = vmatprep.subr.bf16.mxu0 %v2248
    %3034 = vmatpush1.bf16.msra.mxu0 %v2247
    %3035 = vmatprep.subr.bf16.mxu0 %v2254
    %3036 = vmatpush1.bf16.msra.mxu0 %v2253
    %3037 = vmatprep.subr.bf16.mxu0 %v2260
    %3038 = vmatpush1.bf16.msra.mxu0 %v2259
    %3039 = vmatprep.subr.bf16.mxu0 %v2266
    %3040 = vmatpush1.bf16.msra.mxu0 %v2265
    %3041 = vmatprep.subr.bf16.mxu0 %v2272
    %3042 = vmatpush1.bf16.msra.mxu0 %v2271
    %3043 = vmatprep.mubr.bf16.mxu0 %v988
    %3044 = vmatmul.mubr.bf16.gmra.mrb[0].mxu0 %v987
    %v3045 = vpop.f32.mrb[0].mxu0
    %v3046 = vadd.f32 %v1302, %v3045
    %v3047 = vpop.f32.mrb[0].mxu0
    %v3048 = vadd.f32 %v1306, %v3047
    %v3049 = vpop.f32.mrb[0].mxu0
    %v3050 = vadd.f32 %v1302, %v3049
    %v3051 = vpop.f32.mrb[0].mxu0
    %v3052 = vadd.f32 %v1306, %v3051
    %3053 = vdwg.mxu0
    %3054 = vmatprep.subr.bf16.mxu0 %v2278
    %3055 = vmatpush1.bf16.msra.mxu0 %v2277
    %3056 = vmatprep.subr.bf16.mxu0 %v2284
    %3057 = vmatpush1.bf16.msra.mxu0 %v2283
    %3058 = vmatprep.subr.bf16.mxu0 %v2290
    %3059 = vmatpush1.bf16.msra.mxu0 %v2289
    %3060 = vmatprep.subr.bf16.mxu0 %v2296
    %3061 = vmatpush1.bf16.msra.mxu0 %v2295
    %3062 = vmatprep.subr.bf16.mxu0 %v2302
    %3063 = vmatpush1.bf16.msra.mxu0 %v2301
    %3064 = vmatprep.subr.bf16.mxu0 %v2308
    %3065 = vmatpush1.bf16.msra.mxu0 %v2307
    %3066 = vmatprep.subr.bf16.mxu0 %v2314
    %3067 = vmatpush1.bf16.msra.mxu0 %v2313
    %3068 = vmatprep.subr.bf16.mxu0 %v2320
    %3069 = vmatpush1.bf16.msra.mxu0 %v2319
    %3070 = vmatprep.subr.bf16.mxu0 %v2326
    %3071 = vmatpush1.bf16.msra.mxu0 %v2325
    %3072 = vmatprep.subr.bf16.mxu0 %v2332
    %3073 = vmatpush1.bf16.msra.mxu0 %v2331
    %3074 = vmatprep.subr.bf16.mxu0 %v2338
    %3075 = vmatpush1.bf16.msra.mxu0 %v2337
    %3076 = vmatprep.subr.bf16.mxu0 %v2344
    %3077 = vmatpush1.bf16.msra.mxu0 %v2343
    %3078 = vmatprep.subr.bf16.mxu0 %v2350
    %3079 = vmatpush1.bf16.msra.mxu0 %v2349
    %3080 = vmatprep.subr.bf16.mxu0 %v2356
    %3081 = vmatpush1.bf16.msra.mxu0 %v2355
    %3082 = vmatprep.subr.bf16.mxu0 %v2362
    %3083 = vmatpush1.bf16.msra.mxu0 %v2361
    %3084 = vmatprep.subr.bf16.mxu0 %v2368
    %3085 = vmatpush1.bf16.msra.mxu0 %v2367
    %3086 = vmatprep.mubr.bf16.mxu0 %v990
    %3087 = vmatmul.mubr.bf16.gmra.mrb[0].mxu0 %v989
    %v3088 = vpop.f32.mrb[0].mxu0
    %v3089 = vadd.f32 %v3046, %v3088
    %v3090 = vpop.f32.mrb[0].mxu0
    %v3091 = vadd.f32 %v3048, %v3090
    %v3092 = vpop.f32.mrb[0].mxu0
    %v3093 = vadd.f32 %v3050, %v3092
    %v3094 = vpop.f32.mrb[0].mxu0
    %v3095 = vadd.f32 %v3052, %v3094
    %3096 = vdwg.mxu0
    %3097 = vmatprep.subr.bf16.mxu0 %v2374
    %3098 = vmatpush1.bf16.msra.mxu0 %v2373
    %3099 = vmatprep.subr.bf16.mxu0 %v2380
    %3100 = vmatpush1.bf16.msra.mxu0 %v2379
    %3101 = vmatprep.subr.bf16.mxu0 %v2386
    %3102 = vmatpush1.bf16.msra.mxu0 %v2385
    %3103 = vmatprep.subr.bf16.mxu0 %v2392
    %3104 = vmatpush1.bf16.msra.mxu0 %v2391
    %3105 = vmatprep.subr.bf16.mxu0 %v2398
    %3106 = vmatpush1.bf16.msra.mxu0 %v2397
    %3107 = vmatprep.subr.bf16.mxu0 %v2404
    %3108 = vmatpush1.bf16.msra.mxu0 %v2403
    %3109 = vmatprep.subr.bf16.mxu0 %v2410
    %3110 = vmatpush1.bf16.msra.mxu0 %v2409
    %3111 = vmatprep.subr.bf16.mxu0 %v2416
    %3112 = vmatpush1.bf16.msra.mxu0 %v2415
    %3113 = vmatprep.subr.bf16.mxu0 %v2422
    %3114 = vmatpush1.bf16.msra.mxu0 %v2421
    %3115 = vmatprep.subr.bf16.mxu0 %v2428
    %3116 = vmatpush1.bf16.msra.mxu0 %v2427
    %3117 = vmatprep.subr.bf16.mxu0 %v2434
    %3118 = vmatpush1.bf16.msra.mxu0 %v2433
    %3119 = vmatprep.subr.bf16.mxu0 %v2440
    %3120 = vmatpush1.bf16.msra.mxu0 %v2439
    %3121 = vmatprep.subr.bf16.mxu0 %v2446
    %3122 = vmatpush1.bf16.msra.mxu0 %v2445
    %3123 = vmatprep.subr.bf16.mxu0 %v2452
    %3124 = vmatpush1.bf16.msra.mxu0 %v2451
    %3125 = vmatprep.subr.bf16.mxu0 %v2458
    %3126 = vmatpush1.bf16.msra.mxu0 %v2457
    %3127 = vmatprep.subr.bf16.mxu0 %v2464
    %3128 = vmatpush1.bf16.msra.mxu0 %v2463
    %3129 = vmatprep.mubr.bf16.mxu0 %v992
    %3130 = vmatmul.mubr.bf16.gmra.mrb[0].mxu0 %v991
    %v3131 = vpop.f32.mrb[0].mxu0
    %v3132 = vadd.f32 %v3089, %v3131
    %v3133 = vpop.f32.mrb[0].mxu0
    %v3134 = vadd.f32 %v3091, %v3133
    %v3135 = vpop.f32.mrb[0].mxu0
    %v3136 = vadd.f32 %v3093, %v3135
    %v3137 = vpop.f32.mrb[0].mxu0
    %v3138 = vadd.f32 %v3095, %v3137
    %3139 = vdwg.mxu0
    %v3140 = vtanh.pop %v2874
    %v3141 = vtanh.pop %v2876
    %v3142 = vtanh.pop %v3003
    %v3143 = vtanh.pop %v3005
    %v3144 = vtanh.pop %v3132
    %v3145 = vtanh.pop %v3134
    %v3146 = vtanh.pop %v2878
    %v3147 = vtanh.pop %v2880
    %v3148 = vtanh.pop %v3007
    %v3149 = vtanh.pop %v3009
    %v3150 = vtanh.pop %v3136
    %v3151 = vtanh.pop %v3138
    %v3152 = vpack.c.bf16 %v3140, %v3140
    %v3153 = vpack.c.bf16 %v3141, %v3141
    %v3154 = vpack.c.bf16 %v3142, %v3142
    %v3155 = vpack.c.bf16 %v3143, %v3143
    %v3156 = vpack.c.bf16 %v3144, %v3144
    %v3157 = vpack.c.bf16 %v3145, %v3145
    %v3158 = vld [vmem:[#allocation14] sm:$0xf]
    %v3159 = vld [vmem:[#allocation14 + $0x4] sm:$0xf]
    %v3160 = vld [vmem:[#allocation14 + $0x8] sm:$0xf]
    %v3161 = vld [vmem:[#allocation14 + $0xc] sm:$0xf]
    %v3162 = vld [vmem:[#allocation14 + $0x10] sm:$0xf]
    %v3163 = vld [vmem:[#allocation14 + $0x14] sm:$0xf]
    %v3164 = vld [vmem:[#allocation14 + $0x18] sm:$0xf]
    %v3165 = vld [vmem:[#allocation14 + $0x1c] sm:$0xf]
    %v3166 = vld [vmem:[#allocation14 + $0x20] sm:$0xf]
    %v3167 = vld [vmem:[#allocation14 + $0x24] sm:$0xf]
    %v3168 = vld [vmem:[#allocation14 + $0x28] sm:$0xf]
    %v3169 = vld [vmem:[#allocation14 + $0x2c] sm:$0xf]
    %v3170 = vld [vmem:[#allocation14 + $0x30] sm:$0xf]
    %v3171 = vld [vmem:[#allocation14 + $0x34] sm:$0xf]
    %v3172 = vld [vmem:[#allocation14 + $0x38] sm:$0xf]
    %v3173 = vld [vmem:[#allocation14 + $0x3c] sm:$0xf]
    %v3174 = vld [vmem:[#allocation14 + $0x40] sm:$0xf]
    %v3175 = vld [vmem:[#allocation14 + $0x44] sm:$0xf]
    %v3176 = vld [vmem:[#allocation14 + $0x48] sm:$0xf]
    %v3177 = vld [vmem:[#allocation14 + $0x4c] sm:$0xf]
    %v3178 = vld [vmem:[#allocation14 + $0x50] sm:$0xf]
    %v3179 = vld [vmem:[#allocation14 + $0x54] sm:$0xf]
    %v3180 = vld [vmem:[#allocation14 + $0x58] sm:$0xf]
    %v3181 = vld [vmem:[#allocation14 + $0x5c] sm:$0xf]
    %v3182 = vld [vmem:[#allocation14 + $0x60] sm:$0xf]
    %v3183 = vld [vmem:[#allocation14 + $0x64] sm:$0xf]
    %v3184 = vld [vmem:[#allocation14 + $0x68] sm:$0xf]
    %v3185 = vld [vmem:[#allocation14 + $0x6c] sm:$0xf]
    %v3186 = vld [vmem:[#allocation14 + $0x70] sm:$0xf]
    %v3187 = vld [vmem:[#allocation14 + $0x74] sm:$0xf]
    %v3188 = vld [vmem:[#allocation14 + $0x78] sm:$0xf]
    %v3189 = vld [vmem:[#allocation14 + $0x7c] sm:$0xf]
    %v3190 = vld [vmem:[#allocation14 + $0x80] sm:$0xf]
    %v3191 = vld [vmem:[#allocation14 + $0x84] sm:$0xf]
    %v3192 = vld [vmem:[#allocation14 + $0x88] sm:$0xf]
    %v3193 = vld [vmem:[#allocation14 + $0x8c] sm:$0xf]
    %v3194 = vld [vmem:[#allocation14 + $0x90] sm:$0xf]
    %v3195 = vld [vmem:[#allocation14 + $0x94] sm:$0xf]
    %v3196 = vld [vmem:[#allocation14 + $0x98] sm:$0xf]
    %v3197 = vld [vmem:[#allocation14 + $0x9c] sm:$0xf]
    %v3198 = vld [vmem:[#allocation14 + $0xa0] sm:$0xf]
    %v3199 = vld [vmem:[#allocation14 + $0xa4] sm:$0xf]
    %v3200 = vld [vmem:[#allocation14 + $0xa8] sm:$0xf]
    %v3201 = vld [vmem:[#allocation14 + $0xac] sm:$0xf]
    %v3202 = vld [vmem:[#allocation14 + $0xb0] sm:$0xf]
    %v3203 = vld [vmem:[#allocation14 + $0xb4] sm:$0xf]
    %v3204 = vld [vmem:[#allocation14 + $0xb8] sm:$0xf]
    %v3205 = vld [vmem:[#allocation14 + $0xbc] sm:$0xf]
    %v3206 = vld [vmem:[#allocation14 + $0xc0] sm:$0xf]
    %v3207 = vld [vmem:[#allocation14 + $0xc4] sm:$0xf]
    %v3208 = vld [vmem:[#allocation14 + $0xc8] sm:$0xf]
    %v3209 = vld [vmem:[#allocation14 + $0xcc] sm:$0xf]
    %v3210 = vld [vmem:[#allocation14 + $0xd0] sm:$0xf]
    %v3211 = vld [vmem:[#allocation14 + $0xd4] sm:$0xf]
    %v3212 = vld [vmem:[#allocation14 + $0xd8] sm:$0xf]
    %v3213 = vld [vmem:[#allocation14 + $0xdc] sm:$0xf]
    %v3214 = vld [vmem:[#allocation14 + $0xe0] sm:$0xf]
    %v3215 = vld [vmem:[#allocation14 + $0xe4] sm:$0xf]
    %v3216 = vld [vmem:[#allocation14 + $0xe8] sm:$0xf]
    %v3217 = vld [vmem:[#allocation14 + $0xec] sm:$0xf]
    %v3218 = vld [vmem:[#allocation14 + $0xf0] sm:$0xf]
    %v3219 = vld [vmem:[#allocation14 + $0xf4] sm:$0xf]
    %v3220 = vld [vmem:[#allocation14 + $0xf8] sm:$0xf]
    %v3221 = vld [vmem:[#allocation14 + $0xfc] sm:$0xf]
    %v3222 = vld [vmem:[#allocation14 + $0x100] sm:$0xf]
    %v3223 = vld [vmem:[#allocation14 + $0x104] sm:$0xf]
    %v3224 = vld [vmem:[#allocation14 + $0x108] sm:$0xf]
    %v3225 = vld [vmem:[#allocation14 + $0x10c] sm:$0xf]
    %v3226 = vld [vmem:[#allocation14 + $0x110] sm:$0xf]
    %v3227 = vld [vmem:[#allocation14 + $0x114] sm:$0xf]
    %v3228 = vld [vmem:[#allocation14 + $0x118] sm:$0xf]
    %v3229 = vld [vmem:[#allocation14 + $0x11c] sm:$0xf]
    %v3230 = vld [vmem:[#allocation14 + $0x120] sm:$0xf]
    %v3231 = vld [vmem:[#allocation14 + $0x124] sm:$0xf]
    %v3232 = vld [vmem:[#allocation14 + $0x128] sm:$0xf]
    %v3233 = vld [vmem:[#allocation14 + $0x12c] sm:$0xf]
    %v3234 = vld [vmem:[#allocation14 + $0x130] sm:$0xf]
    %v3235 = vld [vmem:[#allocation14 + $0x134] sm:$0xf]
    %v3236 = vld [vmem:[#allocation14 + $0x138] sm:$0xf]
    %v3237 = vld [vmem:[#allocation14 + $0x13c] sm:$0xf]
    %v3238 = vld [vmem:[#allocation14 + $0x140] sm:$0xf]
    %v3239 = vld [vmem:[#allocation14 + $0x144] sm:$0xf]
    %v3240 = vld [vmem:[#allocation14 + $0x148] sm:$0xf]
    %v3241 = vld [vmem:[#allocation14 + $0x14c] sm:$0xf]
    %v3242 = vld [vmem:[#allocation14 + $0x150] sm:$0xf]
    %v3243 = vld [vmem:[#allocation14 + $0x154] sm:$0xf]
    %v3244 = vld [vmem:[#allocation14 + $0x158] sm:$0xf]
    %v3245 = vld [vmem:[#allocation14 + $0x15c] sm:$0xf]
    %v3246 = vld [vmem:[#allocation14 + $0x160] sm:$0xf]
    %v3247 = vld [vmem:[#allocation14 + $0x164] sm:$0xf]
    %v3248 = vld [vmem:[#allocation14 + $0x168] sm:$0xf]
    %v3249 = vld [vmem:[#allocation14 + $0x16c] sm:$0xf]
    %v3250 = vld [vmem:[#allocation14 + $0x170] sm:$0xf]
    %v3251 = vld [vmem:[#allocation14 + $0x174] sm:$0xf]
    %v3252 = vld [vmem:[#allocation14 + $0x178] sm:$0xf]
    %v3253 = vld [vmem:[#allocation14 + $0x17c] sm:$0xf]
    %v3350 = vunpack.c.l.b16 %v3158
    %v3351 = vunpack.c.l.b16 %v3159
    %v3352 = vunpack.c.l.b16 %v3160
    %v3353 = vunpack.c.l.b16 %v3161
    %v3354 = vunpack.c.l.b16 %v3162
    %v3355 = vunpack.c.l.b16 %v3163
    %v3356 = vunpack.c.l.b16 %v3164
    %v3357 = vunpack.c.l.b16 %v3165
    %v3358 = vunpack.c.l.b16 %v3166
    %v3359 = vunpack.c.l.b16 %v3167
    %v3360 = vunpack.c.l.b16 %v3168
    %v3361 = vunpack.c.l.b16 %v3169
    %v3362 = vunpack.c.l.b16 %v3170
    %v3363 = vunpack.c.l.b16 %v3171
    %v3364 = vunpack.c.l.b16 %v3172
    %v3365 = vunpack.c.l.b16 %v3173
    %v3366 = vunpack.c.l.b16 %v3174
    %v3367 = vunpack.c.l.b16 %v3175
    %v3368 = vunpack.c.l.b16 %v3176
    %v3369 = vunpack.c.l.b16 %v3177
    %v3370 = vunpack.c.l.b16 %v3178
    %v3371 = vunpack.c.l.b16 %v3179
    %v3372 = vunpack.c.l.b16 %v3180
    %v3373 = vunpack.c.l.b16 %v3181
    %v3374 = vunpack.c.l.b16 %v3182
    %v3375 = vunpack.c.l.b16 %v3183
    %v3376 = vunpack.c.l.b16 %v3184
    %v3377 = vunpack.c.l.b16 %v3185
    %v3378 = vunpack.c.l.b16 %v3186
    %v3379 = vunpack.c.l.b16 %v3187
    %v3380 = vunpack.c.l.b16 %v3188
    %v3381 = vunpack.c.l.b16 %v3189
    %v3382 = vunpack.c.l.b16 %v3190
    %v3383 = vunpack.c.l.b16 %v3191
    %v3384 = vunpack.c.l.b16 %v3192
    %v3385 = vunpack.c.l.b16 %v3193
    %v3386 = vunpack.c.l.b16 %v3194
    %v3387 = vunpack.c.l.b16 %v3195
    %v3388 = vunpack.c.l.b16 %v3196
    %v3389 = vunpack.c.l.b16 %v3197
    %v3390 = vunpack.c.l.b16 %v3198
    %v3391 = vunpack.c.l.b16 %v3199
    %v3392 = vunpack.c.l.b16 %v3200
    %v3393 = vunpack.c.l.b16 %v3201
    %v3394 = vunpack.c.l.b16 %v3202
    %v3395 = vunpack.c.l.b16 %v3203
    %v3396 = vunpack.c.l.b16 %v3204
    %v3397 = vunpack.c.l.b16 %v3205
    %v3398 = vunpack.c.l.b16 %v3206
    %v3399 = vunpack.c.l.b16 %v3207
    %v3400 = vunpack.c.l.b16 %v3208
    %v3401 = vunpack.c.l.b16 %v3209
    %v3402 = vunpack.c.l.b16 %v3210
    %v3403 = vunpack.c.l.b16 %v3211
    %v3404 = vunpack.c.l.b16 %v3212
    %v3405 = vunpack.c.l.b16 %v3213
    %v3406 = vunpack.c.l.b16 %v3214
    %v3407 = vunpack.c.l.b16 %v3215
    %v3408 = vunpack.c.l.b16 %v3216
    %v3409 = vunpack.c.l.b16 %v3217
    %v3410 = vunpack.c.l.b16 %v3218
    %v3411 = vunpack.c.l.b16 %v3219
    %v3412 = vunpack.c.l.b16 %v3220
    %v3413 = vunpack.c.l.b16 %v3221
    %v3414 = vunpack.c.l.b16 %v3222
    %v3415 = vunpack.c.l.b16 %v3223
    %v3416 = vunpack.c.l.b16 %v3224
    %v3417 = vunpack.c.l.b16 %v3225
    %v3418 = vunpack.c.l.b16 %v3226
    %v3419 = vunpack.c.l.b16 %v3227
    %v3420 = vunpack.c.l.b16 %v3228
    %v3421 = vunpack.c.l.b16 %v3229
    %v3422 = vunpack.c.l.b16 %v3230
    %v3423 = vunpack.c.l.b16 %v3231
    %v3424 = vunpack.c.l.b16 %v3232
    %v3425 = vunpack.c.l.b16 %v3233
    %v3426 = vunpack.c.l.b16 %v3234
    %v3427 = vunpack.c.l.b16 %v3235
    %v3428 = vunpack.c.l.b16 %v3236
    %v3429 = vunpack.c.l.b16 %v3237
    %v3430 = vunpack.c.l.b16 %v3238
    %v3431 = vunpack.c.l.b16 %v3239
    %v3432 = vunpack.c.l.b16 %v3240
    %v3433 = vunpack.c.l.b16 %v3241
    %v3434 = vunpack.c.l.b16 %v3242
    %v3435 = vunpack.c.l.b16 %v3243
    %v3436 = vunpack.c.l.b16 %v3244
    %v3437 = vunpack.c.l.b16 %v3245
    %v3438 = vunpack.c.l.b16 %v3246
    %v3439 = vunpack.c.l.b16 %v3247
    %v3440 = vunpack.c.l.b16 %v3248
    %v3441 = vunpack.c.l.b16 %v3249
    %v3442 = vunpack.c.l.b16 %v3250
    %v3443 = vunpack.c.l.b16 %v3251
    %v3444 = vunpack.c.l.b16 %v3252
    %v3445 = vunpack.c.l.b16 %v3253
    %v3446 = vpack.c.b16 %v3351, %v3350
    %v3447 = vpack.c.b16 %v3353, %v3352
    %v3448 = vpack.c.b16 %v3355, %v3354
    %v3449 = vpack.c.b16 %v3357, %v3356
    %v3450 = vpack.c.b16 %v3359, %v3358
    %v3451 = vpack.c.b16 %v3361, %v3360
    %v3452 = vpack.c.b16 %v3363, %v3362
    %v3453 = vpack.c.b16 %v3365, %v3364
    %v3454 = vpack.c.b16 %v3367, %v3366
    %v3455 = vpack.c.b16 %v3369, %v3368
    %v3456 = vpack.c.b16 %v3371, %v3370
    %v3457 = vpack.c.b16 %v3373, %v3372
    %v3458 = vpack.c.b16 %v3375, %v3374
    %v3459 = vpack.c.b16 %v3377, %v3376
    %v3460 = vpack.c.b16 %v3379, %v3378
    %v3461 = vpack.c.b16 %v3381, %v3380
    %v3462 = vpack.c.b16 %v3383, %v3382
    %v3463 = vpack.c.b16 %v3385, %v3384
    %v3464 = vpack.c.b16 %v3387, %v3386
    %v3465 = vpack.c.b16 %v3389, %v3388
    %v3466 = vpack.c.b16 %v3391, %v3390
    %v3467 = vpack.c.b16 %v3393, %v3392
    %v3468 = vpack.c.b16 %v3395, %v3394
    %v3469 = vpack.c.b16 %v3397, %v3396
    %v3470 = vpack.c.b16 %v3399, %v3398
    %v3471 = vpack.c.b16 %v3401, %v3400
    %v3472 = vpack.c.b16 %v3403, %v3402
    %v3473 = vpack.c.b16 %v3405, %v3404
    %v3474 = vpack.c.b16 %v3407, %v3406
    %v3475 = vpack.c.b16 %v3409, %v3408
    %v3476 = vpack.c.b16 %v3411, %v3410
    %v3477 = vpack.c.b16 %v3413, %v3412
    %v3478 = vpack.c.b16 %v3415, %v3414
    %v3479 = vpack.c.b16 %v3417, %v3416
    %v3480 = vpack.c.b16 %v3419, %v3418
    %v3481 = vpack.c.b16 %v3421, %v3420
    %v3482 = vpack.c.b16 %v3423, %v3422
    %v3483 = vpack.c.b16 %v3425, %v3424
    %v3484 = vpack.c.b16 %v3427, %v3426
    %v3485 = vpack.c.b16 %v3429, %v3428
    %v3486 = vpack.c.b16 %v3431, %v3430
    %v3487 = vpack.c.b16 %v3433, %v3432
    %v3488 = vpack.c.b16 %v3435, %v3434
    %v3489 = vpack.c.b16 %v3437, %v3436
    %v3490 = vpack.c.b16 %v3439, %v3438
    %v3491 = vpack.c.b16 %v3441, %v3440
    %v3492 = vpack.c.b16 %v3443, %v3442
    %v3493 = vpack.c.b16 %v3445, %v3444
    %3542 = vmatprep.subr.bf16.mxu0 0
    %3543 = vmatpush1.bf16.msra.mxu0 %v3446
    %3544 = vmatprep.subr.bf16.mxu0 0
    %3545 = vmatpush1.bf16.msra.mxu0 %v3447
    %3546 = vmatprep.subr.bf16.mxu0 0
    %3547 = vmatpush1.bf16.msra.mxu0 %v3448
    %3548 = vmatprep.subr.bf16.mxu0 0
    %3549 = vmatpush1.bf16.msra.mxu0 %v3449
    %3550 = vmatprep.subr.bf16.mxu0 0
    %3551 = vmatpush1.bf16.msra.mxu0 %v3450
    %3552 = vmatprep.subr.bf16.mxu0 0
    %3553 = vmatpush1.bf16.msra.mxu0 %v3451
    %3554 = vmatprep.subr.bf16.mxu0 0
    %3555 = vmatpush1.bf16.msra.mxu0 %v3452
    %3556 = vmatprep.subr.bf16.mxu0 0
    %3557 = vmatpush1.bf16.msra.mxu0 %v3453
    %3558 = vmatprep.subr.bf16.mxu0 0
    %3559 = vmatpush1.bf16.msra.mxu0 %v3454
    %3560 = vmatprep.subr.bf16.mxu0 0
    %3561 = vmatpush1.bf16.msra.mxu0 %v3455
    %3562 = vmatprep.subr.bf16.mxu0 0
    %3563 = vmatpush1.bf16.msra.mxu0 %v3456
    %3564 = vmatprep.subr.bf16.mxu0 0
    %3565 = vmatpush1.bf16.msra.mxu0 %v3457
    %3566 = vmatprep.subr.bf16.mxu0 0
    %3567 = vmatpush1.bf16.msra.mxu0 %v3458
    %3568 = vmatprep.subr.bf16.mxu0 0
    %3569 = vmatpush1.bf16.msra.mxu0 %v3459
    %3570 = vmatprep.subr.bf16.mxu0 0
    %3571 = vmatpush1.bf16.msra.mxu0 %v3460
    %3572 = vmatprep.subr.bf16.mxu0 0
    %3573 = vmatpush1.bf16.msra.mxu0 %v3461
    %3574 = vmatprep.mubr.bf16.mxu0 %v3153
    %3575 = vmatmul.mubr.bf16.gmra.mrb[0].mxu0 %v3152
    %v3576 = vpop.f32.mrb[0].mxu0
    %v3577 = vadd.f32 0.0, %v3576
    %v3578 = vpop.f32.mrb[0].mxu0
    %v3579 = vpop.f32.mrb[0].mxu0
    %v3580 = vpop.f32.mrb[0].mxu0
    %3581 = vdwg.mxu0
    %3582 = vmatprep.subr.bf16.mxu0 0
    %3583 = vmatpush1.bf16.msra.mxu0 %v3462
    %3584 = vmatprep.subr.bf16.mxu0 0
    %3585 = vmatpush1.bf16.msra.mxu0 %v3463
    %3586 = vmatprep.subr.bf16.mxu0 0
    %3587 = vmatpush1.bf16.msra.mxu0 %v3464
    %3588 = vmatprep.subr.bf16.mxu0 0
    %3589 = vmatpush1.bf16.msra.mxu0 %v3465
    %3590 = vmatprep.subr.bf16.mxu0 0
    %3591 = vmatpush1.bf16.msra.mxu0 %v3466
    %3592 = vmatprep.subr.bf16.mxu0 0
    %3593 = vmatpush1.bf16.msra.mxu0 %v3467
    %3594 = vmatprep.subr.bf16.mxu0 0
    %3595 = vmatpush1.bf16.msra.mxu0 %v3468
    %3596 = vmatprep.subr.bf16.mxu0 0
    %3597 = vmatpush1.bf16.msra.mxu0 %v3469
    %3598 = vmatprep.subr.bf16.mxu0 0
    %3599 = vmatpush1.bf16.msra.mxu0 %v3470
    %3600 = vmatprep.subr.bf16.mxu0 0
    %3601 = vmatpush1.bf16.msra.mxu0 %v3471
    %3602 = vmatprep.subr.bf16.mxu0 0
    %3603 = vmatpush1.bf16.msra.mxu0 %v3472
    %3604 = vmatprep.subr.bf16.mxu0 0
    %3605 = vmatpush1.bf16.msra.mxu0 %v3473
    %3606 = vmatprep.subr.bf16.mxu0 0
    %3607 = vmatpush1.bf16.msra.mxu0 %v3474
    %3608 = vmatprep.subr.bf16.mxu0 0
    %3609 = vmatpush1.bf16.msra.mxu0 %v3475
    %3610 = vmatprep.subr.bf16.mxu0 0
    %3611 = vmatpush1.bf16.msra.mxu0 %v3476
    %3612 = vmatprep.subr.bf16.mxu0 0
    %3613 = vmatpush1.bf16.msra.mxu0 %v3477
    %3614 = vmatprep.mubr.bf16.mxu0 %v3155
    %3615 = vmatmul.mubr.bf16.gmra.mrb[0].mxu0 %v3154
    %v3616 = vpop.f32.mrb[0].mxu0
    %v3617 = vadd.f32 %v3577, %v3616
    %v3618 = vpop.f32.mrb[0].mxu0
    %v3619 = vpop.f32.mrb[0].mxu0
    %v3620 = vpop.f32.mrb[0].mxu0
    %3621 = vdwg.mxu0
    %3622 = vmatprep.subr.bf16.mxu0 0
    %3623 = vmatpush1.bf16.msra.mxu0 %v3478
    %3624 = vmatprep.subr.bf16.mxu0 0
    %3625 = vmatpush1.bf16.msra.mxu0 %v3479
    %3626 = vmatprep.subr.bf16.mxu0 0
    %3627 = vmatpush1.bf16.msra.mxu0 %v3480
    %3628 = vmatprep.subr.bf16.mxu0 0
    %3629 = vmatpush1.bf16.msra.mxu0 %v3481
    %3630 = vmatprep.subr.bf16.mxu0 0
    %3631 = vmatpush1.bf16.msra.mxu0 %v3482
    %3632 = vmatprep.subr.bf16.mxu0 0
    %3633 = vmatpush1.bf16.msra.mxu0 %v3483
    %3634 = vmatprep.subr.bf16.mxu0 0
    %3635 = vmatpush1.bf16.msra.mxu0 %v3484
    %3636 = vmatprep.subr.bf16.mxu0 0
    %3637 = vmatpush1.bf16.msra.mxu0 %v3485
    %3638 = vmatprep.subr.bf16.mxu0 0
    %3639 = vmatpush1.bf16.msra.mxu0 %v3486
    %3640 = vmatprep.subr.bf16.mxu0 0
    %3641 = vmatpush1.bf16.msra.mxu0 %v3487
    %3642 = vmatprep.subr.bf16.mxu0 0
    %3643 = vmatpush1.bf16.msra.mxu0 %v3488
    %3644 = vmatprep.subr.bf16.mxu0 0
    %3645 = vmatpush1.bf16.msra.mxu0 %v3489
    %3646 = vmatprep.subr.bf16.mxu0 0
    %3647 = vmatpush1.bf16.msra.mxu0 %v3490
    %3648 = vmatprep.subr.bf16.mxu0 0
    %3649 = vmatpush1.bf16.msra.mxu0 %v3491
    %3650 = vmatprep.subr.bf16.mxu0 0
    %3651 = vmatpush1.bf16.msra.mxu0 %v3492
    %3652 = vmatprep.subr.bf16.mxu0 0
    %3653 = vmatpush1.bf16.msra.mxu0 %v3493
    %3654 = vmatprep.mubr.bf16.mxu0 %v3157
    %3655 = vmatmul.mubr.bf16.gmra.mrb[0].mxu0 %v3156
    %v3656 = vpop.f32.mrb[0].mxu0
    %v3657 = vadd.f32 %v3617, %v3656
    %v3658 = vpop.f32.mrb[0].mxu0
    %v3659 = vpop.f32.mrb[0].mxu0
    %v3660 = vpop.f32.mrb[0].mxu0
    %3661 = vdwg.mxu0
    %v3662 = vpack.c.bf16 %v3146, %v3140
    %v3663 = vpack.c.bf16 %v3147, %v3141
    %v3664 = vpack.c.bf16 %v3148, %v3142
    %v3665 = vpack.c.bf16 %v3149, %v3143
    %v3666 = vpack.c.bf16 %v3150, %v3144
    %v3667 = vpack.c.bf16 %v3151, %v3145
    %v3668 = vld [vmem:[#allocation15] sm:$0xf]
    %v3669 = vld [vmem:[#allocation15 + $0x4] sm:$0xf]
    %v3670 = vld [vmem:[#allocation15 + $0x8] sm:$0xf]
    %v3671 = vld [vmem:[#allocation15 + $0xc] sm:$0xf]
    %v3672 = vld [vmem:[#allocation15 + $0x10] sm:$0xf]
    %v3673 = vld [vmem:[#allocation15 + $0x14] sm:$0xf]
    %v3674 = vld [vmem:[#allocation15 + $0x18] sm:$0xf]
    %v3675 = vld [vmem:[#allocation15 + $0x1c] sm:$0xf]
    %v3676 = vld [vmem:[#allocation15 + $0x20] sm:$0xf]
    %v3677 = vld [vmem:[#allocation15 + $0x24] sm:$0xf]
    %v3678 = vld [vmem:[#allocation15 + $0x28] sm:$0xf]
    %v3679 = vld [vmem:[#allocation15 + $0x2c] sm:$0xf]
    %v3680 = vld [vmem:[#allocation15 + $0x30] sm:$0xf]
    %v3681 = vld [vmem:[#allocation15 + $0x34] sm:$0xf]
    %v3682 = vld [vmem:[#allocation15 + $0x38] sm:$0xf]
    %v3683 = vld [vmem:[#allocation15 + $0x3c] sm:$0xf]
    %v3684 = vld [vmem:[#allocation15 + $0x40] sm:$0xf]
    %v3685 = vld [vmem:[#allocation15 + $0x44] sm:$0xf]
    %v3686 = vld [vmem:[#allocation15 + $0x48] sm:$0xf]
    %v3687 = vld [vmem:[#allocation15 + $0x4c] sm:$0xf]
    %v3688 = vld [vmem:[#allocation15 + $0x50] sm:$0xf]
    %v3689 = vld [vmem:[#allocation15 + $0x54] sm:$0xf]
    %v3690 = vld [vmem:[#allocation15 + $0x58] sm:$0xf]
    %v3691 = vld [vmem:[#allocation15 + $0x5c] sm:$0xf]
    %v3692 = vld [vmem:[#allocation15 + $0x60] sm:$0xf]
    %v3693 = vld [vmem:[#allocation15 + $0x64] sm:$0xf]
    %v3694 = vld [vmem:[#allocation15 + $0x68] sm:$0xf]
    %v3695 = vld [vmem:[#allocation15 + $0x6c] sm:$0xf]
    %v3696 = vld [vmem:[#allocation15 + $0x70] sm:$0xf]
    %v3697 = vld [vmem:[#allocation15 + $0x74] sm:$0xf]
    %v3698 = vld [vmem:[#allocation15 + $0x78] sm:$0xf]
    %v3699 = vld [vmem:[#allocation15 + $0x7c] sm:$0xf]
    %v3700 = vld [vmem:[#allocation15 + $0x80] sm:$0xf]
    %v3701 = vld [vmem:[#allocation15 + $0x84] sm:$0xf]
    %v3702 = vld [vmem:[#allocation15 + $0x88] sm:$0xf]
    %v3703 = vld [vmem:[#allocation15 + $0x8c] sm:$0xf]
    %v3704 = vld [vmem:[#allocation15 + $0x90] sm:$0xf]
    %v3705 = vld [vmem:[#allocation15 + $0x94] sm:$0xf]
    %v3706 = vld [vmem:[#allocation15 + $0x98] sm:$0xf]
    %v3707 = vld [vmem:[#allocation15 + $0x9c] sm:$0xf]
    %v3708 = vld [vmem:[#allocation15 + $0xa0] sm:$0xf]
    %v3709 = vld [vmem:[#allocation15 + $0xa4] sm:$0xf]
    %v3710 = vld [vmem:[#allocation15 + $0xa8] sm:$0xf]
    %v3711 = vld [vmem:[#allocation15 + $0xac] sm:$0xf]
    %v3712 = vld [vmem:[#allocation15 + $0xb0] sm:$0xf]
    %v3713 = vld [vmem:[#allocation15 + $0xb4] sm:$0xf]
    %v3714 = vld [vmem:[#allocation15 + $0xb8] sm:$0xf]
    %v3715 = vld [vmem:[#allocation15 + $0xbc] sm:$0xf]
    %v3716 = vld [vmem:[#allocation15 + $0xc0] sm:$0xf]
    %v3717 = vld [vmem:[#allocation15 + $0xc4] sm:$0xf]
    %v3718 = vld [vmem:[#allocation15 + $0xc8] sm:$0xf]
    %v3719 = vld [vmem:[#allocation15 + $0xcc] sm:$0xf]
    %v3720 = vld [vmem:[#allocation15 + $0xd0] sm:$0xf]
    %v3721 = vld [vmem:[#allocation15 + $0xd4] sm:$0xf]
    %v3722 = vld [vmem:[#allocation15 + $0xd8] sm:$0xf]
    %v3723 = vld [vmem:[#allocation15 + $0xdc] sm:$0xf]
    %v3724 = vld [vmem:[#allocation15 + $0xe0] sm:$0xf]
    %v3725 = vld [vmem:[#allocation15 + $0xe4] sm:$0xf]
    %v3726 = vld [vmem:[#allocation15 + $0xe8] sm:$0xf]
    %v3727 = vld [vmem:[#allocation15 + $0xec] sm:$0xf]
    %v3728 = vld [vmem:[#allocation15 + $0xf0] sm:$0xf]
    %v3729 = vld [vmem:[#allocation15 + $0xf4] sm:$0xf]
    %v3730 = vld [vmem:[#allocation15 + $0xf8] sm:$0xf]
    %v3731 = vld [vmem:[#allocation15 + $0xfc] sm:$0xf]
    %v3732 = vld [vmem:[#allocation15 + $0x100] sm:$0xf]
    %v3733 = vld [vmem:[#allocation15 + $0x104] sm:$0xf]
    %v3734 = vld [vmem:[#allocation15 + $0x108] sm:$0xf]
    %v3735 = vld [vmem:[#allocation15 + $0x10c] sm:$0xf]
    %v3736 = vld [vmem:[#allocation15 + $0x110] sm:$0xf]
    %v3737 = vld [vmem:[#allocation15 + $0x114] sm:$0xf]
    %v3738 = vld [vmem:[#allocation15 + $0x118] sm:$0xf]
    %v3739 = vld [vmem:[#allocation15 + $0x11c] sm:$0xf]
    %v3740 = vld [vmem:[#allocation15 + $0x120] sm:$0xf]
    %v3741 = vld [vmem:[#allocation15 + $0x124] sm:$0xf]
    %v3742 = vld [vmem:[#allocation15 + $0x128] sm:$0xf]
    %v3743 = vld [vmem:[#allocation15 + $0x12c] sm:$0xf]
    %v3744 = vld [vmem:[#allocation15 + $0x130] sm:$0xf]
    %v3745 = vld [vmem:[#allocation15 + $0x134] sm:$0xf]
    %v3746 = vld [vmem:[#allocation15 + $0x138] sm:$0xf]
    %v3747 = vld [vmem:[#allocation15 + $0x13c] sm:$0xf]
    %v3748 = vld [vmem:[#allocation15 + $0x140] sm:$0xf]
    %v3749 = vld [vmem:[#allocation15 + $0x144] sm:$0xf]
    %v3750 = vld [vmem:[#allocation15 + $0x148] sm:$0xf]
    %v3751 = vld [vmem:[#allocation15 + $0x14c] sm:$0xf]
    %v3752 = vld [vmem:[#allocation15 + $0x150] sm:$0xf]
    %v3753 = vld [vmem:[#allocation15 + $0x154] sm:$0xf]
    %v3754 = vld [vmem:[#allocation15 + $0x158] sm:$0xf]
    %v3755 = vld [vmem:[#allocation15 + $0x15c] sm:$0xf]
    %v3756 = vld [vmem:[#allocation15 + $0x160] sm:$0xf]
    %v3757 = vld [vmem:[#allocation15 + $0x164] sm:$0xf]
    %v3758 = vld [vmem:[#allocation15 + $0x168] sm:$0xf]
    %v3759 = vld [vmem:[#allocation15 + $0x16c] sm:$0xf]
    %v3760 = vld [vmem:[#allocation15 + $0x170] sm:$0xf]
    %v3761 = vld [vmem:[#allocation15 + $0x174] sm:$0xf]
    %v3762 = vld [vmem:[#allocation15 + $0x178] sm:$0xf]
    %v3763 = vld [vmem:[#allocation15 + $0x17c] sm:$0xf]
    %v3770 = vrot.slane %v3662, 1
    %v3771 = vrot.slane %v3663, 1
    %v3772 = vrot.slane %v3664, 1
    %v3773 = vrot.slane %v3665, 1
    %v3774 = vrot.slane %v3666, 1
    %v3775 = vrot.slane %v3667, 1
    %v3878 = vunpack.c.l.b16 %v3668
    %v3879 = vunpack.c.l.b16 %v3669
    %v3880 = vunpack.c.l.b16 %v3670
    %v3881 = vunpack.c.l.b16 %v3671
    %v3882 = vunpack.c.l.b16 %v3672
    %v3883 = vunpack.c.l.b16 %v3673
    %v3884 = vunpack.c.l.b16 %v3674
    %v3885 = vunpack.c.l.b16 %v3675
    %v3886 = vunpack.c.l.b16 %v3676
    %v3887 = vunpack.c.l.b16 %v3677
    %v3888 = vunpack.c.l.b16 %v3678
    %v3889 = vunpack.c.l.b16 %v3679
    %v3890 = vunpack.c.l.b16 %v3680
    %v3891 = vunpack.c.l.b16 %v3681
    %v3892 = vunpack.c.l.b16 %v3682
    %v3893 = vunpack.c.l.b16 %v3683
    %v3894 = vunpack.c.l.b16 %v3684
    %v3895 = vunpack.c.l.b16 %v3685
    %v3896 = vunpack.c.l.b16 %v3686
    %v3897 = vunpack.c.l.b16 %v3687
    %v3898 = vunpack.c.l.b16 %v3688
    %v3899 = vunpack.c.l.b16 %v3689
    %v3900 = vunpack.c.l.b16 %v3690
    %v3901 = vunpack.c.l.b16 %v3691
    %v3902 = vunpack.c.l.b16 %v3692
    %v3903 = vunpack.c.l.b16 %v3693
    %v3904 = vunpack.c.l.b16 %v3694
    %v3905 = vunpack.c.l.b16 %v3695
    %v3906 = vunpack.c.l.b16 %v3696
    %v3907 = vunpack.c.l.b16 %v3697
    %v3908 = vunpack.c.l.b16 %v3698
    %v3909 = vunpack.c.l.b16 %v3699
    %v3910 = vunpack.c.l.b16 %v3700
    %v3911 = vunpack.c.l.b16 %v3701
    %v3912 = vunpack.c.l.b16 %v3702
    %v3913 = vunpack.c.l.b16 %v3703
    %v3914 = vunpack.c.l.b16 %v3704
    %v3915 = vunpack.c.l.b16 %v3705
    %v3916 = vunpack.c.l.b16 %v3706
    %v3917 = vunpack.c.l.b16 %v3707
    %v3918 = vunpack.c.l.b16 %v3708
    %v3919 = vunpack.c.l.b16 %v3709
    %v3920 = vunpack.c.l.b16 %v3710
    %v3921 = vunpack.c.l.b16 %v3711
    %v3922 = vunpack.c.l.b16 %v3712
    %v3923 = vunpack.c.l.b16 %v3713
    %v3924 = vunpack.c.l.b16 %v3714
    %v3925 = vunpack.c.l.b16 %v3715
    %v3926 = vunpack.c.l.b16 %v3716
    %v3927 = vunpack.c.l.b16 %v3717
    %v3928 = vunpack.c.l.b16 %v3718
    %v3929 = vunpack.c.l.b16 %v3719
    %v3930 = vunpack.c.l.b16 %v3720
    %v3931 = vunpack.c.l.b16 %v3721
    %v3932 = vunpack.c.l.b16 %v3722
    %v3933 = vunpack.c.l.b16 %v3723
    %v3934 = vunpack.c.l.b16 %v3724
    %v3935 = vunpack.c.l.b16 %v3725
    %v3936 = vunpack.c.l.b16 %v3726
    %v3937 = vunpack.c.l.b16 %v3727
    %v3938 = vunpack.c.l.b16 %v3728
    %v3939 = vunpack.c.l.b16 %v3729
    %v3940 = vunpack.c.l.b16 %v3730
    %v3941 = vunpack.c.l.b16 %v3731
    %v3942 = vunpack.c.l.b16 %v3732
    %v3943 = vunpack.c.l.b16 %v3733
    %v3944 = vunpack.c.l.b16 %v3734
    %v3945 = vunpack.c.l.b16 %v3735
    %v3946 = vunpack.c.l.b16 %v3736
    %v3947 = vunpack.c.l.b16 %v3737
    %v3948 = vunpack.c.l.b16 %v3738
    %v3949 = vunpack.c.l.b16 %v3739
    %v3950 = vunpack.c.l.b16 %v3740
    %v3951 = vunpack.c.l.b16 %v3741
    %v3952 = vunpack.c.l.b16 %v3742
    %v3953 = vunpack.c.l.b16 %v3743
    %v3954 = vunpack.c.l.b16 %v3744
    %v3955 = vunpack.c.l.b16 %v3745
    %v3956 = vunpack.c.l.b16 %v3746
    %v3957 = vunpack.c.l.b16 %v3747
    %v3958 = vunpack.c.l.b16 %v3748
    %v3959 = vunpack.c.l.b16 %v3749
    %v3960 = vunpack.c.l.b16 %v3750
    %v3961 = vunpack.c.l.b16 %v3751
    %v3962 = vunpack.c.l.b16 %v3752
    %v3963 = vunpack.c.l.b16 %v3753
    %v3964 = vunpack.c.l.b16 %v3754
    %v3965 = vunpack.c.l.b16 %v3755
    %v3966 = vunpack.c.l.b16 %v3756
    %v3967 = vunpack.c.l.b16 %v3757
    %v3968 = vunpack.c.l.b16 %v3758
    %v3969 = vunpack.c.l.b16 %v3759
    %v3970 = vunpack.c.l.b16 %v3760
    %v3971 = vunpack.c.l.b16 %v3761
    %v3972 = vunpack.c.l.b16 %v3762
    %v3973 = vunpack.c.l.b16 %v3763
    %v3974 = vpack.c.b16 %v3879, %v3878
    %v3975 = vpack.c.b16 %v3881, %v3880
    %v3976 = vpack.c.b16 %v3883, %v3882
    %v3977 = vpack.c.b16 %v3885, %v3884
    %v3978 = vpack.c.b16 %v3887, %v3886
    %v3979 = vpack.c.b16 %v3889, %v3888
    %v3980 = vpack.c.b16 %v3891, %v3890
    %v3981 = vpack.c.b16 %v3893, %v3892
    %v3982 = vpack.c.b16 %v3895, %v3894
    %v3983 = vpack.c.b16 %v3897, %v3896
    %v3984 = vpack.c.b16 %v3899, %v3898
    %v3985 = vpack.c.b16 %v3901, %v3900
    %v3986 = vpack.c.b16 %v3903, %v3902
    %v3987 = vpack.c.b16 %v3905, %v3904
    %v3988 = vpack.c.b16 %v3907, %v3906
    %v3989 = vpack.c.b16 %v3909, %v3908
    %v3990 = vpack.c.b16 %v3911, %v3910
    %v3991 = vpack.c.b16 %v3913, %v3912
    %v3992 = vpack.c.b16 %v3915, %v3914
    %v3993 = vpack.c.b16 %v3917, %v3916
    %v3994 = vpack.c.b16 %v3919, %v3918
    %v3995 = vpack.c.b16 %v3921, %v3920
    %v3996 = vpack.c.b16 %v3923, %v3922
    %v3997 = vpack.c.b16 %v3925, %v3924
    %v3998 = vpack.c.b16 %v3927, %v3926
    %v3999 = vpack.c.b16 %v3929, %v3928
    %v4000 = vpack.c.b16 %v3931, %v3930
    %v4001 = vpack.c.b16 %v3933, %v3932
    %v4002 = vpack.c.b16 %v3935, %v3934
    %v4003 = vpack.c.b16 %v3937, %v3936
    %v4004 = vpack.c.b16 %v3939, %v3938
    %v4005 = vpack.c.b16 %v3941, %v3940
    %v4006 = vpack.c.b16 %v3943, %v3942
    %v4007 = vpack.c.b16 %v3945, %v3944
    %v4008 = vpack.c.b16 %v3947, %v3946
    %v4009 = vpack.c.b16 %v3949, %v3948
    %v4010 = vpack.c.b16 %v3951, %v3950
    %v4011 = vpack.c.b16 %v3953, %v3952
    %v4012 = vpack.c.b16 %v3955, %v3954
    %v4013 = vpack.c.b16 %v3957, %v3956
    %v4014 = vpack.c.b16 %v3959, %v3958
    %v4015 = vpack.c.b16 %v3961, %v3960
    %v4016 = vpack.c.b16 %v3963, %v3962
    %v4017 = vpack.c.b16 %v3965, %v3964
    %v4018 = vpack.c.b16 %v3967, %v3966
    %v4019 = vpack.c.b16 %v3969, %v3968
    %v4020 = vpack.c.b16 %v3971, %v3970
    %v4021 = vpack.c.b16 %v3973, %v3972
    %4070 = vmatprep.subr.bf16.mxu0 0
    %4071 = vmatpush1.bf16.msra.mxu0 %v3974
    %4072 = vmatprep.subr.bf16.mxu0 0
    %4073 = vmatpush1.bf16.msra.mxu0 %v3975
    %4074 = vmatprep.subr.bf16.mxu0 0
    %4075 = vmatpush1.bf16.msra.mxu0 %v3976
    %4076 = vmatprep.subr.bf16.mxu0 0
    %4077 = vmatpush1.bf16.msra.mxu0 %v3977
    %4078 = vmatprep.subr.bf16.mxu0 0
    %4079 = vmatpush1.bf16.msra.mxu0 %v3978
    %4080 = vmatprep.subr.bf16.mxu0 0
    %4081 = vmatpush1.bf16.msra.mxu0 %v3979
    %4082 = vmatprep.subr.bf16.mxu0 0
    %4083 = vmatpush1.bf16.msra.mxu0 %v3980
    %4084 = vmatprep.subr.bf16.mxu0 0
    %4085 = vmatpush1.bf16.msra.mxu0 %v3981
    %4086 = vmatprep.subr.bf16.mxu0 0
    %4087 = vmatpush1.bf16.msra.mxu0 %v3982
    %4088 = vmatprep.subr.bf16.mxu0 0
    %4089 = vmatpush1.bf16.msra.mxu0 %v3983
    %4090 = vmatprep.subr.bf16.mxu0 0
    %4091 = vmatpush1.bf16.msra.mxu0 %v3984
    %4092 = vmatprep.subr.bf16.mxu0 0
    %4093 = vmatpush1.bf16.msra.mxu0 %v3985
    %4094 = vmatprep.subr.bf16.mxu0 0
    %4095 = vmatpush1.bf16.msra.mxu0 %v3986
    %4096 = vmatprep.subr.bf16.mxu0 0
    %4097 = vmatpush1.bf16.msra.mxu0 %v3987
    %4098 = vmatprep.subr.bf16.mxu0 0
    %4099 = vmatpush1.bf16.msra.mxu0 %v3988
    %4100 = vmatprep.subr.bf16.mxu0 0
    %4101 = vmatpush1.bf16.msra.mxu0 %v3989
    %4102 = vmatprep.mubr.bf16.mxu0 %v3771
    %4103 = vmatmul.mubr.bf16.gmra.mrb[0].mxu0 %v3770
    %v4104 = vpop.f32.mrb[0].mxu0
    %v4105 = vadd.f32 0.0, %v4104
    %v4106 = vpop.f32.mrb[0].mxu0
    %v4107 = vpop.f32.mrb[0].mxu0
    %v4108 = vadd.f32 0.0, %v4107
    %v4109 = vpop.f32.mrb[0].mxu0
    %4110 = vdwg.mxu0
    %4111 = vmatprep.subr.bf16.mxu0 0
    %4112 = vmatpush1.bf16.msra.mxu0 %v3990
    %4113 = vmatprep.subr.bf16.mxu0 0
    %4114 = vmatpush1.bf16.msra.mxu0 %v3991
    %4115 = vmatprep.subr.bf16.mxu0 0
    %4116 = vmatpush1.bf16.msra.mxu0 %v3992
    %4117 = vmatprep.subr.bf16.mxu0 0
    %4118 = vmatpush1.bf16.msra.mxu0 %v3993
    %4119 = vmatprep.subr.bf16.mxu0 0
    %4120 = vmatpush1.bf16.msra.mxu0 %v3994
    %4121 = vmatprep.subr.bf16.mxu0 0
    %4122 = vmatpush1.bf16.msra.mxu0 %v3995
    %4123 = vmatprep.subr.bf16.mxu0 0
    %4124 = vmatpush1.bf16.msra.mxu0 %v3996
    %4125 = vmatprep.subr.bf16.mxu0 0
    %4126 = vmatpush1.bf16.msra.mxu0 %v3997
    %4127 = vmatprep.subr.bf16.mxu0 0
    %4128 = vmatpush1.bf16.msra.mxu0 %v3998
    %4129 = vmatprep.subr.bf16.mxu0 0
    %4130 = vmatpush1.bf16.msra.mxu0 %v3999
    %4131 = vmatprep.subr.bf16.mxu0 0
    %4132 = vmatpush1.bf16.msra.mxu0 %v4000
    %4133 = vmatprep.subr.bf16.mxu0 0
    %4134 = vmatpush1.bf16.msra.mxu0 %v4001
    %4135 = vmatprep.subr.bf16.mxu0 0
    %4136 = vmatpush1.bf16.msra.mxu0 %v4002
    %4137 = vmatprep.subr.bf16.mxu0 0
    %4138 = vmatpush1.bf16.msra.mxu0 %v4003
    %4139 = vmatprep.subr.bf16.mxu0 0
    %4140 = vmatpush1.bf16.msra.mxu0 %v4004
    %4141 = vmatprep.subr.bf16.mxu0 0
    %4142 = vmatpush1.bf16.msra.mxu0 %v4005
    %4143 = vmatprep.mubr.bf16.mxu0 %v3773
    %4144 = vmatmul.mubr.bf16.gmra.mrb[0].mxu0 %v3772
    %v4145 = vpop.f32.mrb[0].mxu0
    %v4146 = vadd.f32 %v4105, %v4145
    %v4147 = vpop.f32.mrb[0].mxu0
    %v4148 = vpop.f32.mrb[0].mxu0
    %v4149 = vadd.f32 %v4108, %v4148
    %v4150 = vpop.f32.mrb[0].mxu0
    %4151 = vdwg.mxu0
    %4152 = vmatprep.subr.bf16.mxu0 0
    %4153 = vmatpush1.bf16.msra.mxu0 %v4006
    %4154 = vmatprep.subr.bf16.mxu0 0
    %4155 = vmatpush1.bf16.msra.mxu0 %v4007
    %4156 = vmatprep.subr.bf16.mxu0 0
    %4157 = vmatpush1.bf16.msra.mxu0 %v4008
    %4158 = vmatprep.subr.bf16.mxu0 0
    %4159 = vmatpush1.bf16.msra.mxu0 %v4009
    %4160 = vmatprep.subr.bf16.mxu0 0
    %4161 = vmatpush1.bf16.msra.mxu0 %v4010
    %4162 = vmatprep.subr.bf16.mxu0 0
    %4163 = vmatpush1.bf16.msra.mxu0 %v4011
    %4164 = vmatprep.subr.bf16.mxu0 0
    %4165 = vmatpush1.bf16.msra.mxu0 %v4012
    %4166 = vmatprep.subr.bf16.mxu0 0
    %4167 = vmatpush1.bf16.msra.mxu0 %v4013
    %4168 = vmatprep.subr.bf16.mxu0 0
    %4169 = vmatpush1.bf16.msra.mxu0 %v4014
    %4170 = vmatprep.subr.bf16.mxu0 0
    %4171 = vmatpush1.bf16.msra.mxu0 %v4015
    %4172 = vmatprep.subr.bf16.mxu0 0
    %4173 = vmatpush1.bf16.msra.mxu0 %v4016
    %4174 = vmatprep.subr.bf16.mxu0 0
    %4175 = vmatpush1.bf16.msra.mxu0 %v4017
    %4176 = vmatprep.subr.bf16.mxu0 0
    %4177 = vmatpush1.bf16.msra.mxu0 %v4018
    %4178 = vmatprep.subr.bf16.mxu0 0
    %4179 = vmatpush1.bf16.msra.mxu0 %v4019
    %4180 = vmatprep.subr.bf16.mxu0 0
    %4181 = vmatpush1.bf16.msra.mxu0 %v4020
    %4182 = vmatprep.subr.bf16.mxu0 0
    %4183 = vmatpush1.bf16.msra.mxu0 %v4021
    %4184 = vmatprep.mubr.bf16.mxu0 %v3775
    %4185 = vmatmul.mubr.bf16.gmra.mrb[0].mxu0 %v3774
    %v4186 = vpop.f32.mrb[0].mxu0
    %v4187 = vadd.f32 %v4146, %v4186
    %v4188 = vpop.f32.mrb[0].mxu0
    %v4189 = vpop.f32.mrb[0].mxu0
    %v4190 = vadd.f32 %v4149, %v4189
    %v4191 = vpop.f32.mrb[0].mxu0
    %4192 = vdwg.mxu0
    %v4193 = vld [vmem:[#allocation3] sm:$0xff]
    %v4194 = vld [vmem:[#allocation3 + $0x8] sm:$0x3]
    %vm4195 = vcmask 15360
    %v4197 = vsel %vm4195, %v4193, 0
    %v4200 = vsel %vm4195, %v4194, 0
    %vm4202 = vcmask 1041408
    %v4204 = vsel %vm4202, %v3657, 0
    %4206 = vmatprep.subr.mxu0 0.0
    %4207 = vmatpush1.msra.mxu0 %v4204
    %4208 = vmatprep.subr.mxu0 0.0
    %4209 = vmatpush1.msra.mxu0 0.0
    %4210 = vmatprep.subr.mxu0 0.0
    %4211 = vmatpush1.msra.mxu0 0.0
    %4212 = vmatprep.subr.mxu0 0.0
    %4213 = vmatpush1.msra.mxu0 0.0
    %4214 = vmatprep.subr.mxu0 0.0
    %4215 = vmatpush1.msra.mxu0 0.0
    %4216 = vmatprep.subr.mxu0 0.0
    %4217 = vmatpush1.msra.mxu0 0.0
    %4218 = vmatprep.subr.mxu0 0.0
    %4219 = vmatpush1.msra.mxu0 0.0
    %4220 = vmatprep.subr.mxu0 0.0
    %4221 = vmatpush1.msra.mxu0 0.0
    %4222 = vmatprep.subr.mxu0 0.0
    %4223 = vmatpush1.msra.mxu0 0.0
    %4224 = vmatprep.subr.mxu0 0.0
    %4225 = vmatpush1.msra.mxu0 0.0
    %4226 = vmatprep.subr.mxu0 0.0
    %4227 = vmatpush1.msra.mxu0 0.0
    %4228 = vmatprep.subr.mxu0 0.0
    %4229 = vmatpush1.msra.mxu0 0.0
    %4230 = vmatprep.subr.mxu0 0.0
    %4231 = vmatpush1.msra.mxu0 0.0
    %4232 = vmatprep.subr.mxu0 0.0
    %4233 = vmatpush1.msra.mxu0 0.0
    %4234 = vmatprep.subr.mxu0 0.0
    %4235 = vmatpush1.msra.mxu0 0.0
    %4236 = vmatprep.subr.mxu0 0.0
    %4237 = vmatpush1.msra.mxu0 0.0
    %4238 = vmatprep.subr.mxu0 0.0
    %4239 = vmatpush1.msra.mxu0 0.0
    %4240 = vmatprep.subr.mxu0 0.0
    %4241 = vmatpush1.msra.mxu0 0.0
    %4242 = vmatprep.subr.mxu0 0.0
    %4243 = vmatpush1.msra.mxu0 0.0
    %4244 = vmatprep.subr.mxu0 0.0
    %4245 = vmatpush1.msra.mxu0 0.0
    %4246 = vmatprep.subr.mxu0 0.0
    %4247 = vmatpush1.msra.mxu0 0.0
    %4248 = vmatprep.subr.mxu0 0.0
    %4249 = vmatpush1.msra.mxu0 0.0
    %4250 = vmatprep.subr.mxu0 0.0
    %4251 = vmatpush1.msra.mxu0 0.0
    %4252 = vmatprep.subr.mxu0 0.0
    %4253 = vmatpush1.msra.mxu0 0.0
    %4254 = vmatprep.subr.mxu0 0.0
    %4255 = vmatpush1.msra.mxu0 0.0
    %4256 = vmatprep.subr.mxu0 0.0
    %4257 = vmatpush1.msra.mxu0 0.0
    %4258 = vmatprep.subr.mxu0 0.0
    %4259 = vmatpush1.msra.mxu0 0.0
    %4260 = vmatprep.subr.mxu0 0.0
    %4261 = vmatpush1.msra.mxu0 0.0
    %4262 = vmatprep.subr.mxu0 0.0
    %4263 = vmatpush1.msra.mxu0 0.0
    %4264 = vmatprep.subr.mxu0 0.0
    %4265 = vmatpush1.msra.mxu0 0.0
    %4266 = vmatprep.subr.mxu0 0.0
    %4267 = vmatpush1.msra.mxu0 0.0
    %4268 = vmatprep.subr.mxu0 0.0
    %4269 = vmatpush1.msra.mxu0 0.0
    %4270 = vmatprep.mubr.f32.mxu0 0.0
    %4271 = vmatmul.mubr.f32.gmra.mrb[0].mxu0 %v4197
    %v4272 = vpop.f32.mrb[0].mxu0
    %v4273 = vadd.f32 %v4187, %v4272
    %v4274 = vpop.f32.mrb[0].mxu0
    %4275 = vmatprep.mubr.f32.mxu0 0.0
    %4276 = vmatmul.mubr.f32.gmra.mrb[0].mxu0 %v4200
    %v4277 = vpop.f32.mrb[0].mxu0
    %v4278 = vadd.f32 %v4190, %v4277
    %v4279 = vpop.f32.mrb[0].mxu0
    %4280 = vdwg.mxu0
    %v4281 = vld [vmem:[#allocation17] sm:$0x1]
    %v4283 = vlaneseq
    %v4284 = vshrl.u32 %v4283, 7
    %v4285 = vsub.s32 0, %v4284
    %v4286 = vrot.slane %v4281, %v4285
    %v4288 = vadd.f32 %v4273, %v4286
    %v4289 = vadd.f32 %v4278, %v4286
    %v4290 = vmax.f32 %v4288, 0.0
    %v4291 = vmax.f32 %v4289, 0.0
    %v4292 = vpack.c.bf16 %v4291, %v4290
    %v4293 = vld [vmem:[#allocation18] sm:$0xf]
    %v4294 = vld [vmem:[#allocation18 + $0x4] sm:$0xf]
    %v4295 = vld [vmem:[#allocation18 + $0x8] sm:$0xf]
    %v4296 = vld [vmem:[#allocation18 + $0xc] sm:$0xf]
    %v4297 = vld [vmem:[#allocation18 + $0x10] sm:$0xf]
    %v4298 = vld [vmem:[#allocation18 + $0x14] sm:$0xf]
    %v4299 = vld [vmem:[#allocation18 + $0x18] sm:$0xf]
    %v4300 = vld [vmem:[#allocation18 + $0x1c] sm:$0xf]
    %v4301 = vld [vmem:[#allocation18 + $0x20] sm:$0xf]
    %v4302 = vld [vmem:[#allocation18 + $0x24] sm:$0xf]
    %v4303 = vld [vmem:[#allocation18 + $0x28] sm:$0xf]
    %v4304 = vld [vmem:[#allocation18 + $0x2c] sm:$0xf]
    %v4305 = vld [vmem:[#allocation18 + $0x30] sm:$0xf]
    %v4306 = vld [vmem:[#allocation18 + $0x34] sm:$0xf]
    %v4307 = vld [vmem:[#allocation18 + $0x38] sm:$0xf]
    %v4308 = vld [vmem:[#allocation18 + $0x3c] sm:$0xf]
    %v4309 = vld [vmem:[#allocation20] sm:$0x1]
    %v4311 = vlaneseq
    %v4312 = vshrl.u32 %v4311, 7
    %v4313 = vsub.s32 0, %v4312
    %v4314 = vrot.slane %v4309, %v4313
    %v4332 = vunpack.c.l.b16 %v4293
    %v4333 = vunpack.c.l.b16 %v4294
    %v4334 = vunpack.c.l.b16 %v4295
    %v4335 = vunpack.c.l.b16 %v4296
    %v4336 = vunpack.c.l.b16 %v4297
    %v4337 = vunpack.c.l.b16 %v4298
    %v4338 = vunpack.c.l.b16 %v4299
    %v4339 = vunpack.c.l.b16 %v4300
    %v4340 = vunpack.c.l.b16 %v4301
    %v4341 = vunpack.c.l.b16 %v4302
    %v4342 = vunpack.c.l.b16 %v4303
    %v4343 = vunpack.c.l.b16 %v4304
    %v4344 = vunpack.c.l.b16 %v4305
    %v4345 = vunpack.c.l.b16 %v4306
    %v4346 = vunpack.c.l.b16 %v4307
    %v4347 = vunpack.c.l.b16 %v4308
    %v4348 = vpack.c.b16 %v4333, %v4332
    %v4349 = vpack.c.b16 %v4335, %v4334
    %v4350 = vpack.c.b16 %v4337, %v4336
    %v4351 = vpack.c.b16 %v4339, %v4338
    %v4352 = vpack.c.b16 %v4341, %v4340
    %v4353 = vpack.c.b16 %v4343, %v4342
    %v4354 = vpack.c.b16 %v4345, %v4344
    %v4355 = vpack.c.b16 %v4347, %v4346
    %4364 = vmatprep.subr.bf16.mxu0 0
    %4365 = vmatpush1.bf16.msra.mxu0 %v4348
    %4366 = vmatprep.subr.bf16.mxu0 0
    %4367 = vmatpush1.bf16.msra.mxu0 %v4349
    %4368 = vmatprep.subr.bf16.mxu0 0
    %4369 = vmatpush1.bf16.msra.mxu0 %v4350
    %4370 = vmatprep.subr.bf16.mxu0 0
    %4371 = vmatpush1.bf16.msra.mxu0 %v4351
    %4372 = vmatprep.subr.bf16.mxu0 0
    %4373 = vmatpush1.bf16.msra.mxu0 %v4352
    %4374 = vmatprep.subr.bf16.mxu0 0
    %4375 = vmatpush1.bf16.msra.mxu0 %v4353
    %4376 = vmatprep.subr.bf16.mxu0 0
    %4377 = vmatpush1.bf16.msra.mxu0 %v4354
    %4378 = vmatprep.subr.bf16.mxu0 0
    %4379 = vmatpush1.bf16.msra.mxu0 %v4355
    %4380 = vmatprep.subr.bf16.mxu0 0
    %4381 = vmatpush1.bf16.msra.mxu0 0
    %4382 = vmatprep.subr.bf16.mxu0 0
    %4383 = vmatpush1.bf16.msra.mxu0 0
    %4384 = vmatprep.subr.bf16.mxu0 0
    %4385 = vmatpush1.bf16.msra.mxu0 0
    %4386 = vmatprep.subr.bf16.mxu0 0
    %4387 = vmatpush1.bf16.msra.mxu0 0
    %4388 = vmatprep.subr.bf16.mxu0 0
    %4389 = vmatpush1.bf16.msra.mxu0 0
    %4390 = vmatprep.subr.bf16.mxu0 0
    %4391 = vmatpush1.bf16.msra.mxu0 0
    %4392 = vmatprep.subr.bf16.mxu0 0
    %4393 = vmatpush1.bf16.msra.mxu0 0
    %4394 = vmatprep.subr.bf16.mxu0 0
    %4395 = vmatpush1.bf16.msra.mxu0 0
    %4396 = vmatprep.mubr.bf16.mxu0 0
    %4397 = vmatmul.mubr.bf16.gmra.mrb[0].mxu0 %v4292
    %v4398 = vpop.f32.mrb[0].mxu0
    %v4399 = vadd.f32 %v4314, %v4398
    %v4400 = vpop.f32.mrb[0].mxu0
    %v4401 = vpop.f32.mrb[0].mxu0
    %v4402 = vadd.f32 %v4314, %v4401
    %v4403 = vpop.f32.mrb[0].mxu0
    %4404 = vdwg.mxu0
    %v4405 = vmax.f32 %v4399, 0.0
    %v4406 = vmax.f32 %v4402, 0.0
    %v4407 = vld [vmem:[#allocation21] sm:$0x1]
    %v4409 = vlaneseq
    %v4410 = vshrl.u32 %v4409, 7
    %v4411 = vsub.s32 0, %v4410
    %v4412 = vrot.slane %v4407, %v4411
    %v4414 = vmul.f32 %v4405, %v4412
    %v4415 = vmul.f32 %v4406, %v4412
    %4416 = vadd.xlane.f32.xlu0 %v4414
    %v4417 = vpop.xlane.xlu0 %4416
    %v4418 = vsel %vm4202, %v4415, 0.0
    %4419 = vadd.xlane.f32.xlu0 %v4418
    %v4420 = vpop.xlane.xlu0 %4419
    %v4421 = vld [vmem:[#allocation2] sm:$0x1]
    %v4423 = vlaneseq
    %v4424 = vshrl.u32 %v4423, 7
    %v4425 = vsub.s32 0, %v4424
    %v4426 = vrot.slane %v4421, %v4425
    %v4428 = vadd.f32 %v4417, %v4426
    %v4429 = vadd.f32 %v4420, %v4426
    %v4430 = vld [vmem:[#allocation6] sm:$0x3]
    %v4431 = vld [vmem:[#allocation8] sm:$0xff]
    %v4432 = vld [vmem:[#allocation8 + $0x8] sm:$0x3]
    %4434 = vset.pattern.permute.xlu0 0
    %4435 = vperm.xlu0 %4434, %v4428
    %v4436 = vpop.permute.xlu0 %4435
    %4439 = vset.pattern.permute.xlu0 0
    %4440 = vperm.xlu0 %4439, %v4429
    %v4441 = vpop.permute.xlu0 %4440
    %v4443 = vmul.f32 %v4436, %v4431
    %v4444 = vmul.f32 %v4441, %v4432
    %vm4445 = vcmask 80896
    %v4447 = vsel %vm4445, %v4430, 0
    %v4450 = vsel %vm4202, %v4444, 0
    %4452 = vmatprep.subr.mxu0 0.0
    %4453 = vmatpush1.msra.mxu0 %v4443
    %4454 = vmatprep.subr.mxu0 0.0
    %4455 = vmatpush1.msra.mxu0 %v4450
    %4456 = vmatprep.subr.mxu0 0.0
    %4457 = vmatpush1.msra.mxu0 0.0
    %4458 = vmatprep.subr.mxu0 0.0
    %4459 = vmatpush1.msra.mxu0 0.0
    %4460 = vmatprep.subr.mxu0 0.0
    %4461 = vmatpush1.msra.mxu0 0.0
    %4462 = vmatprep.subr.mxu0 0.0
    %4463 = vmatpush1.msra.mxu0 0.0
    %4464 = vmatprep.subr.mxu0 0.0
    %4465 = vmatpush1.msra.mxu0 0.0
    %4466 = vmatprep.subr.mxu0 0.0
    %4467 = vmatpush1.msra.mxu0 0.0
    %4468 = vmatprep.subr.mxu0 0.0
    %4469 = vmatpush1.msra.mxu0 0.0
    %4470 = vmatprep.subr.mxu0 0.0
    %4471 = vmatpush1.msra.mxu0 0.0
    %4472 = vmatprep.subr.mxu0 0.0
    %4473 = vmatpush1.msra.mxu0 0.0
    %4474 = vmatprep.subr.mxu0 0.0
    %4475 = vmatpush1.msra.mxu0 0.0
    %4476 = vmatprep.subr.mxu0 0.0
    %4477 = vmatpush1.msra.mxu0 0.0
    %4478 = vmatprep.subr.mxu0 0.0
    %4479 = vmatpush1.msra.mxu0 0.0
    %4480 = vmatprep.subr.mxu0 0.0
    %4481 = vmatpush1.msra.mxu0 0.0
    %4482 = vmatprep.subr.mxu0 0.0
    %4483 = vmatpush1.msra.mxu0 0.0
    %4484 = vmatprep.subr.mxu0 0.0
    %4485 = vmatpush1.msra.mxu0 0.0
    %4486 = vmatprep.subr.mxu0 0.0
    %4487 = vmatpush1.msra.mxu0 0.0
    %4488 = vmatprep.subr.mxu0 0.0
    %4489 = vmatpush1.msra.mxu0 0.0
    %4490 = vmatprep.subr.mxu0 0.0
    %4491 = vmatpush1.msra.mxu0 0.0
    %4492 = vmatprep.subr.mxu0 0.0
    %4493 = vmatpush1.msra.mxu0 0.0
    %4494 = vmatprep.subr.mxu0 0.0
    %4495 = vmatpush1.msra.mxu0 0.0
    %4496 = vmatprep.subr.mxu0 0.0
    %4497 = vmatpush1.msra.mxu0 0.0
    %4498 = vmatprep.subr.mxu0 0.0
    %4499 = vmatpush1.msra.mxu0 0.0
    %4500 = vmatprep.subr.mxu0 0.0
    %4501 = vmatpush1.msra.mxu0 0.0
    %4502 = vmatprep.subr.mxu0 0.0
    %4503 = vmatpush1.msra.mxu0 0.0
    %4504 = vmatprep.subr.mxu0 0.0
    %4505 = vmatpush1.msra.mxu0 0.0
    %4506 = vmatprep.subr.mxu0 0.0
    %4507 = vmatpush1.msra.mxu0 0.0
    %4508 = vmatprep.subr.mxu0 0.0
    %4509 = vmatpush1.msra.mxu0 0.0
    %4510 = vmatprep.subr.mxu0 0.0
    %4511 = vmatpush1.msra.mxu0 0.0
    %4512 = vmatprep.subr.mxu0 0.0
    %4513 = vmatpush1.msra.mxu0 0.0
    %4514 = vmatprep.subr.mxu0 0.0
    %4515 = vmatpush1.msra.mxu0 0.0
    %4516 = vmatprep.mubr.f32.mxu0 0.0
    %4517 = vmatmul.mubr.f32.gmra.mrb[0].mxu0 %v4447
    %v4518 = vpop.f32.mrb[0].mxu0
    %v4519 = vadd.f32 0.0, %v4518
    %v4520 = vpop.f32.mrb[0].mxu0
    %4521 = vdwg.mxu0
    %vm4522 = vcmask 33792
    %v4523 = vsel %vm4522, %v4519, -inf
    %4524 = vmax.xlane.f32.xlu0 %v4523
    %v4525 = vpop.xlane.xlu0 %4524
    %v4526 = vsub.f32 %v4519, %v4525
    %v4527 = vmul.f32 %v4526, 1.442695
    %v4528 = vpow.pop %v4527
    %v4529 = vsel %vm4522, %v4528, 0.0
    %4530 = vadd.xlane.f32.xlu0 %v4529
    %v4531 = vpop.xlane.xlu0 %4530
    %v4532 = vlog2.pop %v4531
    %v4533 = vmul.f32 %v4532, 0.6931472
    %v4534 = vsub.f32 %v4526, %v4533
    %4535 = vst.msk [vmem:[#allocation23] sm:$0x3] %vm4522, %v4534
    // Predicated region
    $region110: #{ernie_guesser_forward.1} parent=1 // pred_check
      _
    $region111: #{ernie_guesser_forward.1} parent=1 // pred_check_branch
      %4537 = sbr.rel (0) target = $region113
    $region112: #{ernie_guesser_forward.1} parent=1 // pred_region
      %s4539 = ssub.s32 32, 32
      %4540 = vsyncadd [#allocation5], %s4539
      %s4542 = sshll.u32 [#allocation23], 4
      %s4543 = int_to_ptr.vmem [resolvable:$true] %s4542
      %4545 = dma.vmem_to_hbm [thread:$0]  %s4543, 32, %s15, [#allocation5]
    $region113: #{ernie_guesser_forward.1} parent=1 // pred_fallthru
      _
    // Predicated region
    $region114: #{ernie_guesser_forward.1} parent=1 // pred_check
      _
    $region115: #{ernie_guesser_forward.1} parent=1 // pred_check_branch
      %4547 = sbr.rel (0) target = $region117
    $region116: #{ernie_guesser_forward.1} parent=1 // pred_region
      %4548 = dma.done [#allocation5], 32
    $region117: #{ernie_guesser_forward.1} parent=1 // pred_fallthru
      _
    %4549 = vsyncpa [#allocation4], 1
    %4550 = vsyncpa [#allocation7], 1
    %4551 = vsyncpa [#allocation10], 1
    %4552 = vsyncpa [#allocation13], 1
    %4553 = vsyncpa [#allocation16], 1
    %4554 = vsyncpa [#allocation19], 1
    %4555 = vsyncpa [#allocation22], 1
    %4556 = vsyncpa [#allocation5], 1

</llo_original>
